<compile_context>
chip_gen: v7x
topology: tpu7x:2x2x1
jax: 0.10.0
libtpu: 0.0.40
codegen_flags: <defaults>
</compile_context>

<pallas_src>
import jax
import jax.numpy as jnp
from jax import lax
from jax.experimental import pallas as pl
from jax.experimental.pallas import tpu as pltpu


# ---------------------------------------------------------------------------
# Kernels
# ---------------------------------------------------------------------------
def _lstm_fused_kernel(x_ref, wih_ref, whh_ref, b_ref,      # inputs
                       y_ref, hn_ref, cn_ref,                # outputs
                       gates_scr):                           # scratch
    """One (batch chunk, time chunk) step of an LSTM layer, time-major.

    x_ref    : (Tc, Bb, D)  bf16   time-major input chunk
    wih_ref  : (D, 4H)      bf16   input-projection weight (resident)
    whh_ref  : (H, 4H)      bf16   recurrent weight (resident)
    b_ref    : (1, 4H)      f32    b_ih + b_hh fused
    y_ref    : (Tc, Bb, H)  bf16   time-major hidden outputs
    hn_ref   : (Bb, H)      f32    carried across time chunks (VMEM resident)
    cn_ref   : (Bb, H)      f32
    gates_scr: (Tc, Bb, 4H) f32    fused input projection for the whole chunk
    """
    Tc, Bb, D = x_ref.shape
    H = whh_ref.shape[0]
    G = 4 * H

    @pl.when(pl.program_id(1) == 0)
    def _():
        hn_ref[...] = jnp.zeros_like(hn_ref)
        cn_ref[...] = jnp.zeros_like(cn_ref)

    # ---- Fused input projection: one fat MXU matmul per chunk (off the
    #      serial critical path, replaces a separate pallas_call + HBM traffic).
    x_flat = x_ref[...].astype(wih_ref.dtype).reshape(Tc * Bb, D)
    gin = jnp.dot(x_flat, wih_ref[...], preferred_element_type=jnp.float32)
    gin = gin + b_ref[...].astype(jnp.float32)
    gates_scr[...] = gin.reshape(Tc, Bb, G)

    # Hoist loop-invariant recurrent weight load out of the serial loop.
    whh = whh_ref[...]                                       # (H, 4H) bf16

    def step(t, carry):
        h, c = carry                                         # f32 (Bb, H)
        # Aligned, contiguous per-step slab (time-major layout).
        g_in = gates_scr[pl.ds(t, 1), :, :].reshape(Bb, G)
        gates = g_in + jnp.dot(h.astype(whh.dtype), whh,
                               preferred_element_type=jnp.float32)
        # PyTorch gate ordering: input, forget, cell(g), output
        i_g = jax.nn.sigmoid(gates[:, 0 * H:1 * H])
        f_g = jax.nn.sigmoid(gates[:, 1 * H:2 * H])
        g_g = jnp.tanh(gates[:, 2 * H:3 * H])
        o_g = jax.nn.sigmoid(gates[:, 3 * H:4 * H])
        c_new = f_g * c + i_g * g_g
        h_new = o_g * jnp.tanh(c_new)
        # Time-major store: one contiguous (Bb, H) slab per timestep; bf16
        # inter-layer activation halves HBM writeback of the largest tensor.
        y_ref[pl.ds(t, 1), :, :] = h_new.reshape(1, Bb, H).astype(y_ref.dtype)
        return h_new, c_new

    unroll = Tc if Tc <= 8 else 8
    h_fin, c_fin = lax.fori_loop(0, Tc, step, (hn_ref[...], cn_ref[...]),
                                 unroll=unroll)
    hn_ref[...] = h_fin
    cn_ref[...] = c_fin


def _linear_softmax_kernel(x_ref, w_ref, b_ref, o_ref):
    x = x_ref[...].astype(w_ref.dtype)                       # bf16 into the MXU
    logits = (jnp.dot(x, w_ref[...], preferred_element_type=jnp.float32)
              + b_ref[...].astype(jnp.float32))
    m = jnp.max(logits, axis=-1, keepdims=True)
    e = jnp.exp(logits - m)
    denom = jnp.sum(e, axis=-1, keepdims=True)
    # approx reciprocal -> EUP slot (VPU divide avoided)
    o_ref[...] = e * pl.reciprocal(denom, approx=True)


# ---------------------------------------------------------------------------
# Pallas wrappers
# ---------------------------------------------------------------------------
def _choose_batch_chunk(batch, target=128):
    """Full batch if small; otherwise the largest multiple-of-8 divisor <=
    target (fills MXU rows; B >= 2*target yields >=2 'parallel' grid steps so
    v7x megacore can shard the batch axis)."""
    if batch <= target:
        return batch
    for cand in range(target, 7, -1):
        if cand % 8 == 0 and batch % cand == 0:
            return cand
    return batch


def _choose_time_chunk(T, Bb, D, H, budget_bytes):
    """Largest divisor of T whose chunk-resident VMEM footprint (double-buffered
    x/y blocks + f32 gate scratch) fits the budget."""
    per_t = (2 * Bb * D * 2          # x block, bf16, double-buffered
             + 2 * Bb * H * 2        # y block, bf16, double-buffered
             + Bb * 4 * H * 4)       # gates scratch, f32
    tc = int(max(1, min(T, budget_bytes // max(per_t, 1), 512)))
    while T % tc:
        tc -= 1
    return tc


def lstm_layer(x_tm, w_ih_t, w_hh_t, b, *, batch_target=128,
               vmem_budget_bytes=8 * 1024 * 1024):
    """One LSTM layer with its input projection fused into the recurrent kernel.

    x_tm: (T, B, D) time-major (bf16 preferred).
    w_ih_t: (D, 4H) bf16, w_hh_t: (H, 4H) bf16, b: (1, 4H) f32.
    Returns (y (T,B,H) bf16, h_n (B,H) f32, c_n (B,H) f32)."""
    T, B, D = x_tm.shape
    H = w_hh_t.shape[0]
    G = 4 * H

    Bb = _choose_batch_chunk(B, batch_target)
    Tc = _choose_time_chunk(T, Bb, D, H, vmem_budget_bytes)

    return pl.pallas_call(
        _lstm_fused_kernel,
        out_shape=(
            jax.ShapeDtypeStruct((T, B, H), jnp.bfloat16),   # inter-layer act bf16
            jax.ShapeDtypeStruct((B, H), jnp.float32),
            jax.ShapeDtypeStruct((B, H), jnp.float32),
        ),
        grid=(B // Bb, T // Tc),
        in_specs=[
            pl.BlockSpec((Tc, Bb, D), lambda bi, ti: (ti, bi, 0)),
            pl.BlockSpec((D, G), lambda bi, ti: (0, 0)),     # weights stay resident
            pl.BlockSpec((H, G), lambda bi, ti: (0, 0)),
            pl.BlockSpec((1, G), lambda bi, ti: (0, 0)),
        ],
        out_specs=(
            pl.BlockSpec((Tc, Bb, H), lambda bi, ti: (ti, bi, 0)),
            pl.BlockSpec((Bb, H), lambda bi, ti: (bi, 0)),   # h carried across ti
            pl.BlockSpec((Bb, H), lambda bi, ti: (bi, 0)),   # c carried across ti
        ),
        scratch_shapes=[pltpu.VMEM((Tc, Bb, G), jnp.float32)],
        compiler_params=pltpu.CompilerParams(
            dimension_semantics=("parallel", "arbitrary"),
            # Tc is budgeted to ~8 MiB of chunk-resident data, so 32 MiB scoped
            # VMEM is safe on v5e/v6e (128 MiB phys) and on v7x (64 MiB phys).
            vmem_limit_bytes=32 * 1024 * 1024,
        ),
    )(x_tm, w_ih_t, w_hh_t, b)


def _row_block(n, target=512):
    """Fat row tiles: one block if it fits, else a large multiple-of-8 divisor."""
    if n <= target:
        return n
    for cand in (1024, 512, 256, 128, 64, 32, 16, 8):
        if cand <= target and n % cand == 0:
            return cand
    return n


def linear_softmax(x, w_t, b):
    """softmax(x @ w_t + b) per row. x: (N, Din), w_t: (Din, Dout), b: (1, Dout)."""
    n, d_in = x.shape
    d_out = w_t.shape[1]
    rows = _row_block(n)
    # TODO(synk): if Din/Dout ever grow large, tile d_out and add a K
    # "arbitrary" grid axis with an f32 accumulator instead of keeping the
    # whole (Din, Dout) weight resident.
    return pl.pallas_call(
        _linear_softmax_kernel,
        out_shape=jax.ShapeDtypeStruct((n, d_out), jnp.float32),
        grid=(n // rows,),
        in_specs=[
            pl.BlockSpec((rows, d_in), lambda i: (i, 0)),
            pl.BlockSpec((d_in, d_out), lambda i: (0, 0)),
            pl.BlockSpec((1, d_out), lambda i: (0, 0)),
        ],
        out_specs=pl.BlockSpec((rows, d_out), lambda i: (i, 0)),
        compiler_params=pltpu.CompilerParams(dimension_semantics=("parallel",)),
    )(x, w_t, b)


# ---------------------------------------------------------------------------
# Model: parameter init + forward
# ---------------------------------------------------------------------------
def init_params(key, n_vocab, embed_dim, n_hidden, n_output, n_layers,
                weight_dtype=jnp.bfloat16):
    ks = jax.random.split(key, 5 + 3 * n_layers)
    wd = weight_dtype
    p = {
        "embedding": (0.1 * jax.random.normal(ks[0], (n_vocab, embed_dim))).astype(wd),
        "fc1_w_t": (0.1 * jax.random.normal(ks[1], (3 * embed_dim, embed_dim))).astype(wd),
        "fc1_b": 0.1 * jax.random.normal(ks[2], (1, embed_dim), jnp.float32),
        "fc2_w_t": (0.1 * jax.random.normal(ks[3], (n_hidden, n_output))).astype(wd),
        "fc2_b": 0.1 * jax.random.normal(ks[4], (1, n_output), jnp.float32),
        "lstm": [],
    }
    for layer in range(n_layers):
        d_in = embed_dim if layer == 0 else n_hidden
        k0, k1, k2 = ks[5 + 3 * layer: 8 + 3 * layer]
        p["lstm"].append({
            "w_ih_t": (0.1 * jax.random.normal(k0, (d_in, 4 * n_hidden))).astype(wd),
            "w_hh_t": (0.1 * jax.random.normal(k1, (n_hidden, 4 * n_hidden))).astype(wd),
            # PyTorch has separate b_ih and b_hh; they are always summed -> fuse.
            "b": 0.1 * jax.random.normal(k2, (1, 4 * n_hidden), jnp.float32),
        })
    return p


def ast2class_forward(params, input_words):
    """input_words: int32 (B, num_paths, 3).  Returns (softmax_last, (h_n, c_n))."""
    B, T, _ = input_words.shape
    E = params["embedding"].shape[1]

    # Embedding gather straight into time-major layout: transpose the tiny int
    # index tensor (not the embedded activations), (T, B, 3, E) -> (T, B, 3E).
    idx_tm = jnp.transpose(input_words, (1, 0, 2))
    emb = jnp.take(params["embedding"], idx_tm, axis=0).reshape(T, B, 3 * E)

    # Fold fc_1 into layer-0's input projection (no nonlinearity between them):
    #   fc1(x) @ W_ih0 + b0 == x @ (W_fc1 @ W_ih0) + (b_fc1 @ W_ih0 + b0)
    # Removes one pallas_call and the (B*T, E) HBM intermediate.  (Tiny plain-
    # JAX matmuls; done in f32 then cast to the MXU weight dtype.)
    lyr0 = params["lstm"][0]
    w_fc1 = params["fc1_w_t"].astype(jnp.float32)
    w_ih0 = lyr0["w_ih_t"].astype(jnp.float32)
    w_ih0_eff = (w_fc1 @ w_ih0).astype(params["fc1_w_t"].dtype)      # (3E, 4H)
    b0_eff = params["fc1_b"] @ w_ih0 + lyr0["b"]                     # (1, 4H) f32

    # LSTM stack; x stays time-major bf16 between layers.
    # TODO(synk): nn.LSTM inter-layer dropout omitted (inference semantics).
    x = emb
    hs, cs = [], []
    for li, lyr in enumerate(params["lstm"]):
        w_ih_t = w_ih0_eff if li == 0 else lyr["w_ih_t"]
        bias = b0_eff if li == 0 else lyr["b"]
        x, h_n, c_n = lstm_layer(x, w_ih_t, lyr["w_hh_t"], bias)
        hs.append(h_n)
        cs.append(c_n)

    # dropout(lstm_out) == identity at inference.
    # The reference applies fc_2 + softmax(dim=1) row-wise over (B*T, n_output)
    # and then keeps only [:, -1] after the (B, T, n_output) reshape, so
    # computing it on the last timestep only (== h_n of the last layer, kept in
    # f32) is exactly equivalent and 1/T the work.
    softmax_last = linear_softmax(hs[-1], params["fc2_w_t"], params["fc2_b"])

    h = (jnp.stack(hs, axis=0), jnp.stack(cs, axis=0))      # each (n_layers, B, H)
    return softmax_last, h


# ---------------------------------------------------------------------------
# Main
# ---------------------------------------------------------------------------
if __name__ == "__main__":
    n_vocab, embed_dim, n_hidden, n_output = 50, 16, 32, 8
    n_layers, batch_size, num_paths = 2, 2, 8

    key = jax.random.PRNGKey(0)
    k_params, k_inp = jax.random.split(key)

    params = init_params(k_params, n_vocab, embed_dim, n_hidden, n_output, n_layers)
    input_words = jax.random.randint(
        k_inp, (batch_size, num_paths, 3), 0, n_vocab, dtype=jnp.int32
    )

    fwd = jax.jit(ast2class_forward)
    softmax_last, (h_n, c_n) = jax.block_until_ready(fwd(params, input_words))

    assert softmax_last.shape == (batch_size, n_output)
    assert h_n.shape == (n_layers, batch_size, n_hidden)
    assert c_n.shape == (n_layers, batch_size, n_hidden)
    # softmax rows must sum to ~1 (approx reciprocal on the EUP -> loose tol)
    assert bool(jnp.allclose(jnp.sum(softmax_last, axis=-1), 1.0, atol=5e-3))
    assert bool(jnp.all(jnp.isfinite(softmax_last)))
    assert bool(jnp.all(jnp.isfinite(h_n))) and bool(jnp.all(jnp.isfinite(c_n)))

    print("KERNEL_OK")
</pallas_src>

<mosaic_0001>
module attributes {stable_mosaic.version = 11 : i64} {
  func.func @_lstm_fused_kernel(%arg0: i32, %arg1: i32, %arg2: memref<8x2x48xbf16, #tpu.memory_space<vmem>>, %arg3: memref<48x128xbf16, #tpu.memory_space<vmem>>, %arg4: memref<32x128xbf16, #tpu.memory_space<vmem>>, %arg5: memref<1x128xf32, #tpu.memory_space<vmem>>, %arg6: memref<8x2x32xbf16, #tpu.memory_space<vmem>>, %arg7: memref<2x32xf32, #tpu.memory_space<vmem>>, %arg8: memref<2x32xf32, #tpu.memory_space<vmem>>, %arg9: memref<8x2x128xf32, #tpu.memory_space<vmem>>) attributes {dimension_semantics = [#tpu.dimension_semantics<parallel>, #tpu.dimension_semantics<arbitrary>], iteration_bounds = array<i64: 1, 1>, scalar_prefetch = 0 : i64, scratch_operands = 1 : i64, tpu.core_type = #tpu.core_type<tc>, window_params = [{transform_indices = @transform_0, window_bounds = array<i64: 8, 2, 48>}, {pipeline_mode = #tpu.pipeline_mode<synchronous>, transform_indices = @transform_1, window_bounds = array<i64: 48, 128>}, {pipeline_mode = #tpu.pipeline_mode<synchronous>, transform_indices = @transform_2, window_bounds = array<i64: 32, 128>}, {pipeline_mode = #tpu.pipeline_mode<synchronous>, transform_indices = @transform_3, window_bounds = array<i64: 1, 128>}, {transform_indices = @transform_4, window_bounds = array<i64: 8, 2, 32>}, {transform_indices = @transform_5, window_bounds = array<i64: 2, 32>}, {transform_indices = @transform_6, window_bounds = array<i64: 2, 32>}]} {
    %c0_i32 = arith.constant 0 : i32
    %0 = arith.cmpi eq, %arg1, %c0_i32 : i32
    %1 = arith.extui %0 : i1 to i32
    %c0_i32_0 = arith.constant 0 : i32
    %2 = arith.cmpi ne, %1, %c0_i32_0 : i32
    scf.if %2 {
      %cst_85 = arith.constant 0.000000e+00 : f32
      %297 = vector.broadcast %cst_85 : f32 to vector<2x32xf32>
      %c0_86 = arith.constant 0 : index
      %c0_87 = arith.constant 0 : index
      %298 = vector.load %arg7[%c0_86, %c0_87] : memref<2x32xf32, #tpu.memory_space<vmem>>, vector<2x32xf32>
      tpu.vector_store %arg7[%c0_86, %c0_87], %297 {strides = array<i32>} : memref<2x32xf32, #tpu.memory_space<vmem>>, vector<2x32xf32>,
      %cst_88 = arith.constant 0.000000e+00 : f32
      %299 = vector.broadcast %cst_88 : f32 to vector<2x32xf32>
      %c0_89 = arith.constant 0 : index
      %c0_90 = arith.constant 0 : index
      %300 = vector.load %arg8[%c0_89, %c0_90] : memref<2x32xf32, #tpu.memory_space<vmem>>, vector<2x32xf32>
      tpu.vector_store %arg8[%c0_89, %c0_90], %299 {strides = array<i32>} : memref<2x32xf32, #tpu.memory_space<vmem>>, vector<2x32xf32>,
    } else {
    }
    %c0 = arith.constant 0 : index
    %c0_1 = arith.constant 0 : index
    %c0_2 = arith.constant 0 : index
    %3 = vector.load %arg2[%c0, %c0_1, %c0_2] : memref<8x2x48xbf16, #tpu.memory_space<vmem>>, vector<8x2x48xbf16>
    %4 = vector.shape_cast %3 : vector<8x2x48xbf16> to vector<16x48xbf16>
    %c0_3 = arith.constant 0 : index
    %c0_4 = arith.constant 0 : index
    %5 = vector.load %arg3[%c0_3, %c0_4] : memref<48x128xbf16, #tpu.memory_space<vmem>>, vector<48x128xbf16>
    %cst = arith.constant dense<0.000000e+00> : vector<16x128xf32>
    %6 = tpu.matmul %4, %5, %cst {dimension_numbers = #tpu.dot_dimension_numbers<[1], [0], [0], [1], [0, 0, 1, 1], [], []>} : vector<16x48xbf16>, vector<48x128xbf16>, vector<16x128xf32> -> vector<16x128xf32>
    %c0_5 = arith.constant 0 : index
    %c0_6 = arith.constant 0 : index
    %7 = vector.load %arg5[%c0_5, %c0_6] : memref<1x128xf32, #tpu.memory_space<vmem>>, vector<1x128xf32>
    %8 = vector.broadcast %7 : vector<1x128xf32> to vector<16x128xf32>
    %9 = arith.addf %6, %8 : vector<16x128xf32>
    %10 = vector.shape_cast %9 : vector<16x128xf32> to vector<8x2x128xf32>
    %c0_7 = arith.constant 0 : index
    %c0_8 = arith.constant 0 : index
    %c0_9 = arith.constant 0 : index
    %11 = vector.load %arg9[%c0_7, %c0_8, %c0_9] : memref<8x2x128xf32, #tpu.memory_space<vmem>>, vector<8x2x128xf32>
    tpu.vector_store %arg9[%c0_7, %c0_8, %c0_9], %10 {strides = array<i32>} : memref<8x2x128xf32, #tpu.memory_space<vmem>>, vector<8x2x128xf32>,
    %c0_10 = arith.constant 0 : index
    %c0_11 = arith.constant 0 : index
    %12 = vector.load %arg4[%c0_10, %c0_11] : memref<32x128xbf16, #tpu.memory_space<vmem>>, vector<32x128xbf16>
    %c0_12 = arith.constant 0 : index
    %c0_13 = arith.constant 0 : index
    %13 = vector.load %arg7[%c0_12, %c0_13] : memref<2x32xf32, #tpu.memory_space<vmem>>, vector<2x32xf32>
    %c0_14 = arith.constant 0 : index
    %c0_15 = arith.constant 0 : index
    %14 = vector.load %arg8[%c0_14, %c0_15] : memref<2x32xf32, #tpu.memory_space<vmem>>, vector<2x32xf32>
    %c0_i32_16 = arith.constant 0 : i32
    %15 = arith.index_cast %c0_i32_16 : i32 to index
    %c0_17 = arith.constant 0 : index
    %c0_18 = arith.constant 0 : index
    %16 = vector.load %arg9[%15, %c0_17, %c0_18] : memref<8x2x128xf32, #tpu.memory_space<vmem>>, vector<1x2x128xf32>
    %17 = vector.shape_cast %16 : vector<1x2x128xf32> to vector<2x128xf32>
    %18 = arith.truncf %13 : vector<2x32xf32> to vector<2x32xbf16>
    %cst_19 = arith.constant dense<0.000000e+00> : vector<2x128xf32>
    %19 = tpu.matmul %18, %12, %cst_19 {dimension_numbers = #tpu.dot_dimension_numbers<[1], [0], [0], [1], [0, 0, 1, 1], [], []>} : vector<2x32xbf16>, vector<32x128xbf16>, vector<2x128xf32> -> vector<2x128xf32>
    %20 = arith.addf %17, %19 : vector<2x128xf32>
    %21 = vector.extract_strided_slice %20 {offsets = [0, 0], sizes = [2, 32], strides = [1, 1]} : vector<2x128xf32> to vector<2x32xf32>
    %22 = arith.negf %21 : vector<2x32xf32>
    %23 = math.exp %22 : vector<2x32xf32>
    %cst_20 = arith.constant 1.000000e+00 : f32
    %24 = vector.broadcast %cst_20 : f32 to vector<2x32xf32>
    %25 = arith.addf %24, %23 : vector<2x32xf32>
    %26 = arith.divf %24, %25 : vector<2x32xf32>
    %27 = vector.extract_strided_slice %20 {offsets = [0, 32], sizes = [2, 32], strides = [1, 1]} : vector<2x128xf32> to vector<2x32xf32>
    %28 = arith.negf %27 : vector<2x32xf32>
    %29 = math.exp %28 : vector<2x32xf32>
    %cst_21 = arith.constant 1.000000e+00 : f32
    %30 = vector.broadcast %cst_21 : f32 to vector<2x32xf32>
    %31 = arith.addf %30, %29 : vector<2x32xf32>
    %32 = arith.divf %30, %31 : vector<2x32xf32>
    %33 = vector.extract_strided_slice %20 {offsets = [0, 64], sizes = [2, 32], strides = [1, 1]} : vector<2x128xf32> to vector<2x32xf32>
    %34 = math.tanh %33 : vector<2x32xf32>
    %35 = vector.extract_strided_slice %20 {offsets = [0, 96], sizes = [2, 32], strides = [1, 1]} : vector<2x128xf32> to vector<2x32xf32>
    %36 = arith.negf %35 : vector<2x32xf32>
    %37 = math.exp %36 : vector<2x32xf32>
    %cst_22 = arith.constant 1.000000e+00 : f32
    %38 = vector.broadcast %cst_22 : f32 to vector<2x32xf32>
    %39 = arith.addf %38, %37 : vector<2x32xf32>
    %40 = arith.divf %38, %39 : vector<2x32xf32>
    %41 = arith.mulf %32, %14 : vector<2x32xf32>
    %42 = arith.mulf %26, %34 : vector<2x32xf32>
    %43 = arith.addf %41, %42 : vector<2x32xf32>
    %44 = math.tanh %43 : vector<2x32xf32>
    %45 = arith.mulf %40, %44 : vector<2x32xf32>
    %46 = vector.shape_cast %45 : vector<2x32xf32> to vector<1x2x32xf32>
    %47 = arith.truncf %46 : vector<1x2x32xf32> to vector<1x2x32xbf16>
    %48 = arith.index_cast %c0_i32_16 : i32 to index
    %c0_23 = arith.constant 0 : index
    %c0_24 = arith.constant 0 : index
    %49 = vector.load %arg6[%48, %c0_23, %c0_24] : memref<8x2x32xbf16, #tpu.memory_space<vmem>>, vector<1x2x32xbf16>
    tpu.vector_store %arg6[%48, %c0_23, %c0_24], %47 {strides = array<i32>} : memref<8x2x32xbf16, #tpu.memory_space<vmem>>, vector<1x2x32xbf16>,
    %c1_i32 = arith.constant 1 : i32
    %50 = arith.index_cast %c1_i32 : i32 to index
    %c0_25 = arith.constant 0 : index
    %c0_26 = arith.constant 0 : index
    %51 = vector.load %arg9[%50, %c0_25, %c0_26] : memref<8x2x128xf32, #tpu.memory_space<vmem>>, vector<1x2x128xf32>
    %52 = vector.shape_cast %51 : vector<1x2x128xf32> to vector<2x128xf32>
    %53 = arith.truncf %45 : vector<2x32xf32> to vector<2x32xbf16>
    %cst_27 = arith.constant dense<0.000000e+00> : vector<2x128xf32>
    %54 = tpu.matmul %53, %12, %cst_27 {dimension_numbers = #tpu.dot_dimension_numbers<[1], [0], [0], [1], [0, 0, 1, 1], [], []>} : vector<2x32xbf16>, vector<32x128xbf16>, vector<2x128xf32> -> vector<2x128xf32>
    %55 = arith.addf %52, %54 : vector<2x128xf32>
    %56 = vector.extract_strided_slice %55 {offsets = [0, 0], sizes = [2, 32], strides = [1, 1]} : vector<2x128xf32> to vector<2x32xf32>
    %57 = arith.negf %56 : vector<2x32xf32>
    %58 = math.exp %57 : vector<2x32xf32>
    %cst_28 = arith.constant 1.000000e+00 : f32
    %59 = vector.broadcast %cst_28 : f32 to vector<2x32xf32>
    %60 = arith.addf %59, %58 : vector<2x32xf32>
    %61 = arith.divf %59, %60 : vector<2x32xf32>
    %62 = vector.extract_strided_slice %55 {offsets = [0, 32], sizes = [2, 32], strides = [1, 1]} : vector<2x128xf32> to vector<2x32xf32>
    %63 = arith.negf %62 : vector<2x32xf32>
    %64 = math.exp %63 : vector<2x32xf32>
    %cst_29 = arith.constant 1.000000e+00 : f32
    %65 = vector.broadcast %cst_29 : f32 to vector<2x32xf32>
    %66 = arith.addf %65, %64 : vector<2x32xf32>
    %67 = arith.divf %65, %66 : vector<2x32xf32>
    %68 = vector.extract_strided_slice %55 {offsets = [0, 64], sizes = [2, 32], strides = [1, 1]} : vector<2x128xf32> to vector<2x32xf32>
    %69 = math.tanh %68 : vector<2x32xf32>
    %70 = vector.extract_strided_slice %55 {offsets = [0, 96], sizes = [2, 32], strides = [1, 1]} : vector<2x128xf32> to vector<2x32xf32>
    %71 = arith.negf %70 : vector<2x32xf32>
    %72 = math.exp %71 : vector<2x32xf32>
    %cst_30 = arith.constant 1.000000e+00 : f32
    %73 = vector.broadcast %cst_30 : f32 to vector<2x32xf32>
    %74 = arith.addf %73, %72 : vector<2x32xf32>
    %75 = arith.divf %73, %74 : vector<2x32xf32>
    %76 = arith.mulf %67, %43 : vector<2x32xf32>
    %77 = arith.mulf %61, %69 : vector<2x32xf32>
    %78 = arith.addf %76, %77 : vector<2x32xf32>
    %79 = math.tanh %78 : vector<2x32xf32>
    %80 = arith.mulf %75, %79 : vector<2x32xf32>
    %81 = vector.shape_cast %80 : vector<2x32xf32> to vector<1x2x32xf32>
    %82 = arith.truncf %81 : vector<1x2x32xf32> to vector<1x2x32xbf16>
    %83 = arith.index_cast %c1_i32 : i32 to index
    %c0_31 = arith.constant 0 : index
    %c0_32 = arith.constant 0 : index
    %84 = vector.load %arg6[%83, %c0_31, %c0_32] : memref<8x2x32xbf16, #tpu.memory_space<vmem>>, vector<1x2x32xbf16>
    tpu.vector_store %arg6[%83, %c0_31, %c0_32], %82 {strides = array<i32>} : memref<8x2x32xbf16, #tpu.memory_space<vmem>>, vector<1x2x32xbf16>,
    %c2_i32 = arith.constant 2 : i32
    %85 = arith.index_cast %c2_i32 : i32 to index
    %c0_33 = arith.constant 0 : index
    %c0_34 = arith.constant 0 : index
    %86 = vector.load %arg9[%85, %c0_33, %c0_34] : memref<8x2x128xf32, #tpu.memory_space<vmem>>, vector<1x2x128xf32>
    %87 = vector.shape_cast %86 : vector<1x2x128xf32> to vector<2x128xf32>
    %88 = arith.truncf %80 : vector<2x32xf32> to vector<2x32xbf16>
    %cst_35 = arith.constant dense<0.000000e+00> : vector<2x128xf32>
    %89 = tpu.matmul %88, %12, %cst_35 {dimension_numbers = #tpu.dot_dimension_numbers<[1], [0], [0], [1], [0, 0, 1, 1], [], []>} : vector<2x32xbf16>, vector<32x128xbf16>, vector<2x128xf32> -> vector<2x128xf32>
    %90 = arith.addf %87, %89 : vector<2x128xf32>
    %91 = vector.extract_strided_slice %90 {offsets = [0, 0], sizes = [2, 32], strides = [1, 1]} : vector<2x128xf32> to vector<2x32xf32>
    %92 = arith.negf %91 : vector<2x32xf32>
    %93 = math.exp %92 : vector<2x32xf32>
    %cst_36 = arith.constant 1.000000e+00 : f32
    %94 = vector.broadcast %cst_36 : f32 to vector<2x32xf32>
    %95 = arith.addf %94, %93 : vector<2x32xf32>
    %96 = arith.divf %94, %95 : vector<2x32xf32>
    %97 = vector.extract_strided_slice %90 {offsets = [0, 32], sizes = [2, 32], strides = [1, 1]} : vector<2x128xf32> to vector<2x32xf32>
    %98 = arith.negf %97 : vector<2x32xf32>
    %99 = math.exp %98 : vector<2x32xf32>
    %cst_37 = arith.constant 1.000000e+00 : f32
    %100 = vector.broadcast %cst_37 : f32 to vector<2x32xf32>
    %101 = arith.addf %100, %99 : vector<2x32xf32>
    %102 = arith.divf %100, %101 : vector<2x32xf32>
    %103 = vector.extract_strided_slice %90 {offsets = [0, 64], sizes = [2, 32], strides = [1, 1]} : vector<2x128xf32> to vector<2x32xf32>
    %104 = math.tanh %103 : vector<2x32xf32>
    %105 = vector.extract_strided_slice %90 {offsets = [0, 96], sizes = [2, 32], strides = [1, 1]} : vector<2x128xf32> to vector<2x32xf32>
    %106 = arith.negf %105 : vector<2x32xf32>
    %107 = math.exp %106 : vector<2x32xf32>
    %cst_38 = arith.constant 1.000000e+00 : f32
    %108 = vector.broadcast %cst_38 : f32 to vector<2x32xf32>
    %109 = arith.addf %108, %107 : vector<2x32xf32>
    %110 = arith.divf %108, %109 : vector<2x32xf32>
    %111 = arith.mulf %102, %78 : vector<2x32xf32>
    %112 = arith.mulf %96, %104 : vector<2x32xf32>
    %113 = arith.addf %111, %112 : vector<2x32xf32>
    %114 = math.tanh %113 : vector<2x32xf32>
    %115 = arith.mulf %110, %114 : vector<2x32xf32>
    %116 = vector.shape_cast %115 : vector<2x32xf32> to vector<1x2x32xf32>
    %117 = arith.truncf %116 : vector<1x2x32xf32> to vector<1x2x32xbf16>
    %118 = arith.index_cast %c2_i32 : i32 to index
    %c0_39 = arith.constant 0 : index
    %c0_40 = arith.constant 0 : index
    %119 = vector.load %arg6[%118, %c0_39, %c0_40] : memref<8x2x32xbf16, #tpu.memory_space<vmem>>, vector<1x2x32xbf16>
    tpu.vector_store %arg6[%118, %c0_39, %c0_40], %117 {strides = array<i32>} : memref<8x2x32xbf16, #tpu.memory_space<vmem>>, vector<1x2x32xbf16>,
    %c3_i32 = arith.constant 3 : i32
    %120 = arith.index_cast %c3_i32 : i32 to index
    %c0_41 = arith.constant 0 : index
    %c0_42 = arith.constant 0 : index
    %121 = vector.load %arg9[%120, %c0_41, %c0_42] : memref<8x2x128xf32, #tpu.memory_space<vmem>>, vector<1x2x128xf32>
    %122 = vector.shape_cast %121 : vector<1x2x128xf32> to vector<2x128xf32>
    %123 = arith.truncf %115 : vector<2x32xf32> to vector<2x32xbf16>
    %cst_43 = arith.constant dense<0.000000e+00> : vector<2x128xf32>
    %124 = tpu.matmul %123, %12, %cst_43 {dimension_numbers = #tpu.dot_dimension_numbers<[1], [0], [0], [1], [0, 0, 1, 1], [], []>} : vector<2x32xbf16>, vector<32x128xbf16>, vector<2x128xf32> -> vector<2x128xf32>
    %125 = arith.addf %122, %124 : vector<2x128xf32>
    %126 = vector.extract_strided_slice %125 {offsets = [0, 0], sizes = [2, 32], strides = [1, 1]} : vector<2x128xf32> to vector<2x32xf32>
    %127 = arith.negf %126 : vector<2x32xf32>
    %128 = math.exp %127 : vector<2x32xf32>
    %cst_44 = arith.constant 1.000000e+00 : f32
    %129 = vector.broadcast %cst_44 : f32 to vector<2x32xf32>
    %130 = arith.addf %129, %128 : vector<2x32xf32>
    %131 = arith.divf %129, %130 : vector<2x32xf32>
    %132 = vector.extract_strided_slice %125 {offsets = [0, 32], sizes = [2, 32], strides = [1, 1]} : vector<2x128xf32> to vector<2x32xf32>
    %133 = arith.negf %132 : vector<2x32xf32>
    %134 = math.exp %133 : vector<2x32xf32>
    %cst_45 = arith.constant 1.000000e+00 : f32
    %135 = vector.broadcast %cst_45 : f32 to vector<2x32xf32>
    %136 = arith.addf %135, %134 : vector<2x32xf32>
    %137 = arith.divf %135, %136 : vector<2x32xf32>
    %138 = vector.extract_strided_slice %125 {offsets = [0, 64], sizes = [2, 32], strides = [1, 1]} : vector<2x128xf32> to vector<2x32xf32>
    %139 = math.tanh %138 : vector<2x32xf32>
    %140 = vector.extract_strided_slice %125 {offsets = [0, 96], sizes = [2, 32], strides = [1, 1]} : vector<2x128xf32> to vector<2x32xf32>
    %141 = arith.negf %140 : vector<2x32xf32>
    %142 = math.exp %141 : vector<2x32xf32>
    %cst_46 = arith.constant 1.000000e+00 : f32
    %143 = vector.broadcast %cst_46 : f32 to vector<2x32xf32>
    %144 = arith.addf %143, %142 : vector<2x32xf32>
    %145 = arith.divf %143, %144 : vector<2x32xf32>
    %146 = arith.mulf %137, %113 : vector<2x32xf32>
    %147 = arith.mulf %131, %139 : vector<2x32xf32>
    %148 = arith.addf %146, %147 : vector<2x32xf32>
    %149 = math.tanh %148 : vector<2x32xf32>
    %150 = arith.mulf %145, %149 : vector<2x32xf32>
    %151 = vector.shape_cast %150 : vector<2x32xf32> to vector<1x2x32xf32>
    %152 = arith.truncf %151 : vector<1x2x32xf32> to vector<1x2x32xbf16>
    %153 = arith.index_cast %c3_i32 : i32 to index
    %c0_47 = arith.constant 0 : index
    %c0_48 = arith.constant 0 : index
    %154 = vector.load %arg6[%153, %c0_47, %c0_48] : memref<8x2x32xbf16, #tpu.memory_space<vmem>>, vector<1x2x32xbf16>
    tpu.vector_store %arg6[%153, %c0_47, %c0_48], %152 {strides = array<i32>} : memref<8x2x32xbf16, #tpu.memory_space<vmem>>, vector<1x2x32xbf16>,
    %c4_i32 = arith.constant 4 : i32
    %155 = arith.index_cast %c4_i32 : i32 to index
    %c0_49 = arith.constant 0 : index
    %c0_50 = arith.constant 0 : index
    %156 = vector.load %arg9[%155, %c0_49, %c0_50] : memref<8x2x128xf32, #tpu.memory_space<vmem>>, vector<1x2x128xf32>
    %157 = vector.shape_cast %156 : vector<1x2x128xf32> to vector<2x128xf32>
    %158 = arith.truncf %150 : vector<2x32xf32> to vector<2x32xbf16>
    %cst_51 = arith.constant dense<0.000000e+00> : vector<2x128xf32>
    %159 = tpu.matmul %158, %12, %cst_51 {dimension_numbers = #tpu.dot_dimension_numbers<[1], [0], [0], [1], [0, 0, 1, 1], [], []>} : vector<2x32xbf16>, vector<32x128xbf16>, vector<2x128xf32> -> vector<2x128xf32>
    %160 = arith.addf %157, %159 : vector<2x128xf32>
    %161 = vector.extract_strided_slice %160 {offsets = [0, 0], sizes = [2, 32], strides = [1, 1]} : vector<2x128xf32> to vector<2x32xf32>
    %162 = arith.negf %161 : vector<2x32xf32>
    %163 = math.exp %162 : vector<2x32xf32>
    %cst_52 = arith.constant 1.000000e+00 : f32
    %164 = vector.broadcast %cst_52 : f32 to vector<2x32xf32>
    %165 = arith.addf %164, %163 : vector<2x32xf32>
    %166 = arith.divf %164, %165 : vector<2x32xf32>
    %167 = vector.extract_strided_slice %160 {offsets = [0, 32], sizes = [2, 32], strides = [1, 1]} : vector<2x128xf32> to vector<2x32xf32>
    %168 = arith.negf %167 : vector<2x32xf32>
    %169 = math.exp %168 : vector<2x32xf32>
    %cst_53 = arith.constant 1.000000e+00 : f32
    %170 = vector.broadcast %cst_53 : f32 to vector<2x32xf32>
    %171 = arith.addf %170, %169 : vector<2x32xf32>
    %172 = arith.divf %170, %171 : vector<2x32xf32>
    %173 = vector.extract_strided_slice %160 {offsets = [0, 64], sizes = [2, 32], strides = [1, 1]} : vector<2x128xf32> to vector<2x32xf32>
    %174 = math.tanh %173 : vector<2x32xf32>
    %175 = vector.extract_strided_slice %160 {offsets = [0, 96], sizes = [2, 32], strides = [1, 1]} : vector<2x128xf32> to vector<2x32xf32>
    %176 = arith.negf %175 : vector<2x32xf32>
    %177 = math.exp %176 : vector<2x32xf32>
    %cst_54 = arith.constant 1.000000e+00 : f32
    %178 = vector.broadcast %cst_54 : f32 to vector<2x32xf32>
    %179 = arith.addf %178, %177 : vector<2x32xf32>
    %180 = arith.divf %178, %179 : vector<2x32xf32>
    %181 = arith.mulf %172, %148 : vector<2x32xf32>
    %182 = arith.mulf %166, %174 : vector<2x32xf32>
    %183 = arith.addf %181, %182 : vector<2x32xf32>
    %184 = math.tanh %183 : vector<2x32xf32>
    %185 = arith.mulf %180, %184 : vector<2x32xf32>
    %186 = vector.shape_cast %185 : vector<2x32xf32> to vector<1x2x32xf32>
    %187 = arith.truncf %186 : vector<1x2x32xf32> to vector<1x2x32xbf16>
    %188 = arith.index_cast %c4_i32 : i32 to index
    %c0_55 = arith.constant 0 : index
    %c0_56 = arith.constant 0 : index
    %189 = vector.load %arg6[%188, %c0_55, %c0_56] : memref<8x2x32xbf16, #tpu.memory_space<vmem>>, vector<1x2x32xbf16>
    tpu.vector_store %arg6[%188, %c0_55, %c0_56], %187 {strides = array<i32>} : memref<8x2x32xbf16, #tpu.memory_space<vmem>>, vector<1x2x32xbf16>,
    %c5_i32 = arith.constant 5 : i32
    %190 = arith.index_cast %c5_i32 : i32 to index
    %c0_57 = arith.constant 0 : index
    %c0_58 = arith.constant 0 : index
    %191 = vector.load %arg9[%190, %c0_57, %c0_58] : memref<8x2x128xf32, #tpu.memory_space<vmem>>, vector<1x2x128xf32>
    %192 = vector.shape_cast %191 : vector<1x2x128xf32> to vector<2x128xf32>
    %193 = arith.truncf %185 : vector<2x32xf32> to vector<2x32xbf16>
    %cst_59 = arith.constant dense<0.000000e+00> : vector<2x128xf32>
    %194 = tpu.matmul %193, %12, %cst_59 {dimension_numbers = #tpu.dot_dimension_numbers<[1], [0], [0], [1], [0, 0, 1, 1], [], []>} : vector<2x32xbf16>, vector<32x128xbf16>, vector<2x128xf32> -> vector<2x128xf32>
    %195 = arith.addf %192, %194 : vector<2x128xf32>
    %196 = vector.extract_strided_slice %195 {offsets = [0, 0], sizes = [2, 32], strides = [1, 1]} : vector<2x128xf32> to vector<2x32xf32>
    %197 = arith.negf %196 : vector<2x32xf32>
    %198 = math.exp %197 : vector<2x32xf32>
    %cst_60 = arith.constant 1.000000e+00 : f32
    %199 = vector.broadcast %cst_60 : f32 to vector<2x32xf32>
    %200 = arith.addf %199, %198 : vector<2x32xf32>
    %201 = arith.divf %199, %200 : vector<2x32xf32>
    %202 = vector.extract_strided_slice %195 {offsets = [0, 32], sizes = [2, 32], strides = [1, 1]} : vector<2x128xf32> to vector<2x32xf32>
    %203 = arith.negf %202 : vector<2x32xf32>
    %204 = math.exp %203 : vector<2x32xf32>
    %cst_61 = arith.constant 1.000000e+00 : f32
    %205 = vector.broadcast %cst_61 : f32 to vector<2x32xf32>
    %206 = arith.addf %205, %204 : vector<2x32xf32>
    %207 = arith.divf %205, %206 : vector<2x32xf32>
    %208 = vector.extract_strided_slice %195 {offsets = [0, 64], sizes = [2, 32], strides = [1, 1]} : vector<2x128xf32> to vector<2x32xf32>
    %209 = math.tanh %208 : vector<2x32xf32>
    %210 = vector.extract_strided_slice %195 {offsets = [0, 96], sizes = [2, 32], strides = [1, 1]} : vector<2x128xf32> to vector<2x32xf32>
    %211 = arith.negf %210 : vector<2x32xf32>
    %212 = math.exp %211 : vector<2x32xf32>
    %cst_62 = arith.constant 1.000000e+00 : f32
    %213 = vector.broadcast %cst_62 : f32 to vector<2x32xf32>
    %214 = arith.addf %213, %212 : vector<2x32xf32>
    %215 = arith.divf %213, %214 : vector<2x32xf32>
    %216 = arith.mulf %207, %183 : vector<2x32xf32>
    %217 = arith.mulf %201, %209 : vector<2x32xf32>
    %218 = arith.addf %216, %217 : vector<2x32xf32>
    %219 = math.tanh %218 : vector<2x32xf32>
    %220 = arith.mulf %215, %219 : vector<2x32xf32>
    %221 = vector.shape_cast %220 : vector<2x32xf32> to vector<1x2x32xf32>
    %222 = arith.truncf %221 : vector<1x2x32xf32> to vector<1x2x32xbf16>
    %223 = arith.index_cast %c5_i32 : i32 to index
    %c0_63 = arith.constant 0 : index
    %c0_64 = arith.constant 0 : index
    %224 = vector.load %arg6[%223, %c0_63, %c0_64] : memref<8x2x32xbf16, #tpu.memory_space<vmem>>, vector<1x2x32xbf16>
    tpu.vector_store %arg6[%223, %c0_63, %c0_64], %222 {strides = array<i32>} : memref<8x2x32xbf16, #tpu.memory_space<vmem>>, vector<1x2x32xbf16>,
    %c6_i32 = arith.constant 6 : i32
    %225 = arith.index_cast %c6_i32 : i32 to index
    %c0_65 = arith.constant 0 : index
    %c0_66 = arith.constant 0 : index
    %226 = vector.load %arg9[%225, %c0_65, %c0_66] : memref<8x2x128xf32, #tpu.memory_space<vmem>>, vector<1x2x128xf32>
    %227 = vector.shape_cast %226 : vector<1x2x128xf32> to vector<2x128xf32>
    %228 = arith.truncf %220 : vector<2x32xf32> to vector<2x32xbf16>
    %cst_67 = arith.constant dense<0.000000e+00> : vector<2x128xf32>
    %229 = tpu.matmul %228, %12, %cst_67 {dimension_numbers = #tpu.dot_dimension_numbers<[1], [0], [0], [1], [0, 0, 1, 1], [], []>} : vector<2x32xbf16>, vector<32x128xbf16>, vector<2x128xf32> -> vector<2x128xf32>
    %230 = arith.addf %227, %229 : vector<2x128xf32>
    %231 = vector.extract_strided_slice %230 {offsets = [0, 0], sizes = [2, 32], strides = [1, 1]} : vector<2x128xf32> to vector<2x32xf32>
    %232 = arith.negf %231 : vector<2x32xf32>
    %233 = math.exp %232 : vector<2x32xf32>
    %cst_68 = arith.constant 1.000000e+00 : f32
    %234 = vector.broadcast %cst_68 : f32 to vector<2x32xf32>
    %235 = arith.addf %234, %233 : vector<2x32xf32>
    %236 = arith.divf %234, %235 : vector<2x32xf32>
    %237 = vector.extract_strided_slice %230 {offsets = [0, 32], sizes = [2, 32], strides = [1, 1]} : vector<2x128xf32> to vector<2x32xf32>
    %238 = arith.negf %237 : vector<2x32xf32>
    %239 = math.exp %238 : vector<2x32xf32>
    %cst_69 = arith.constant 1.000000e+00 : f32
    %240 = vector.broadcast %cst_69 : f32 to vector<2x32xf32>
    %241 = arith.addf %240, %239 : vector<2x32xf32>
    %242 = arith.divf %240, %241 : vector<2x32xf32>
    %243 = vector.extract_strided_slice %230 {offsets = [0, 64], sizes = [2, 32], strides = [1, 1]} : vector<2x128xf32> to vector<2x32xf32>
    %244 = math.tanh %243 : vector<2x32xf32>
    %245 = vector.extract_strided_slice %230 {offsets = [0, 96], sizes = [2, 32], strides = [1, 1]} : vector<2x128xf32> to vector<2x32xf32>
    %246 = arith.negf %245 : vector<2x32xf32>
    %247 = math.exp %246 : vector<2x32xf32>
    %cst_70 = arith.constant 1.000000e+00 : f32
    %248 = vector.broadcast %cst_70 : f32 to vector<2x32xf32>
    %249 = arith.addf %248, %247 : vector<2x32xf32>
    %250 = arith.divf %248, %249 : vector<2x32xf32>
    %251 = arith.mulf %242, %218 : vector<2x32xf32>
    %252 = arith.mulf %236, %244 : vector<2x32xf32>
    %253 = arith.addf %251, %252 : vector<2x32xf32>
    %254 = math.tanh %253 : vector<2x32xf32>
    %255 = arith.mulf %250, %254 : vector<2x32xf32>
    %256 = vector.shape_cast %255 : vector<2x32xf32> to vector<1x2x32xf32>
    %257 = arith.truncf %256 : vector<1x2x32xf32> to vector<1x2x32xbf16>
    %258 = arith.index_cast %c6_i32 : i32 to index
    %c0_71 = arith.constant 0 : index
    %c0_72 = arith.constant 0 : index
    %259 = vector.load %arg6[%258, %c0_71, %c0_72] : memref<8x2x32xbf16, #tpu.memory_space<vmem>>, vector<1x2x32xbf16>
    tpu.vector_store %arg6[%258, %c0_71, %c0_72], %257 {strides = array<i32>} : memref<8x2x32xbf16, #tpu.memory_space<vmem>>, vector<1x2x32xbf16>,
    %c7_i32 = arith.constant 7 : i32
    %260 = arith.index_cast %c7_i32 : i32 to index
    %c0_73 = arith.constant 0 : index
    %c0_74 = arith.constant 0 : index
    %261 = vector.load %arg9[%260, %c0_73, %c0_74] : memref<8x2x128xf32, #tpu.memory_space<vmem>>, vector<1x2x128xf32>
    %262 = vector.shape_cast %261 : vector<1x2x128xf32> to vector<2x128xf32>
    %263 = arith.truncf %255 : vector<2x32xf32> to vector<2x32xbf16>
    %cst_75 = arith.constant dense<0.000000e+00> : vector<2x128xf32>
    %264 = tpu.matmul %263, %12, %cst_75 {dimension_numbers = #tpu.dot_dimension_numbers<[1], [0], [0], [1], [0, 0, 1, 1], [], []>} : vector<2x32xbf16>, vector<32x128xbf16>, vector<2x128xf32> -> vector<2x128xf32>
    %265 = arith.addf %262, %264 : vector<2x128xf32>
    %266 = vector.extract_strided_slice %265 {offsets = [0, 0], sizes = [2, 32], strides = [1, 1]} : vector<2x128xf32> to vector<2x32xf32>
    %267 = arith.negf %266 : vector<2x32xf32>
    %268 = math.exp %267 : vector<2x32xf32>
    %cst_76 = arith.constant 1.000000e+00 : f32
    %269 = vector.broadcast %cst_76 : f32 to vector<2x32xf32>
    %270 = arith.addf %269, %268 : vector<2x32xf32>
    %271 = arith.divf %269, %270 : vector<2x32xf32>
    %272 = vector.extract_strided_slice %265 {offsets = [0, 32], sizes = [2, 32], strides = [1, 1]} : vector<2x128xf32> to vector<2x32xf32>
    %273 = arith.negf %272 : vector<2x32xf32>
    %274 = math.exp %273 : vector<2x32xf32>
    %cst_77 = arith.constant 1.000000e+00 : f32
    %275 = vector.broadcast %cst_77 : f32 to vector<2x32xf32>
    %276 = arith.addf %275, %274 : vector<2x32xf32>
    %277 = arith.divf %275, %276 : vector<2x32xf32>
    %278 = vector.extract_strided_slice %265 {offsets = [0, 64], sizes = [2, 32], strides = [1, 1]} : vector<2x128xf32> to vector<2x32xf32>
    %279 = math.tanh %278 : vector<2x32xf32>
    %280 = vector.extract_strided_slice %265 {offsets = [0, 96], sizes = [2, 32], strides = [1, 1]} : vector<2x128xf32> to vector<2x32xf32>
    %281 = arith.negf %280 : vector<2x32xf32>
    %282 = math.exp %281 : vector<2x32xf32>
    %cst_78 = arith.constant 1.000000e+00 : f32
    %283 = vector.broadcast %cst_78 : f32 to vector<2x32xf32>
    %284 = arith.addf %283, %282 : vector<2x32xf32>
    %285 = arith.divf %283, %284 : vector<2x32xf32>
    %286 = arith.mulf %277, %253 : vector<2x32xf32>
    %287 = arith.mulf %271, %279 : vector<2x32xf32>
    %288 = arith.addf %286, %287 : vector<2x32xf32>
    %289 = math.tanh %288 : vector<2x32xf32>
    %290 = arith.mulf %285, %289 : vector<2x32xf32>
    %291 = vector.shape_cast %290 : vector<2x32xf32> to vector<1x2x32xf32>
    %292 = arith.truncf %291 : vector<1x2x32xf32> to vector<1x2x32xbf16>
    %293 = arith.index_cast %c7_i32 : i32 to index
    %c0_79 = arith.constant 0 : index
    %c0_80 = arith.constant 0 : index
    %294 = vector.load %arg6[%293, %c0_79, %c0_80] : memref<8x2x32xbf16, #tpu.memory_space<vmem>>, vector<1x2x32xbf16>
    tpu.vector_store %arg6[%293, %c0_79, %c0_80], %292 {strides = array<i32>} : memref<8x2x32xbf16, #tpu.memory_space<vmem>>, vector<1x2x32xbf16>,
    %c8_i32 = arith.constant 8 : i32
    %c0_81 = arith.constant 0 : index
    %c0_82 = arith.constant 0 : index
    %295 = vector.load %arg7[%c0_81, %c0_82] : memref<2x32xf32, #tpu.memory_space<vmem>>, vector<2x32xf32>
    tpu.vector_store %arg7[%c0_81, %c0_82], %290 {strides = array<i32>} : memref<2x32xf32, #tpu.memory_space<vmem>>, vector<2x32xf32>,
    %c0_83 = arith.constant 0 : index
    %c0_84 = arith.constant 0 : index
    %296 = vector.load %arg8[%c0_83, %c0_84] : memref<2x32xf32, #tpu.memory_space<vmem>>, vector<2x32xf32>
    tpu.vector_store %arg8[%c0_83, %c0_84], %288 {strides = array<i32>} : memref<2x32xf32, #tpu.memory_space<vmem>>, vector<2x32xf32>,
    return
  }
  func.func @transform_0(%arg0: i32, %arg1: i32) -> (i32, i32, i32) {
    %c0_i32 = arith.constant 0 : i32
    %c0_i32_0 = arith.constant 0 : i32
    return %arg1, %arg0, %c0_i32 : i32, i32, i32
  }
  func.func @transform_1(%arg0: i32, %arg1: i32) -> (i32, i32) {
    %c0_i32 = arith.constant 0 : i32
    %c0_i32_0 = arith.constant 0 : i32
    %c0_i32_1 = arith.constant 0 : i32
    return %c0_i32, %c0_i32_0 : i32, i32
  }
  func.func @transform_2(%arg0: i32, %arg1: i32) -> (i32, i32) {
    %c0_i32 = arith.constant 0 : i32
    %c0_i32_0 = arith.constant 0 : i32
    %c0_i32_1 = arith.constant 0 : i32
    return %c0_i32, %c0_i32_0 : i32, i32
  }
  func.func @transform_3(%arg0: i32, %arg1: i32) -> (i32, i32) {
    %c0_i32 = arith.constant 0 : i32
    %c0_i32_0 = arith.constant 0 : i32
    %c0_i32_1 = arith.constant 0 : i32
    return %c0_i32, %c0_i32_0 : i32, i32
  }
  func.func @transform_4(%arg0: i32, %arg1: i32) -> (i32, i32, i32) {
    %c0_i32 = arith.constant 0 : i32
    %c0_i32_0 = arith.constant 0 : i32
    return %arg1, %arg0, %c0_i32 : i32, i32, i32
  }
  func.func @transform_5(%arg0: i32, %arg1: i32) -> (i32, i32) {
    %c0_i32 = arith.constant 0 : i32
    %c0_i32_0 = arith.constant 0 : i32
    return %arg0, %c0_i32 : i32, i32
  }
  func.func @transform_6(%arg0: i32, %arg1: i32) -> (i32, i32) {
    %c0_i32 = arith.constant 0 : i32
    %c0_i32_0 = arith.constant 0 : i32
    return %arg0, %c0_i32 : i32, i32
  }
}

module attributes {stable_mosaic.version = 11 : i64} {
  func.func @_lstm_fused_kernel(%arg0: i32, %arg1: i32, %arg2: memref<8x2x32xbf16, #tpu.memory_space<vmem>>, %arg3: memref<32x128xbf16, #tpu.memory_space<vmem>>, %arg4: memref<32x128xbf16, #tpu.memory_space<vmem>>, %arg5: memref<1x128xf32, #tpu.memory_space<vmem>>, %arg6: memref<8x2x32xbf16, #tpu.memory_space<vmem>>, %arg7: memref<2x32xf32, #tpu.memory_space<vmem>>, %arg8: memref<2x32xf32, #tpu.memory_space<vmem>>, %arg9: memref<8x2x128xf32, #tpu.memory_space<vmem>>) attributes {dimension_semantics = [#tpu.dimension_semantics<parallel>, #tpu.dimension_semantics<arbitrary>], iteration_bounds = array<i64: 1, 1>, scalar_prefetch = 0 : i64, scratch_operands = 1 : i64, tpu.core_type = #tpu.core_type<tc>, window_params = [{transform_indices = @transform_0, window_bounds = array<i64: 8, 2, 32>}, {pipeline_mode = #tpu.pipeline_mode<synchronous>, transform_indices = @transform_1, window_bounds = array<i64: 32, 128>}, {pipeline_mode = #tpu.pipeline_mode<synchronous>, transform_indices = @transform_2, window_bounds = array<i64: 32, 128>}, {pipeline_mode = #tpu.pipeline_mode<synchronous>, transform_indices = @transform_3, window_bounds = array<i64: 1, 128>}, {transform_indices = @transform_4, window_bounds = array<i64: 8, 2, 32>}, {transform_indices = @transform_5, window_bounds = array<i64: 2, 32>}, {transform_indices = @transform_6, window_bounds = array<i64: 2, 32>}]} {
    %c0_i32 = arith.constant 0 : i32
    %0 = arith.cmpi eq, %arg1, %c0_i32 : i32
    %1 = arith.extui %0 : i1 to i32
    %c0_i32_0 = arith.constant 0 : i32
    %2 = arith.cmpi ne, %1, %c0_i32_0 : i32
    scf.if %2 {
      %cst_85 = arith.constant 0.000000e+00 : f32
      %297 = vector.broadcast %cst_85 : f32 to vector<2x32xf32>
      %c0_86 = arith.constant 0 : index
      %c0_87 = arith.constant 0 : index
      %298 = vector.load %arg7[%c0_86, %c0_87] : memref<2x32xf32, #tpu.memory_space<vmem>>, vector<2x32xf32>
      tpu.vector_store %arg7[%c0_86, %c0_87], %297 {strides = array<i32>} : memref<2x32xf32, #tpu.memory_space<vmem>>, vector<2x32xf32>,
      %cst_88 = arith.constant 0.000000e+00 : f32
      %299 = vector.broadcast %cst_88 : f32 to vector<2x32xf32>
      %c0_89 = arith.constant 0 : index
      %c0_90 = arith.constant 0 : index
      %300 = vector.load %arg8[%c0_89, %c0_90] : memref<2x32xf32, #tpu.memory_space<vmem>>, vector<2x32xf32>
      tpu.vector_store %arg8[%c0_89, %c0_90], %299 {strides = array<i32>} : memref<2x32xf32, #tpu.memory_space<vmem>>, vector<2x32xf32>,
    } else {
    }
    %c0 = arith.constant 0 : index
    %c0_1 = arith.constant 0 : index
    %c0_2 = arith.constant 0 : index
    %3 = vector.load %arg2[%c0, %c0_1, %c0_2] : memref<8x2x32xbf16, #tpu.memory_space<vmem>>, vector<8x2x32xbf16>
    %4 = vector.shape_cast %3 : vector<8x2x32xbf16> to vector<16x32xbf16>
    %c0_3 = arith.constant 0 : index
    %c0_4 = arith.constant 0 : index
    %5 = vector.load %arg3[%c0_3, %c0_4] : memref<32x128xbf16, #tpu.memory_space<vmem>>, vector<32x128xbf16>
    %cst = arith.constant dense<0.000000e+00> : vector<16x128xf32>
    %6 = tpu.matmul %4, %5, %cst {dimension_numbers = #tpu.dot_dimension_numbers<[1], [0], [0], [1], [0, 0, 1, 1], [], []>} : vector<16x32xbf16>, vector<32x128xbf16>, vector<16x128xf32> -> vector<16x128xf32>
    %c0_5 = arith.constant 0 : index
    %c0_6 = arith.constant 0 : index
    %7 = vector.load %arg5[%c0_5, %c0_6] : memref<1x128xf32, #tpu.memory_space<vmem>>, vector<1x128xf32>
    %8 = vector.broadcast %7 : vector<1x128xf32> to vector<16x128xf32>
    %9 = arith.addf %6, %8 : vector<16x128xf32>
    %10 = vector.shape_cast %9 : vector<16x128xf32> to vector<8x2x128xf32>
    %c0_7 = arith.constant 0 : index
    %c0_8 = arith.constant 0 : index
    %c0_9 = arith.constant 0 : index
    %11 = vector.load %arg9[%c0_7, %c0_8, %c0_9] : memref<8x2x128xf32, #tpu.memory_space<vmem>>, vector<8x2x128xf32>
    tpu.vector_store %arg9[%c0_7, %c0_8, %c0_9], %10 {strides = array<i32>} : memref<8x2x128xf32, #tpu.memory_space<vmem>>, vector<8x2x128xf32>,
    %c0_10 = arith.constant 0 : index
    %c0_11 = arith.constant 0 : index
    %12 = vector.load %arg4[%c0_10, %c0_11] : memref<32x128xbf16, #tpu.memory_space<vmem>>, vector<32x128xbf16>
    %c0_12 = arith.constant 0 : index
    %c0_13 = arith.constant 0 : index
    %13 = vector.load %arg7[%c0_12, %c0_13] : memref<2x32xf32, #tpu.memory_space<vmem>>, vector<2x32xf32>
    %c0_14 = arith.constant 0 : index
    %c0_15 = arith.constant 0 : index
    %14 = vector.load %arg8[%c0_14, %c0_15] : memref<2x32xf32, #tpu.memory_space<vmem>>, vector<2x32xf32>
    %c0_i32_16 = arith.constant 0 : i32
    %15 = arith.index_cast %c0_i32_16 : i32 to index
    %c0_17 = arith.constant 0 : index
    %c0_18 = arith.constant 0 : index
    %16 = vector.load %arg9[%15, %c0_17, %c0_18] : memref<8x2x128xf32, #tpu.memory_space<vmem>>, vector<1x2x128xf32>
    %17 = vector.shape_cast %16 : vector<1x2x128xf32> to vector<2x128xf32>
    %18 = arith.truncf %13 : vector<2x32xf32> to vector<2x32xbf16>
    %cst_19 = arith.constant dense<0.000000e+00> : vector<2x128xf32>
    %19 = tpu.matmul %18, %12, %cst_19 {dimension_numbers = #tpu.dot_dimension_numbers<[1], [0], [0], [1], [0, 0, 1, 1], [], []>} : vector<2x32xbf16>, vector<32x128xbf16>, vector<2x128xf32> -> vector<2x128xf32>
    %20 = arith.addf %17, %19 : vector<2x128xf32>
    %21 = vector.extract_strided_slice %20 {offsets = [0, 0], sizes = [2, 32], strides = [1, 1]} : vector<2x128xf32> to vector<2x32xf32>
    %22 = arith.negf %21 : vector<2x32xf32>
    %23 = math.exp %22 : vector<2x32xf32>
    %cst_20 = arith.constant 1.000000e+00 : f32
    %24 = vector.broadcast %cst_20 : f32 to vector<2x32xf32>
    %25 = arith.addf %24, %23 : vector<2x32xf32>
    %26 = arith.divf %24, %25 : vector<2x32xf32>
    %27 = vector.extract_strided_slice %20 {offsets = [0, 32], sizes = [2, 32], strides = [1, 1]} : vector<2x128xf32> to vector<2x32xf32>
    %28 = arith.negf %27 : vector<2x32xf32>
    %29 = math.exp %28 : vector<2x32xf32>
    %cst_21 = arith.constant 1.000000e+00 : f32
    %30 = vector.broadcast %cst_21 : f32 to vector<2x32xf32>
    %31 = arith.addf %30, %29 : vector<2x32xf32>
    %32 = arith.divf %30, %31 : vector<2x32xf32>
    %33 = vector.extract_strided_slice %20 {offsets = [0, 64], sizes = [2, 32], strides = [1, 1]} : vector<2x128xf32> to vector<2x32xf32>
    %34 = math.tanh %33 : vector<2x32xf32>
    %35 = vector.extract_strided_slice %20 {offsets = [0, 96], sizes = [2, 32], strides = [1, 1]} : vector<2x128xf32> to vector<2x32xf32>
    %36 = arith.negf %35 : vector<2x32xf32>
    %37 = math.exp %36 : vector<2x32xf32>
    %cst_22 = arith.constant 1.000000e+00 : f32
    %38 = vector.broadcast %cst_22 : f32 to vector<2x32xf32>
    %39 = arith.addf %38, %37 : vector<2x32xf32>
    %40 = arith.divf %38, %39 : vector<2x32xf32>
    %41 = arith.mulf %32, %14 : vector<2x32xf32>
    %42 = arith.mulf %26, %34 : vector<2x32xf32>
    %43 = arith.addf %41, %42 : vector<2x32xf32>
    %44 = math.tanh %43 : vector<2x32xf32>
    %45 = arith.mulf %40, %44 : vector<2x32xf32>
    %46 = vector.shape_cast %45 : vector<2x32xf32> to vector<1x2x32xf32>
    %47 = arith.truncf %46 : vector<1x2x32xf32> to vector<1x2x32xbf16>
    %48 = arith.index_cast %c0_i32_16 : i32 to index
    %c0_23 = arith.constant 0 : index
    %c0_24 = arith.constant 0 : index
    %49 = vector.load %arg6[%48, %c0_23, %c0_24] : memref<8x2x32xbf16, #tpu.memory_space<vmem>>, vector<1x2x32xbf16>
    tpu.vector_store %arg6[%48, %c0_23, %c0_24], %47 {strides = array<i32>} : memref<8x2x32xbf16, #tpu.memory_space<vmem>>, vector<1x2x32xbf16>,
    %c1_i32 = arith.constant 1 : i32
    %50 = arith.index_cast %c1_i32 : i32 to index
    %c0_25 = arith.constant 0 : index
    %c0_26 = arith.constant 0 : index
    %51 = vector.load %arg9[%50, %c0_25, %c0_26] : memref<8x2x128xf32, #tpu.memory_space<vmem>>, vector<1x2x128xf32>
    %52 = vector.shape_cast %51 : vector<1x2x128xf32> to vector<2x128xf32>
    %53 = arith.truncf %45 : vector<2x32xf32> to vector<2x32xbf16>
    %cst_27 = arith.constant dense<0.000000e+00> : vector<2x128xf32>
    %54 = tpu.matmul %53, %12, %cst_27 {dimension_numbers = #tpu.dot_dimension_numbers<[1], [0], [0], [1], [0, 0, 1, 1], [], []>} : vector<2x32xbf16>, vector<32x128xbf16>, vector<2x128xf32> -> vector<2x128xf32>
    %55 = arith.addf %52, %54 : vector<2x128xf32>
    %56 = vector.extract_strided_slice %55 {offsets = [0, 0], sizes = [2, 32], strides = [1, 1]} : vector<2x128xf32> to vector<2x32xf32>
    %57 = arith.negf %56 : vector<2x32xf32>
    %58 = math.exp %57 : vector<2x32xf32>
    %cst_28 = arith.constant 1.000000e+00 : f32
    %59 = vector.broadcast %cst_28 : f32 to vector<2x32xf32>
    %60 = arith.addf %59, %58 : vector<2x32xf32>
    %61 = arith.divf %59, %60 : vector<2x32xf32>
    %62 = vector.extract_strided_slice %55 {offsets = [0, 32], sizes = [2, 32], strides = [1, 1]} : vector<2x128xf32> to vector<2x32xf32>
    %63 = arith.negf %62 : vector<2x32xf32>
    %64 = math.exp %63 : vector<2x32xf32>
    %cst_29 = arith.constant 1.000000e+00 : f32
    %65 = vector.broadcast %cst_29 : f32 to vector<2x32xf32>
    %66 = arith.addf %65, %64 : vector<2x32xf32>
    %67 = arith.divf %65, %66 : vector<2x32xf32>
    %68 = vector.extract_strided_slice %55 {offsets = [0, 64], sizes = [2, 32], strides = [1, 1]} : vector<2x128xf32> to vector<2x32xf32>
    %69 = math.tanh %68 : vector<2x32xf32>
    %70 = vector.extract_strided_slice %55 {offsets = [0, 96], sizes = [2, 32], strides = [1, 1]} : vector<2x128xf32> to vector<2x32xf32>
    %71 = arith.negf %70 : vector<2x32xf32>
    %72 = math.exp %71 : vector<2x32xf32>
    %cst_30 = arith.constant 1.000000e+00 : f32
    %73 = vector.broadcast %cst_30 : f32 to vector<2x32xf32>
    %74 = arith.addf %73, %72 : vector<2x32xf32>
    %75 = arith.divf %73, %74 : vector<2x32xf32>
    %76 = arith.mulf %67, %43 : vector<2x32xf32>
    %77 = arith.mulf %61, %69 : vector<2x32xf32>
    %78 = arith.addf %76, %77 : vector<2x32xf32>
    %79 = math.tanh %78 : vector<2x32xf32>
    %80 = arith.mulf %75, %79 : vector<2x32xf32>
    %81 = vector.shape_cast %80 : vector<2x32xf32> to vector<1x2x32xf32>
    %82 = arith.truncf %81 : vector<1x2x32xf32> to vector<1x2x32xbf16>
    %83 = arith.index_cast %c1_i32 : i32 to index
    %c0_31 = arith.constant 0 : index
    %c0_32 = arith.constant 0 : index
    %84 = vector.load %arg6[%83, %c0_31, %c0_32] : memref<8x2x32xbf16, #tpu.memory_space<vmem>>, vector<1x2x32xbf16>
    tpu.vector_store %arg6[%83, %c0_31, %c0_32], %82 {strides = array<i32>} : memref<8x2x32xbf16, #tpu.memory_space<vmem>>, vector<1x2x32xbf16>,
    %c2_i32 = arith.constant 2 : i32
    %85 = arith.index_cast %c2_i32 : i32 to index
    %c0_33 = arith.constant 0 : index
    %c0_34 = arith.constant 0 : index
    %86 = vector.load %arg9[%85, %c0_33, %c0_34] : memref<8x2x128xf32, #tpu.memory_space<vmem>>, vector<1x2x128xf32>
    %87 = vector.shape_cast %86 : vector<1x2x128xf32> to vector<2x128xf32>
    %88 = arith.truncf %80 : vector<2x32xf32> to vector<2x32xbf16>
    %cst_35 = arith.constant dense<0.000000e+00> : vector<2x128xf32>
    %89 = tpu.matmul %88, %12, %cst_35 {dimension_numbers = #tpu.dot_dimension_numbers<[1], [0], [0], [1], [0, 0, 1, 1], [], []>} : vector<2x32xbf16>, vector<32x128xbf16>, vector<2x128xf32> -> vector<2x128xf32>
    %90 = arith.addf %87, %89 : vector<2x128xf32>
    %91 = vector.extract_strided_slice %90 {offsets = [0, 0], sizes = [2, 32], strides = [1, 1]} : vector<2x128xf32> to vector<2x32xf32>
    %92 = arith.negf %91 : vector<2x32xf32>
    %93 = math.exp %92 : vector<2x32xf32>
    %cst_36 = arith.constant 1.000000e+00 : f32
    %94 = vector.broadcast %cst_36 : f32 to vector<2x32xf32>
    %95 = arith.addf %94, %93 : vector<2x32xf32>
    %96 = arith.divf %94, %95 : vector<2x32xf32>
    %97 = vector.extract_strided_slice %90 {offsets = [0, 32], sizes = [2, 32], strides = [1, 1]} : vector<2x128xf32> to vector<2x32xf32>
    %98 = arith.negf %97 : vector<2x32xf32>
    %99 = math.exp %98 : vector<2x32xf32>
    %cst_37 = arith.constant 1.000000e+00 : f32
    %100 = vector.broadcast %cst_37 : f32 to vector<2x32xf32>
    %101 = arith.addf %100, %99 : vector<2x32xf32>
    %102 = arith.divf %100, %101 : vector<2x32xf32>
    %103 = vector.extract_strided_slice %90 {offsets = [0, 64], sizes = [2, 32], strides = [1, 1]} : vector<2x128xf32> to vector<2x32xf32>
    %104 = math.tanh %103 : vector<2x32xf32>
    %105 = vector.extract_strided_slice %90 {offsets = [0, 96], sizes = [2, 32], strides = [1, 1]} : vector<2x128xf32> to vector<2x32xf32>
    %106 = arith.negf %105 : vector<2x32xf32>
    %107 = math.exp %106 : vector<2x32xf32>
    %cst_38 = arith.constant 1.000000e+00 : f32
    %108 = vector.broadcast %cst_38 : f32 to vector<2x32xf32>
    %109 = arith.addf %108, %107 : vector<2x32xf32>
    %110 = arith.divf %108, %109 : vector<2x32xf32>
    %111 = arith.mulf %102, %78 : vector<2x32xf32>
    %112 = arith.mulf %96, %104 : vector<2x32xf32>
    %113 = arith.addf %111, %112 : vector<2x32xf32>
    %114 = math.tanh %113 : vector<2x32xf32>
    %115 = arith.mulf %110, %114 : vector<2x32xf32>
    %116 = vector.shape_cast %115 : vector<2x32xf32> to vector<1x2x32xf32>
    %117 = arith.truncf %116 : vector<1x2x32xf32> to vector<1x2x32xbf16>
    %118 = arith.index_cast %c2_i32 : i32 to index
    %c0_39 = arith.constant 0 : index
    %c0_40 = arith.constant 0 : index
    %119 = vector.load %arg6[%118, %c0_39, %c0_40] : memref<8x2x32xbf16, #tpu.memory_space<vmem>>, vector<1x2x32xbf16>
    tpu.vector_store %arg6[%118, %c0_39, %c0_40], %117 {strides = array<i32>} : memref<8x2x32xbf16, #tpu.memory_space<vmem>>, vector<1x2x32xbf16>,
    %c3_i32 = arith.constant 3 : i32
    %120 = arith.index_cast %c3_i32 : i32 to index
    %c0_41 = arith.constant 0 : index
    %c0_42 = arith.constant 0 : index
    %121 = vector.load %arg9[%120, %c0_41, %c0_42] : memref<8x2x128xf32, #tpu.memory_space<vmem>>, vector<1x2x128xf32>
    %122 = vector.shape_cast %121 : vector<1x2x128xf32> to vector<2x128xf32>
    %123 = arith.truncf %115 : vector<2x32xf32> to vector<2x32xbf16>
    %cst_43 = arith.constant dense<0.000000e+00> : vector<2x128xf32>
    %124 = tpu.matmul %123, %12, %cst_43 {dimension_numbers = #tpu.dot_dimension_numbers<[1], [0], [0], [1], [0, 0, 1, 1], [], []>} : vector<2x32xbf16>, vector<32x128xbf16>, vector<2x128xf32> -> vector<2x128xf32>
    %125 = arith.addf %122, %124 : vector<2x128xf32>
    %126 = vector.extract_strided_slice %125 {offsets = [0, 0], sizes = [2, 32], strides = [1, 1]} : vector<2x128xf32> to vector<2x32xf32>
    %127 = arith.negf %126 : vector<2x32xf32>
    %128 = math.exp %127 : vector<2x32xf32>
    %cst_44 = arith.constant 1.000000e+00 : f32
    %129 = vector.broadcast %cst_44 : f32 to vector<2x32xf32>
    %130 = arith.addf %129, %128 : vector<2x32xf32>
    %131 = arith.divf %129, %130 : vector<2x32xf32>
    %132 = vector.extract_strided_slice %125 {offsets = [0, 32], sizes = [2, 32], strides = [1, 1]} : vector<2x128xf32> to vector<2x32xf32>
    %133 = arith.negf %132 : vector<2x32xf32>
    %134 = math.exp %133 : vector<2x32xf32>
    %cst_45 = arith.constant 1.000000e+00 : f32
    %135 = vector.broadcast %cst_45 : f32 to vector<2x32xf32>
    %136 = arith.addf %135, %134 : vector<2x32xf32>
    %137 = arith.divf %135, %136 : vector<2x32xf32>
    %138 = vector.extract_strided_slice %125 {offsets = [0, 64], sizes = [2, 32], strides = [1, 1]} : vector<2x128xf32> to vector<2x32xf32>
    %139 = math.tanh %138 : vector<2x32xf32>
    %140 = vector.extract_strided_slice %125 {offsets = [0, 96], sizes = [2, 32], strides = [1, 1]} : vector<2x128xf32> to vector<2x32xf32>
    %141 = arith.negf %140 : vector<2x32xf32>
    %142 = math.exp %141 : vector<2x32xf32>
    %cst_46 = arith.constant 1.000000e+00 : f32
    %143 = vector.broadcast %cst_46 : f32 to vector<2x32xf32>
    %144 = arith.addf %143, %142 : vector<2x32xf32>
    %145 = arith.divf %143, %144 : vector<2x32xf32>
    %146 = arith.mulf %137, %113 : vector<2x32xf32>
    %147 = arith.mulf %131, %139 : vector<2x32xf32>
    %148 = arith.addf %146, %147 : vector<2x32xf32>
    %149 = math.tanh %148 : vector<2x32xf32>
    %150 = arith.mulf %145, %149 : vector<2x32xf32>
    %151 = vector.shape_cast %150 : vector<2x32xf32> to vector<1x2x32xf32>
    %152 = arith.truncf %151 : vector<1x2x32xf32> to vector<1x2x32xbf16>
    %153 = arith.index_cast %c3_i32 : i32 to index
    %c0_47 = arith.constant 0 : index
    %c0_48 = arith.constant 0 : index
    %154 = vector.load %arg6[%153, %c0_47, %c0_48] : memref<8x2x32xbf16, #tpu.memory_space<vmem>>, vector<1x2x32xbf16>
    tpu.vector_store %arg6[%153, %c0_47, %c0_48], %152 {strides = array<i32>} : memref<8x2x32xbf16, #tpu.memory_space<vmem>>, vector<1x2x32xbf16>,
    %c4_i32 = arith.constant 4 : i32
    %155 = arith.index_cast %c4_i32 : i32 to index
    %c0_49 = arith.constant 0 : index
    %c0_50 = arith.constant 0 : index
    %156 = vector.load %arg9[%155, %c0_49, %c0_50] : memref<8x2x128xf32, #tpu.memory_space<vmem>>, vector<1x2x128xf32>
    %157 = vector.shape_cast %156 : vector<1x2x128xf32> to vector<2x128xf32>
    %158 = arith.truncf %150 : vector<2x32xf32> to vector<2x32xbf16>
    %cst_51 = arith.constant dense<0.000000e+00> : vector<2x128xf32>
    %159 = tpu.matmul %158, %12, %cst_51 {dimension_numbers = #tpu.dot_dimension_numbers<[1], [0], [0], [1], [0, 0, 1, 1], [], []>} : vector<2x32xbf16>, vector<32x128xbf16>, vector<2x128xf32> -> vector<2x128xf32>
    %160 = arith.addf %157, %159 : vector<2x128xf32>
    %161 = vector.extract_strided_slice %160 {offsets = [0, 0], sizes = [2, 32], strides = [1, 1]} : vector<2x128xf32> to vector<2x32xf32>
    %162 = arith.negf %161 : vector<2x32xf32>
    %163 = math.exp %162 : vector<2x32xf32>
    %cst_52 = arith.constant 1.000000e+00 : f32
    %164 = vector.broadcast %cst_52 : f32 to vector<2x32xf32>
    %165 = arith.addf %164, %163 : vector<2x32xf32>
    %166 = arith.divf %164, %165 : vector<2x32xf32>
    %167 = vector.extract_strided_slice %160 {offsets = [0, 32], sizes = [2, 32], strides = [1, 1]} : vector<2x128xf32> to vector<2x32xf32>
    %168 = arith.negf %167 : vector<2x32xf32>
    %169 = math.exp %168 : vector<2x32xf32>
    %cst_53 = arith.constant 1.000000e+00 : f32
    %170 = vector.broadcast %cst_53 : f32 to vector<2x32xf32>
    %171 = arith.addf %170, %169 : vector<2x32xf32>
    %172 = arith.divf %170, %171 : vector<2x32xf32>
    %173 = vector.extract_strided_slice %160 {offsets = [0, 64], sizes = [2, 32], strides = [1, 1]} : vector<2x128xf32> to vector<2x32xf32>
    %174 = math.tanh %173 : vector<2x32xf32>
    %175 = vector.extract_strided_slice %160 {offsets = [0, 96], sizes = [2, 32], strides = [1, 1]} : vector<2x128xf32> to vector<2x32xf32>
    %176 = arith.negf %175 : vector<2x32xf32>
    %177 = math.exp %176 : vector<2x32xf32>
    %cst_54 = arith.constant 1.000000e+00 : f32
    %178 = vector.broadcast %cst_54 : f32 to vector<2x32xf32>
    %179 = arith.addf %178, %177 : vector<2x32xf32>
    %180 = arith.divf %178, %179 : vector<2x32xf32>
    %181 = arith.mulf %172, %148 : vector<2x32xf32>
    %182 = arith.mulf %166, %174 : vector<2x32xf32>
    %183 = arith.addf %181, %182 : vector<2x32xf32>
    %184 = math.tanh %183 : vector<2x32xf32>
    %185 = arith.mulf %180, %184 : vector<2x32xf32>
    %186 = vector.shape_cast %185 : vector<2x32xf32> to vector<1x2x32xf32>
    %187 = arith.truncf %186 : vector<1x2x32xf32> to vector<1x2x32xbf16>
    %188 = arith.index_cast %c4_i32 : i32 to index
    %c0_55 = arith.constant 0 : index
    %c0_56 = arith.constant 0 : index
    %189 = vector.load %arg6[%188, %c0_55, %c0_56] : memref<8x2x32xbf16, #tpu.memory_space<vmem>>, vector<1x2x32xbf16>
    tpu.vector_store %arg6[%188, %c0_55, %c0_56], %187 {strides = array<i32>} : memref<8x2x32xbf16, #tpu.memory_space<vmem>>, vector<1x2x32xbf16>,
    %c5_i32 = arith.constant 5 : i32
    %190 = arith.index_cast %c5_i32 : i32 to index
    %c0_57 = arith.constant 0 : index
    %c0_58 = arith.constant 0 : index
    %191 = vector.load %arg9[%190, %c0_57, %c0_58] : memref<8x2x128xf32, #tpu.memory_space<vmem>>, vector<1x2x128xf32>
    %192 = vector.shape_cast %191 : vector<1x2x128xf32> to vector<2x128xf32>
    %193 = arith.truncf %185 : vector<2x32xf32> to vector<2x32xbf16>
    %cst_59 = arith.constant dense<0.000000e+00> : vector<2x128xf32>
    %194 = tpu.matmul %193, %12, %cst_59 {dimension_numbers = #tpu.dot_dimension_numbers<[1], [0], [0], [1], [0, 0, 1, 1], [], []>} : vector<2x32xbf16>, vector<32x128xbf16>, vector<2x128xf32> -> vector<2x128xf32>
    %195 = arith.addf %192, %194 : vector<2x128xf32>
    %196 = vector.extract_strided_slice %195 {offsets = [0, 0], sizes = [2, 32], strides = [1, 1]} : vector<2x128xf32> to vector<2x32xf32>
    %197 = arith.negf %196 : vector<2x32xf32>
    %198 = math.exp %197 : vector<2x32xf32>
    %cst_60 = arith.constant 1.000000e+00 : f32
    %199 = vector.broadcast %cst_60 : f32 to vector<2x32xf32>
    %200 = arith.addf %199, %198 : vector<2x32xf32>
    %201 = arith.divf %199, %200 : vector<2x32xf32>
    %202 = vector.extract_strided_slice %195 {offsets = [0, 32], sizes = [2, 32], strides = [1, 1]} : vector<2x128xf32> to vector<2x32xf32>
    %203 = arith.negf %202 : vector<2x32xf32>
    %204 = math.exp %203 : vector<2x32xf32>
    %cst_61 = arith.constant 1.000000e+00 : f32
    %205 = vector.broadcast %cst_61 : f32 to vector<2x32xf32>
    %206 = arith.addf %205, %204 : vector<2x32xf32>
    %207 = arith.divf %205, %206 : vector<2x32xf32>
    %208 = vector.extract_strided_slice %195 {offsets = [0, 64], sizes = [2, 32], strides = [1, 1]} : vector<2x128xf32> to vector<2x32xf32>
    %209 = math.tanh %208 : vector<2x32xf32>
    %210 = vector.extract_strided_slice %195 {offsets = [0, 96], sizes = [2, 32], strides = [1, 1]} : vector<2x128xf32> to vector<2x32xf32>
    %211 = arith.negf %210 : vector<2x32xf32>
    %212 = math.exp %211 : vector<2x32xf32>
    %cst_62 = arith.constant 1.000000e+00 : f32
    %213 = vector.broadcast %cst_62 : f32 to vector<2x32xf32>
    %214 = arith.addf %213, %212 : vector<2x32xf32>
    %215 = arith.divf %213, %214 : vector<2x32xf32>
    %216 = arith.mulf %207, %183 : vector<2x32xf32>
    %217 = arith.mulf %201, %209 : vector<2x32xf32>
    %218 = arith.addf %216, %217 : vector<2x32xf32>
    %219 = math.tanh %218 : vector<2x32xf32>
    %220 = arith.mulf %215, %219 : vector<2x32xf32>
    %221 = vector.shape_cast %220 : vector<2x32xf32> to vector<1x2x32xf32>
    %222 = arith.truncf %221 : vector<1x2x32xf32> to vector<1x2x32xbf16>
    %223 = arith.index_cast %c5_i32 : i32 to index
    %c0_63 = arith.constant 0 : index
    %c0_64 = arith.constant 0 : index
    %224 = vector.load %arg6[%223, %c0_63, %c0_64] : memref<8x2x32xbf16, #tpu.memory_space<vmem>>, vector<1x2x32xbf16>
    tpu.vector_store %arg6[%223, %c0_63, %c0_64], %222 {strides = array<i32>} : memref<8x2x32xbf16, #tpu.memory_space<vmem>>, vector<1x2x32xbf16>,
    %c6_i32 = arith.constant 6 : i32
    %225 = arith.index_cast %c6_i32 : i32 to index
    %c0_65 = arith.constant 0 : index
    %c0_66 = arith.constant 0 : index
    %226 = vector.load %arg9[%225, %c0_65, %c0_66] : memref<8x2x128xf32, #tpu.memory_space<vmem>>, vector<1x2x128xf32>
    %227 = vector.shape_cast %226 : vector<1x2x128xf32> to vector<2x128xf32>
    %228 = arith.truncf %220 : vector<2x32xf32> to vector<2x32xbf16>
    %cst_67 = arith.constant dense<0.000000e+00> : vector<2x128xf32>
    %229 = tpu.matmul %228, %12, %cst_67 {dimension_numbers = #tpu.dot_dimension_numbers<[1], [0], [0], [1], [0, 0, 1, 1], [], []>} : vector<2x32xbf16>, vector<32x128xbf16>, vector<2x128xf32> -> vector<2x128xf32>
    %230 = arith.addf %227, %229 : vector<2x128xf32>
    %231 = vector.extract_strided_slice %230 {offsets = [0, 0], sizes = [2, 32], strides = [1, 1]} : vector<2x128xf32> to vector<2x32xf32>
    %232 = arith.negf %231 : vector<2x32xf32>
    %233 = math.exp %232 : vector<2x32xf32>
    %cst_68 = arith.constant 1.000000e+00 : f32
    %234 = vector.broadcast %cst_68 : f32 to vector<2x32xf32>
    %235 = arith.addf %234, %233 : vector<2x32xf32>
    %236 = arith.divf %234, %235 : vector<2x32xf32>
    %237 = vector.extract_strided_slice %230 {offsets = [0, 32], sizes = [2, 32], strides = [1, 1]} : vector<2x128xf32> to vector<2x32xf32>
    %238 = arith.negf %237 : vector<2x32xf32>
    %239 = math.exp %238 : vector<2x32xf32>
    %cst_69 = arith.constant 1.000000e+00 : f32
    %240 = vector.broadcast %cst_69 : f32 to vector<2x32xf32>
    %241 = arith.addf %240, %239 : vector<2x32xf32>
    %242 = arith.divf %240, %241 : vector<2x32xf32>
    %243 = vector.extract_strided_slice %230 {offsets = [0, 64], sizes = [2, 32], strides = [1, 1]} : vector<2x128xf32> to vector<2x32xf32>
    %244 = math.tanh %243 : vector<2x32xf32>
    %245 = vector.extract_strided_slice %230 {offsets = [0, 96], sizes = [2, 32], strides = [1, 1]} : vector<2x128xf32> to vector<2x32xf32>
    %246 = arith.negf %245 : vector<2x32xf32>
    %247 = math.exp %246 : vector<2x32xf32>
    %cst_70 = arith.constant 1.000000e+00 : f32
    %248 = vector.broadcast %cst_70 : f32 to vector<2x32xf32>
    %249 = arith.addf %248, %247 : vector<2x32xf32>
    %250 = arith.divf %248, %249 : vector<2x32xf32>
    %251 = arith.mulf %242, %218 : vector<2x32xf32>
    %252 = arith.mulf %236, %244 : vector<2x32xf32>
    %253 = arith.addf %251, %252 : vector<2x32xf32>
    %254 = math.tanh %253 : vector<2x32xf32>
    %255 = arith.mulf %250, %254 : vector<2x32xf32>
    %256 = vector.shape_cast %255 : vector<2x32xf32> to vector<1x2x32xf32>
    %257 = arith.truncf %256 : vector<1x2x32xf32> to vector<1x2x32xbf16>
    %258 = arith.index_cast %c6_i32 : i32 to index
    %c0_71 = arith.constant 0 : index
    %c0_72 = arith.constant 0 : index
    %259 = vector.load %arg6[%258, %c0_71, %c0_72] : memref<8x2x32xbf16, #tpu.memory_space<vmem>>, vector<1x2x32xbf16>
    tpu.vector_store %arg6[%258, %c0_71, %c0_72], %257 {strides = array<i32>} : memref<8x2x32xbf16, #tpu.memory_space<vmem>>, vector<1x2x32xbf16>,
    %c7_i32 = arith.constant 7 : i32
    %260 = arith.index_cast %c7_i32 : i32 to index
    %c0_73 = arith.constant 0 : index
    %c0_74 = arith.constant 0 : index
    %261 = vector.load %arg9[%260, %c0_73, %c0_74] : memref<8x2x128xf32, #tpu.memory_space<vmem>>, vector<1x2x128xf32>
    %262 = vector.shape_cast %261 : vector<1x2x128xf32> to vector<2x128xf32>
    %263 = arith.truncf %255 : vector<2x32xf32> to vector<2x32xbf16>
    %cst_75 = arith.constant dense<0.000000e+00> : vector<2x128xf32>
    %264 = tpu.matmul %263, %12, %cst_75 {dimension_numbers = #tpu.dot_dimension_numbers<[1], [0], [0], [1], [0, 0, 1, 1], [], []>} : vector<2x32xbf16>, vector<32x128xbf16>, vector<2x128xf32> -> vector<2x128xf32>
    %265 = arith.addf %262, %264 : vector<2x128xf32>
    %266 = vector.extract_strided_slice %265 {offsets = [0, 0], sizes = [2, 32], strides = [1, 1]} : vector<2x128xf32> to vector<2x32xf32>
    %267 = arith.negf %266 : vector<2x32xf32>
    %268 = math.exp %267 : vector<2x32xf32>
    %cst_76 = arith.constant 1.000000e+00 : f32
    %269 = vector.broadcast %cst_76 : f32 to vector<2x32xf32>
    %270 = arith.addf %269, %268 : vector<2x32xf32>
    %271 = arith.divf %269, %270 : vector<2x32xf32>
    %272 = vector.extract_strided_slice %265 {offsets = [0, 32], sizes = [2, 32], strides = [1, 1]} : vector<2x128xf32> to vector<2x32xf32>
    %273 = arith.negf %272 : vector<2x32xf32>
    %274 = math.exp %273 : vector<2x32xf32>
    %cst_77 = arith.constant 1.000000e+00 : f32
    %275 = vector.broadcast %cst_77 : f32 to vector<2x32xf32>
    %276 = arith.addf %275, %274 : vector<2x32xf32>
    %277 = arith.divf %275, %276 : vector<2x32xf32>
    %278 = vector.extract_strided_slice %265 {offsets = [0, 64], sizes = [2, 32], strides = [1, 1]} : vector<2x128xf32> to vector<2x32xf32>
    %279 = math.tanh %278 : vector<2x32xf32>
    %280 = vector.extract_strided_slice %265 {offsets = [0, 96], sizes = [2, 32], strides = [1, 1]} : vector<2x128xf32> to vector<2x32xf32>
    %281 = arith.negf %280 : vector<2x32xf32>
    %282 = math.exp %281 : vector<2x32xf32>
    %cst_78 = arith.constant 1.000000e+00 : f32
    %283 = vector.broadcast %cst_78 : f32 to vector<2x32xf32>
    %284 = arith.addf %283, %282 : vector<2x32xf32>
    %285 = arith.divf %283, %284 : vector<2x32xf32>
    %286 = arith.mulf %277, %253 : vector<2x32xf32>
    %287 = arith.mulf %271, %279 : vector<2x32xf32>
    %288 = arith.addf %286, %287 : vector<2x32xf32>
    %289 = math.tanh %288 : vector<2x32xf32>
    %290 = arith.mulf %285, %289 : vector<2x32xf32>
    %291 = vector.shape_cast %290 : vector<2x32xf32> to vector<1x2x32xf32>
    %292 = arith.truncf %291 : vector<1x2x32xf32> to vector<1x2x32xbf16>
    %293 = arith.index_cast %c7_i32 : i32 to index
    %c0_79 = arith.constant 0 : index
    %c0_80 = arith.constant 0 : index
    %294 = vector.load %arg6[%293, %c0_79, %c0_80] : memref<8x2x32xbf16, #tpu.memory_space<vmem>>, vector<1x2x32xbf16>
    tpu.vector_store %arg6[%293, %c0_79, %c0_80], %292 {strides = array<i32>} : memref<8x2x32xbf16, #tpu.memory_space<vmem>>, vector<1x2x32xbf16>,
    %c8_i32 = arith.constant 8 : i32
    %c0_81 = arith.constant 0 : index
    %c0_82 = arith.constant 0 : index
    %295 = vector.load %arg7[%c0_81, %c0_82] : memref<2x32xf32, #tpu.memory_space<vmem>>, vector<2x32xf32>
    tpu.vector_store %arg7[%c0_81, %c0_82], %290 {strides = array<i32>} : memref<2x32xf32, #tpu.memory_space<vmem>>, vector<2x32xf32>,
    %c0_83 = arith.constant 0 : index
    %c0_84 = arith.constant 0 : index
    %296 = vector.load %arg8[%c0_83, %c0_84] : memref<2x32xf32, #tpu.memory_space<vmem>>, vector<2x32xf32>
    tpu.vector_store %arg8[%c0_83, %c0_84], %288 {strides = array<i32>} : memref<2x32xf32, #tpu.memory_space<vmem>>, vector<2x32xf32>,
    return
  }
  func.func @transform_0(%arg0: i32, %arg1: i32) -> (i32, i32, i32) {
    %c0_i32 = arith.constant 0 : i32
    %c0_i32_0 = arith.constant 0 : i32
    return %arg1, %arg0, %c0_i32 : i32, i32, i32
  }
  func.func @transform_1(%arg0: i32, %arg1: i32) -> (i32, i32) {
    %c0_i32 = arith.constant 0 : i32
    %c0_i32_0 = arith.constant 0 : i32
    %c0_i32_1 = arith.constant 0 : i32
    return %c0_i32, %c0_i32_0 : i32, i32
  }
  func.func @transform_2(%arg0: i32, %arg1: i32) -> (i32, i32) {
    %c0_i32 = arith.constant 0 : i32
    %c0_i32_0 = arith.constant 0 : i32
    %c0_i32_1 = arith.constant 0 : i32
    return %c0_i32, %c0_i32_0 : i32, i32
  }
  func.func @transform_3(%arg0: i32, %arg1: i32) -> (i32, i32) {
    %c0_i32 = arith.constant 0 : i32
    %c0_i32_0 = arith.constant 0 : i32
    %c0_i32_1 = arith.constant 0 : i32
    return %c0_i32, %c0_i32_0 : i32, i32
  }
  func.func @transform_4(%arg0: i32, %arg1: i32) -> (i32, i32, i32) {
    %c0_i32 = arith.constant 0 : i32
    %c0_i32_0 = arith.constant 0 : i32
    return %arg1, %arg0, %c0_i32 : i32, i32, i32
  }
  func.func @transform_5(%arg0: i32, %arg1: i32) -> (i32, i32) {
    %c0_i32 = arith.constant 0 : i32
    %c0_i32_0 = arith.constant 0 : i32
    return %arg0, %c0_i32 : i32, i32
  }
  func.func @transform_6(%arg0: i32, %arg1: i32) -> (i32, i32) {
    %c0_i32 = arith.constant 0 : i32
    %c0_i32_0 = arith.constant 0 : i32
    return %arg0, %c0_i32 : i32, i32
  }
}

module attributes {stable_mosaic.version = 11 : i64} {
  func.func @_linear_softmax_kernel(%arg0: i32, %arg1: memref<2x32xf32, #tpu.memory_space<vmem>>, %arg2: memref<32x8xbf16, #tpu.memory_space<vmem>>, %arg3: memref<1x8xf32, #tpu.memory_space<vmem>>, %arg4: memref<2x8xf32, #tpu.memory_space<vmem>>) attributes {dimension_semantics = [#tpu.dimension_semantics<parallel>], iteration_bounds = array<i64: 1>, scalar_prefetch = 0 : i64, scratch_operands = 0 : i64, tpu.core_type = #tpu.core_type<tc>, window_params = [{transform_indices = @transform_0, window_bounds = array<i64: 2, 32>}, {pipeline_mode = #tpu.pipeline_mode<synchronous>, transform_indices = @transform_1, window_bounds = array<i64: 32, 8>}, {pipeline_mode = #tpu.pipeline_mode<synchronous>, transform_indices = @transform_2, window_bounds = array<i64: 1, 8>}, {transform_indices = @transform_3, window_bounds = array<i64: 2, 8>}]} {
    %c0 = arith.constant 0 : index
    %c0_0 = arith.constant 0 : index
    %0 = vector.load %arg1[%c0, %c0_0] : memref<2x32xf32, #tpu.memory_space<vmem>>, vector<2x32xf32>
    %1 = arith.truncf %0 : vector<2x32xf32> to vector<2x32xbf16>
    %c0_1 = arith.constant 0 : index
    %c0_2 = arith.constant 0 : index
    %2 = vector.load %arg2[%c0_1, %c0_2] : memref<32x8xbf16, #tpu.memory_space<vmem>>, vector<32x8xbf16>
    %cst = arith.constant dense<0.000000e+00> : vector<2x8xf32>
    %3 = tpu.matmul %1, %2, %cst {dimension_numbers = #tpu.dot_dimension_numbers<[1], [0], [0], [1], [0, 0, 1, 1], [], []>} : vector<2x32xbf16>, vector<32x8xbf16>, vector<2x8xf32> -> vector<2x8xf32>
    %c0_3 = arith.constant 0 : index
    %c0_4 = arith.constant 0 : index
    %4 = vector.load %arg3[%c0_3, %c0_4] : memref<1x8xf32, #tpu.memory_space<vmem>>, vector<1x8xf32>
    %5 = vector.broadcast %4 : vector<1x8xf32> to vector<2x8xf32>
    %6 = arith.addf %3, %5 : vector<2x8xf32>
    %cst_5 = arith.constant dense<0xFF800000> : vector<2xf32>
    %7 = vector.multi_reduction <maximumf>, %6, %cst_5 [1] : vector<2x8xf32> to vector<2xf32>
    %8 = vector.shape_cast %7 : vector<2xf32> to vector<2x1xf32>
    %9 = vector.broadcast %8 : vector<2x1xf32> to vector<2x8xf32>
    %10 = arith.subf %6, %9 : vector<2x8xf32>
    %11 = math.exp %10 : vector<2x8xf32>
    %cst_6 = arith.constant dense<0.000000e+00> : vector<2xf32>
    %12 = vector.multi_reduction <add>, %11, %cst_6 [1] : vector<2x8xf32> to vector<2xf32>
    %13 = vector.shape_cast %12 : vector<2xf32> to vector<2x1xf32>
    %14 = tpu.reciprocal %13 {approx = true} : vector<2x1xf32> -> vector<2x1xf32>
    %15 = vector.broadcast %14 : vector<2x1xf32> to vector<2x8xf32>
    %16 = arith.mulf %11, %15 : vector<2x8xf32>
    %c0_7 = arith.constant 0 : index
    %c0_8 = arith.constant 0 : index
    %17 = vector.load %arg4[%c0_7, %c0_8] : memref<2x8xf32, #tpu.memory_space<vmem>>, vector<2x8xf32>
    tpu.vector_store %arg4[%c0_7, %c0_8], %16 {strides = array<i32>} : memref<2x8xf32, #tpu.memory_space<vmem>>, vector<2x8xf32>,
    return
  }
  func.func @transform_0(%arg0: i32) -> (i32, i32) {
    %c0_i32 = arith.constant 0 : i32
    %c0_i32_0 = arith.constant 0 : i32
    return %arg0, %c0_i32 : i32, i32
  }
  func.func @transform_1(%arg0: i32) -> (i32, i32) {
    %c0_i32 = arith.constant 0 : i32
    %c0_i32_0 = arith.constant 0 : i32
    %c0_i32_1 = arith.constant 0 : i32
    return %c0_i32, %c0_i32_0 : i32, i32
  }
  func.func @transform_2(%arg0: i32) -> (i32, i32) {
    %c0_i32 = arith.constant 0 : i32
    %c0_i32_0 = arith.constant 0 : i32
    %c0_i32_1 = arith.constant 0 : i32
    return %c0_i32, %c0_i32_0 : i32, i32
  }
  func.func @transform_3(%arg0: i32) -> (i32, i32) {
    %c0_i32 = arith.constant 0 : i32
    %c0_i32_0 = arith.constant 0 : i32
    return %arg0, %c0_i32 : i32, i32
  }
}

</mosaic_0001>

<llo_original>
// kernel: ast2class_forward.5
$region0: #{ast2class_forward.5}
  #allocation0 [shape = 'u32[]', space=smem, size = 0x4, offset = 0x4, fixed_abs, tag = 'smem constant byte address 0x4 - core index']
  #allocation1 [shape = 'u32[144,128]{1,0:T(1,128)}', space=vmem, size = 0x12000, scoped, tag = 'internal scratch']
  %s0 = inlined_call_operand.vmem [shape: f32[2,32], index: 0, kind: input, shape index: {}]
  %s1 = inlined_call_operand.vmem [shape: bf16[32,8], index: 1, kind: input, shape index: {}]
  %s2 = inlined_call_operand.vmem [shape: f32[1,8], index: 2, kind: input, shape index: {}]
  %s3 = inlined_call_operand.hbm [shape: f32[2,8], index: 3, kind: output, shape index: {}]
  %s4 = sld [smem:[#allocation0]]
  $region22: #{ast2class_forward.5} parent=0
    _
  %s6 = ssub.s32 1, %s4
  %s7 = scalar_select 0, %s6, %s4
  $region1: #{ast2class_forward.5} parent=0
    #allocation2 [shape = 'u8[1024]{0}', space=vmem, size = 0x400, scoped, tag = 'output window, operand 0, single buffered']
    #allocation3 [shape = 's32[1]{0}', space=sflag, size = 0x4, scoped, tag = 'scoped memory for ast2class_forward.5']
    %8 = vsyncpa [#allocation3], 0
    // Predicated region
    $region2: #{ast2class_forward.5} parent=1 // pred_check
      _
    $region3: #{ast2class_forward.5} parent=1 // pred_check_branch
      %10 = sbr.rel (0) target = $region5
    $region4: #{ast2class_forward.5} parent=1 // pred_region
      _
    $region5: #{ast2class_forward.5} parent=1 // pred_fallthru
      _
    // Predicated region
    $region6: #{ast2class_forward.5} parent=1 // pred_check
      _
    $region7: #{ast2class_forward.5} parent=1 // pred_check_branch
      %12 = sbr.rel (0) target = $region9
    $region8: #{ast2class_forward.5} parent=1 // pred_region
      _
    $region9: #{ast2class_forward.5} parent=1 // pred_fallthru
      _
    // Predicated region
    $region10: #{ast2class_forward.5} parent=1 // pred_check
      _
    $region11: #{ast2class_forward.5} parent=1 // pred_check_branch
      %14 = sbr.rel (0) target = $region13
    $region12: #{ast2class_forward.5} parent=1 // pred_region
      _
    $region13: #{ast2class_forward.5} parent=1 // pred_fallthru
      _
    %v16 = vld [vmem:[%s0] sm:$0x3]
    %v17 = vpack.c.bf16 %v16, %v16
    %v18 = vld [vmem:[%s1] sm:$0xf]
    %v19 = vld [vmem:[%s1 + $0x4] sm:$0xf]
    %v20 = vld [vmem:[%s1 + $0x8] sm:$0xf]
    %v21 = vld [vmem:[%s1 + $0xc] sm:$0xf]
    %v22 = vld [vmem:[%s2] sm:$0x1]
    %v24 = vlaneseq
    %v25 = vshrl.u32 %v24, 7
    %v26 = vsub.s32 0, %v25
    %v27 = vrot.slane %v22, %v26
    %v33 = vunpack.c.l.b16 %v18
    %v34 = vunpack.c.l.b16 %v19
    %v35 = vunpack.c.l.b16 %v20
    %v36 = vunpack.c.l.b16 %v21
    %v37 = vpack.c.b16 %v34, %v33
    %v38 = vpack.c.b16 %v36, %v35
    %vm41 = vcmask 261120
    %v43 = vsel %vm41, %v17, 0
    %45 = vmatprep.subr.bf16.mxu0 0
    %46 = vmatpush1.bf16.msra.mxu0 %v37
    %47 = vmatprep.subr.bf16.mxu0 0
    %48 = vmatpush1.bf16.msra.mxu0 %v38
    %49 = vmatprep.subr.bf16.mxu0 0
    %50 = vmatpush1.bf16.msra.mxu0 0
    %51 = vmatprep.subr.bf16.mxu0 0
    %52 = vmatpush1.bf16.msra.mxu0 0
    %53 = vmatprep.subr.bf16.mxu0 0
    %54 = vmatpush1.bf16.msra.mxu0 0
    %55 = vmatprep.subr.bf16.mxu0 0
    %56 = vmatpush1.bf16.msra.mxu0 0
    %57 = vmatprep.subr.bf16.mxu0 0
    %58 = vmatpush1.bf16.msra.mxu0 0
    %59 = vmatprep.subr.bf16.mxu0 0
    %60 = vmatpush1.bf16.msra.mxu0 0
    %61 = vmatprep.subr.bf16.mxu0 0
    %62 = vmatpush1.bf16.msra.mxu0 0
    %63 = vmatprep.subr.bf16.mxu0 0
    %64 = vmatpush1.bf16.msra.mxu0 0
    %65 = vmatprep.subr.bf16.mxu0 0
    %66 = vmatpush1.bf16.msra.mxu0 0
    %67 = vmatprep.subr.bf16.mxu0 0
    %68 = vmatpush1.bf16.msra.mxu0 0
    %69 = vmatprep.subr.bf16.mxu0 0
    %70 = vmatpush1.bf16.msra.mxu0 0
    %71 = vmatprep.subr.bf16.mxu0 0
    %72 = vmatpush1.bf16.msra.mxu0 0
    %73 = vmatprep.subr.bf16.mxu0 0
    %74 = vmatpush1.bf16.msra.mxu0 0
    %75 = vmatprep.subr.bf16.mxu0 0
    %76 = vmatpush1.bf16.msra.mxu0 0
    %77 = vmatprep.mubr.bf16.mxu0 0
    %78 = vmatmul.mubr.bf16.gmra.mrb[0].mxu0 %v43
    %v79 = vpop.f32.mrb[0].mxu0
    %v80 = vadd.f32 %v27, %v79
    %v81 = vpop.f32.mrb[0].mxu0
    %v82 = vpop.f32.mrb[0].mxu0
    %v83 = vpop.f32.mrb[0].mxu0
    %84 = vdwg.mxu0
    %vm85 = vcmask 58368
    %v86 = vsel %vm85, %v80, -inf
    %87 = vmax.xlane.f32.xlu0 %v86
    %v88 = vpop.xlane.xlu0 %87
    %v89 = vsub.f32 %v80, %v88
    %v90 = vmul.f32 %v89, 1.442695
    %v91 = vpow.pop %v90
    %v92 = vsel %vm85, %v91, 0.0
    %93 = vadd.xlane.f32.xlu0 %v92
    %v94 = vpop.xlane.xlu0 %93
    %v95 = vrcp.pop %v94
    %v96 = vmul.f32 %v91, %v95
    %97 = vst.msk [vmem:[#allocation2] sm:$0x3] %vm85, %v96
    // Predicated region
    $region14: #{ast2class_forward.5} parent=1 // pred_check
      _
    $region15: #{ast2class_forward.5} parent=1 // pred_check_branch
      %99 = sbr.rel (0) target = $region17
    $region16: #{ast2class_forward.5} parent=1 // pred_region
      %s101 = ssub.s32 32, 32
      %102 = vsyncadd [#allocation3], %s101
      %s104 = sshll.u32 [#allocation2], 4
      %s105 = int_to_ptr.vmem [resolvable:$true] %s104
      %107 = dma.vmem_to_hbm [thread:$0]  %s105, 32, %s3, [#allocation3]
    $region17: #{ast2class_forward.5} parent=1 // pred_fallthru
      _
    // Predicated region
    $region18: #{ast2class_forward.5} parent=1 // pred_check
      _
    $region19: #{ast2class_forward.5} parent=1 // pred_check_branch
      %109 = sbr.rel (0) target = $region21
    $region20: #{ast2class_forward.5} parent=1 // pred_region
      %110 = dma.done [#allocation3], 32
    $region21: #{ast2class_forward.5} parent=1 // pred_fallthru
      _
    %111 = vsyncpa [#allocation3], 1

// kernel: ast2class_forward.4
$region0: #{ast2class_forward.4}
  #allocation0 [shape = 'u32[]', space=smem, size = 0x4, offset = 0x4, fixed_abs, tag = 'smem constant byte address 0x4 - core index']
  #allocation1 [shape = 'u32[144,128]{1,0:T(1,128)}', space=vmem, size = 0x12000, scoped, tag = 'internal scratch']
  #allocation2 [shape = 'f32[8,2,128]{2,1,0:T(2,128)}', space=vmem, size = 0x2000, scoped, tag = 'scratch operand']
  %s0 = inlined_call_operand.vmem [shape: bf16[8,2,32], index: 0, kind: input, shape index: {}]
  %s1 = inlined_call_operand.vmem [shape: bf16[32,128], index: 1, kind: input, shape index: {}]
  %s2 = inlined_call_operand.vmem [shape: bf16[32,128], index: 2, kind: input, shape index: {}]
  %s3 = inlined_call_operand.vmem [shape: f32[1,128], index: 3, kind: input, shape index: {}]
  %s4 = inlined_call_operand.hbm [shape: bf16[8,2,32], index: 4, kind: output, shape index: {0}]
  %s5 = inlined_call_operand.vmem [shape: f32[2,32], index: 5, kind: output, shape index: {1}]
  %s6 = inlined_call_operand.vmem [shape: f32[2,32], index: 6, kind: output, shape index: {2}]
  %7 = xla_tuple %s4, %s5, %s6
  %s8 = sld [smem:[#allocation0]]
  $region46: #{ast2class_forward.4} parent=0
    _
  %s10 = ssub.s32 1, %s8
  %s11 = scalar_select 0, %s10, %s8
  $region1: #{ast2class_forward.4} parent=0
    #allocation3 [shape = 'u8[4096]{0}', space=vmem, size = 0x1000, scoped, tag = 'output window, operand 0, single buffered']
    #allocation4 [shape = 's32[1]{0}', space=sflag, size = 0x4, scoped, tag = 'scoped memory for ast2class_forward.4']
    %12 = vsyncpa [#allocation4], 0
    // Predicated region
    $region2: #{ast2class_forward.4} parent=1 // pred_check
      _
    $region3: #{ast2class_forward.4} parent=1 // pred_check_branch
      %14 = sbr.rel (0) target = $region5
    $region4: #{ast2class_forward.4} parent=1 // pred_region
      _
    $region5: #{ast2class_forward.4} parent=1 // pred_fallthru
      _
    // Predicated region
    $region6: #{ast2class_forward.4} parent=1 // pred_check
      _
    $region7: #{ast2class_forward.4} parent=1 // pred_check_branch
      %16 = sbr.rel (0) target = $region9
    $region8: #{ast2class_forward.4} parent=1 // pred_region
      _
    $region9: #{ast2class_forward.4} parent=1 // pred_fallthru
      _
    // Predicated region
    $region10: #{ast2class_forward.4} parent=1 // pred_check
      _
    $region11: #{ast2class_forward.4} parent=1 // pred_check_branch
      %18 = sbr.rel (0) target = $region13
    $region12: #{ast2class_forward.4} parent=1 // pred_region
      _
    $region13: #{ast2class_forward.4} parent=1 // pred_fallthru
      _
    // Predicated region
    $region14: #{ast2class_forward.4} parent=1 // pred_check
      _
    $region15: #{ast2class_forward.4} parent=1 // pred_check_branch
      %20 = sbr.rel (0) target = $region17
    $region16: #{ast2class_forward.4} parent=1 // pred_region
      _
    $region17: #{ast2class_forward.4} parent=1 // pred_fallthru
      _
    %p22 = scmp.eq.s32.totalorder 0, 0
    // Predicated region
    $region18: #{ast2class_forward.4} parent=1 // pred_check
      %p23 = pneg %p22
    $region19: #{ast2class_forward.4} parent=1 // pred_check_branch
      %25 = sbr.rel (%p23) target = $region21
    $region20: #{ast2class_forward.4} parent=1 // pred_region
      %vm26 = vcmask 254976
      %27 = vst.msk [vmem:[%s5] sm:$0x3] %vm26, 0.0
      %28 = vst.msk [vmem:[%s6] sm:$0x3] %vm26, 0.0
    $region21: #{ast2class_forward.4} parent=1 // pred_fallthru
      _
    %v29 = vld [vmem:[%s0] sm:$0x1]
    %v30 = vld [vmem:[%s0 + $0x1] sm:$0x1]
    %v31 = vld [vmem:[%s0 + $0x2] sm:$0x1]
    %v32 = vld [vmem:[%s0 + $0x3] sm:$0x1]
    %v33 = vld [vmem:[%s0 + $0x4] sm:$0x1]
    %v34 = vld [vmem:[%s0 + $0x5] sm:$0x1]
    %v35 = vld [vmem:[%s0 + $0x6] sm:$0x1]
    %v36 = vld [vmem:[%s0 + $0x7] sm:$0x1]
    %v37 = vld [vmem:[%s1] sm:$0xf]
    %v38 = vld [vmem:[%s1 + $0x4] sm:$0xf]
    %v39 = vld [vmem:[%s1 + $0x8] sm:$0xf]
    %v40 = vld [vmem:[%s1 + $0xc] sm:$0xf]
    %v41 = vld [vmem:[%s3] sm:$0x1]
    %v43 = vlaneseq
    %v44 = vshrl.u32 %v43, 7
    %v45 = vsub.s32 0, %v44
    %v46 = vrot.slane %v41, %v45
    %v56 = vcombine.low %v29, %v30
    %v57 = vcombine.low %v31, %v32
    %v58 = vcombine.low %v33, %v34
    %v59 = vcombine.low %v35, %v36
    %v61 = vunpack.c.l.s4 1966171168
    %v62 = vunpack.c.0.s8 %v61
    %v63 = vlaneseq
    %v64 = vshrl.u32 %v63, 7
    %v65 = vsub.s32 %v62, %v64
    %v66 = vrot.slane %v56, %v65
    %v68 = vunpack.c.l.s4 1966171168
    %v69 = vunpack.c.0.s8 %v68
    %v70 = vlaneseq
    %v71 = vshrl.u32 %v70, 7
    %v72 = vsub.s32 %v69, %v71
    %v73 = vrot.slane %v57, %v72
    %v75 = vunpack.c.l.s4 1966171168
    %v76 = vunpack.c.0.s8 %v75
    %v77 = vlaneseq
    %v78 = vshrl.u32 %v77, 7
    %v79 = vsub.s32 %v76, %v78
    %v80 = vrot.slane %v58, %v79
    %v82 = vunpack.c.l.s4 1966171168
    %v83 = vunpack.c.0.s8 %v82
    %v84 = vlaneseq
    %v85 = vshrl.u32 %v84, 7
    %v86 = vsub.s32 %v83, %v85
    %v87 = vrot.slane %v59, %v86
    %v88 = vcombine.low %v66, %v73
    %v89 = vcombine.low %v80, %v87
    %v91 = vunpack.c.l.s4 1966171168
    %v92 = vunpack.c.0.s8 %v91
    %v93 = vlaneseq
    %v94 = vshrl.u32 %v93, 7
    %v95 = vsub.s32 %v92, %v94
    %v96 = vrot.slane %v88, %v95
    %v98 = vunpack.c.l.s4 1966171168
    %v99 = vunpack.c.0.s8 %v98
    %v100 = vlaneseq
    %v101 = vshrl.u32 %v100, 7
    %v102 = vsub.s32 %v99, %v101
    %v103 = vrot.slane %v89, %v102
    %v104 = vcombine.low %v96, %v103
    %v109 = vunpack.c.l.b16 %v37
    %v110 = vunpack.c.l.b16 %v38
    %v111 = vunpack.c.l.b16 %v39
    %v112 = vunpack.c.l.b16 %v40
    %v113 = vpack.c.b16 %v110, %v109
    %v114 = vpack.c.b16 %v112, %v111
    %vm117 = vcmask 261120
    %v119 = vsel %vm117, %v104, 0
    %121 = vmatprep.subr.bf16.mxu0 0
    %122 = vmatpush1.bf16.msra.mxu0 %v113
    %123 = vmatprep.subr.bf16.mxu0 0
    %124 = vmatpush1.bf16.msra.mxu0 %v114
    %125 = vmatprep.subr.bf16.mxu0 0
    %126 = vmatpush1.bf16.msra.mxu0 0
    %127 = vmatprep.subr.bf16.mxu0 0
    %128 = vmatpush1.bf16.msra.mxu0 0
    %129 = vmatprep.subr.bf16.mxu0 0
    %130 = vmatpush1.bf16.msra.mxu0 0
    %131 = vmatprep.subr.bf16.mxu0 0
    %132 = vmatpush1.bf16.msra.mxu0 0
    %133 = vmatprep.subr.bf16.mxu0 0
    %134 = vmatpush1.bf16.msra.mxu0 0
    %135 = vmatprep.subr.bf16.mxu0 0
    %136 = vmatpush1.bf16.msra.mxu0 0
    %137 = vmatprep.subr.bf16.mxu0 0
    %138 = vmatpush1.bf16.msra.mxu0 0
    %139 = vmatprep.subr.bf16.mxu0 0
    %140 = vmatpush1.bf16.msra.mxu0 0
    %141 = vmatprep.subr.bf16.mxu0 0
    %142 = vmatpush1.bf16.msra.mxu0 0
    %143 = vmatprep.subr.bf16.mxu0 0
    %144 = vmatpush1.bf16.msra.mxu0 0
    %145 = vmatprep.subr.bf16.mxu0 0
    %146 = vmatpush1.bf16.msra.mxu0 0
    %147 = vmatprep.subr.bf16.mxu0 0
    %148 = vmatpush1.bf16.msra.mxu0 0
    %149 = vmatprep.subr.bf16.mxu0 0
    %150 = vmatpush1.bf16.msra.mxu0 0
    %151 = vmatprep.subr.bf16.mxu0 0
    %152 = vmatpush1.bf16.msra.mxu0 0
    %153 = vmatprep.mubr.bf16.mxu0 0
    %154 = vmatmul.mubr.bf16.gmra.mrb[0].mxu0 %v119
    %v155 = vpop.f32.mrb[0].mxu0
    %v156 = vadd.f32 %v46, %v155
    %v157 = vpop.f32.mrb[0].mxu0
    %v158 = vpop.f32.mrb[0].mxu0
    %v159 = vadd.f32 %v46, %v158
    %v160 = vpop.f32.mrb[0].mxu0
    %161 = vdwg.mxu0
    %v164 = vcombine.high %v156, %v156
    %v166 = vunpack.c.l.s4 1983009808
    %v167 = vunpack.c.0.s8 %v166
    %v168 = vlaneseq
    %v169 = vshrl.u32 %v168, 7
    %v170 = vsub.s32 %v167, %v169
    %v171 = vrot.slane %v156, %v170
    %v173 = vunpack.c.l.s4 1983009808
    %v174 = vunpack.c.0.s8 %v173
    %v175 = vlaneseq
    %v176 = vshrl.u32 %v175, 7
    %v177 = vsub.s32 %v174, %v176
    %v178 = vrot.slane %v164, %v177
    %v179 = vcombine.high %v171, %v171
    %v180 = vcombine.high %v178, %v178
    %v181 = vcombine.high %v159, %v159
    %v183 = vunpack.c.l.s4 1983009808
    %v184 = vunpack.c.0.s8 %v183
    %v185 = vlaneseq
    %v186 = vshrl.u32 %v185, 7
    %v187 = vsub.s32 %v184, %v186
    %v188 = vrot.slane %v159, %v187
    %v190 = vunpack.c.l.s4 1983009808
    %v191 = vunpack.c.0.s8 %v190
    %v192 = vlaneseq
    %v193 = vshrl.u32 %v192, 7
    %v194 = vsub.s32 %v191, %v193
    %v195 = vrot.slane %v181, %v194
    %v196 = vcombine.high %v188, %v188
    %v197 = vcombine.high %v195, %v195
    %206 = vst [vmem:[#allocation2] sm:$0x3] %v171
    %207 = vst [vmem:[#allocation2 + $0x2] sm:$0x3] %v179
    %208 = vst [vmem:[#allocation2 + $0x4] sm:$0x3] %v178
    %209 = vst [vmem:[#allocation2 + $0x6] sm:$0x3] %v180
    %210 = vst [vmem:[#allocation2 + $0x8] sm:$0x3] %v188
    %211 = vst [vmem:[#allocation2 + $0xa] sm:$0x3] %v196
    %212 = vst [vmem:[#allocation2 + $0xc] sm:$0x3] %v195
    %213 = vst [vmem:[#allocation2 + $0xe] sm:$0x3] %v197
    %v214 = vld [vmem:[%s2] sm:$0xf]
    %v215 = vld [vmem:[%s2 + $0x4] sm:$0xf]
    %v216 = vld [vmem:[%s2 + $0x8] sm:$0xf]
    %v217 = vld [vmem:[%s2 + $0xc] sm:$0xf]
    %v218 = vld [vmem:[%s5] sm:$0x3]
    %v219 = vld [vmem:[%s6] sm:$0x3]
    %v220 = vld [vmem:[#allocation2] sm:$0x3]
    %v221 = vpack.c.bf16 %v218, %v218
    %v226 = vunpack.c.l.b16 %v214
    %v227 = vunpack.c.l.b16 %v215
    %v228 = vunpack.c.l.b16 %v216
    %v229 = vunpack.c.l.b16 %v217
    %v230 = vpack.c.b16 %v227, %v226
    %v231 = vpack.c.b16 %v229, %v228
    %v235 = vsel %vm117, %v221, 0
    %237 = vmatprep.subr.bf16.mxu0 0
    %238 = vmatpush1.bf16.msra.mxu0 %v230
    %239 = vmatprep.subr.bf16.mxu0 0
    %240 = vmatpush1.bf16.msra.mxu0 %v231
    %241 = vmatprep.subr.bf16.mxu0 0
    %242 = vmatpush1.bf16.msra.mxu0 0
    %243 = vmatprep.subr.bf16.mxu0 0
    %244 = vmatpush1.bf16.msra.mxu0 0
    %245 = vmatprep.subr.bf16.mxu0 0
    %246 = vmatpush1.bf16.msra.mxu0 0
    %247 = vmatprep.subr.bf16.mxu0 0
    %248 = vmatpush1.bf16.msra.mxu0 0
    %249 = vmatprep.subr.bf16.mxu0 0
    %250 = vmatpush1.bf16.msra.mxu0 0
    %251 = vmatprep.subr.bf16.mxu0 0
    %252 = vmatpush1.bf16.msra.mxu0 0
    %253 = vmatprep.subr.bf16.mxu0 0
    %254 = vmatpush1.bf16.msra.mxu0 0
    %255 = vmatprep.subr.bf16.mxu0 0
    %256 = vmatpush1.bf16.msra.mxu0 0
    %257 = vmatprep.subr.bf16.mxu0 0
    %258 = vmatpush1.bf16.msra.mxu0 0
    %259 = vmatprep.subr.bf16.mxu0 0
    %260 = vmatpush1.bf16.msra.mxu0 0
    %261 = vmatprep.subr.bf16.mxu0 0
    %262 = vmatpush1.bf16.msra.mxu0 0
    %263 = vmatprep.subr.bf16.mxu0 0
    %264 = vmatpush1.bf16.msra.mxu0 0
    %265 = vmatprep.subr.bf16.mxu0 0
    %266 = vmatpush1.bf16.msra.mxu0 0
    %267 = vmatprep.subr.bf16.mxu0 0
    %268 = vmatpush1.bf16.msra.mxu0 0
    %269 = vmatprep.mubr.bf16.mxu0 0
    %270 = vmatmul.mubr.bf16.gmra.mrb[0].mxu0 %v235
    %v271 = vpop.f32.mrb[0].mxu0
    %v272 = vadd.f32 0.0, %v271
    %v273 = vpop.f32.mrb[0].mxu0
    %v274 = vpop.f32.mrb[0].mxu0
    %v275 = vpop.f32.mrb[0].mxu0
    %276 = vdwg.mxu0
    %v277 = vadd.f32 %v220, %v272
    %v278 = vxor.u32 %v277, 2147483648
    %v279 = vmul.f32 %v278, 1.442695
    %v280 = vpow.pop %v279
    %v281 = vadd.f32 %v280, 1.0
    %v282 = vrcp.pop %v281
    %v283 = vmul.f32 1.0, %v282
    %v284 = vtanh.pop %v277
    %286 = vrot.lane.b32.xlu0 %v219, 32
    %v287 = vpop.permute.xlu0 %286
    %v289 = vmul.f32 %v283, %v287
    %291 = vrot.lane.b32.xlu0 %v284, 64
    %v292 = vpop.permute.xlu0 %291
    %v294 = vmul.f32 %v283, %v292
    %296 = vrot.lane.b32.xlu0 %v294, 32
    %v297 = vpop.permute.xlu0 %296
    %v299 = vadd.f32 %v289, %v297
    %v300 = vtanh.pop %v299
    %302 = vrot.lane.b32.xlu0 %v300, 64
    %v303 = vpop.permute.xlu0 %302
    %v305 = vmul.f32 %v283, %v303
    %v306 = vpack.c.bf16 %v305, %v305
    %v309 = vunpack.c.l.s4 1966171168
    %v310 = vunpack.c.0.s8 %v309
    %v311 = vlaneseq
    %v312 = vshrl.u32 %v311, 7
    %v313 = vsub.s32 %v310, %v312
    %v314 = vrot.slane %v306, %v313
    %v316 = vunpack.c.l.s4 1966171168
    %v317 = vunpack.c.0.s8 %v316
    %v318 = vlaneseq
    %v319 = vshrl.u32 %v318, 7
    %v320 = vsub.s32 %v317, %v319
    %v321 = vrot.slane %v314, %v320
    %322 = vrot.lane.b32.xlu0 %v321, 32
    %v323 = vpop.permute.xlu0 %322
    %vm325 = vcmask 253952
    %326 = vst.msk [vmem:[#allocation3] sm:$0x1] %vm325, %v323
    %s327 = scalar_lea.vmem [#allocation2], 2
    %v328 = vld [vmem:[%s327] sm:$0x3]
    %329 = vrot.lane.b32.xlu0 %v306, 32
    %v330 = vpop.permute.xlu0 %329
    %v332 = vsel %vm117, %v330, 0
    %334 = vmatprep.subr.bf16.mxu0 0
    %335 = vmatpush1.bf16.msra.mxu0 %v230
    %336 = vmatprep.subr.bf16.mxu0 0
    %337 = vmatpush1.bf16.msra.mxu0 %v231
    %338 = vmatprep.subr.bf16.mxu0 0
    %339 = vmatpush1.bf16.msra.mxu0 0
    %340 = vmatprep.subr.bf16.mxu0 0
    %341 = vmatpush1.bf16.msra.mxu0 0
    %342 = vmatprep.subr.bf16.mxu0 0
    %343 = vmatpush1.bf16.msra.mxu0 0
    %344 = vmatprep.subr.bf16.mxu0 0
    %345 = vmatpush1.bf16.msra.mxu0 0
    %346 = vmatprep.subr.bf16.mxu0 0
    %347 = vmatpush1.bf16.msra.mxu0 0
    %348 = vmatprep.subr.bf16.mxu0 0
    %349 = vmatpush1.bf16.msra.mxu0 0
    %350 = vmatprep.subr.bf16.mxu0 0
    %351 = vmatpush1.bf16.msra.mxu0 0
    %352 = vmatprep.subr.bf16.mxu0 0
    %353 = vmatpush1.bf16.msra.mxu0 0
    %354 = vmatprep.subr.bf16.mxu0 0
    %355 = vmatpush1.bf16.msra.mxu0 0
    %356 = vmatprep.subr.bf16.mxu0 0
    %357 = vmatpush1.bf16.msra.mxu0 0
    %358 = vmatprep.subr.bf16.mxu0 0
    %359 = vmatpush1.bf16.msra.mxu0 0
    %360 = vmatprep.subr.bf16.mxu0 0
    %361 = vmatpush1.bf16.msra.mxu0 0
    %362 = vmatprep.subr.bf16.mxu0 0
    %363 = vmatpush1.bf16.msra.mxu0 0
    %364 = vmatprep.subr.bf16.mxu0 0
    %365 = vmatpush1.bf16.msra.mxu0 0
    %366 = vmatprep.mubr.bf16.mxu0 0
    %367 = vmatmul.mubr.bf16.gmra.mrb[0].mxu0 %v332
    %v368 = vpop.f32.mrb[0].mxu0
    %v369 = vadd.f32 0.0, %v368
    %v370 = vpop.f32.mrb[0].mxu0
    %v371 = vpop.f32.mrb[0].mxu0
    %v372 = vpop.f32.mrb[0].mxu0
    %373 = vdwg.mxu0
    %v374 = vadd.f32 %v328, %v369
    %v375 = vxor.u32 %v374, 2147483648
    %v376 = vmul.f32 %v375, 1.442695
    %v377 = vpow.pop %v376
    %v378 = vadd.f32 %v377, 1.0
    %v379 = vrcp.pop %v378
    %v380 = vmul.f32 1.0, %v379
    %v381 = vtanh.pop %v374
    %v382 = vmul.f32 %v380, %v299
    %384 = vrot.lane.b32.xlu0 %v381, 64
    %v385 = vpop.permute.xlu0 %384
    %v387 = vmul.f32 %v380, %v385
    %389 = vrot.lane.b32.xlu0 %v387, 32
    %v390 = vpop.permute.xlu0 %389
    %v392 = vadd.f32 %v382, %v390
    %v393 = vtanh.pop %v392
    %395 = vrot.lane.b32.xlu0 %v393, 64
    %v396 = vpop.permute.xlu0 %395
    %v398 = vmul.f32 %v380, %v396
    %v399 = vpack.c.bf16 %v398, %v398
    %v402 = vunpack.c.l.s4 1966171168
    %v403 = vunpack.c.0.s8 %v402
    %v404 = vlaneseq
    %v405 = vshrl.u32 %v404, 7
    %v406 = vsub.s32 %v403, %v405
    %v407 = vrot.slane %v399, %v406
    %v409 = vunpack.c.l.s4 1966171168
    %v410 = vunpack.c.0.s8 %v409
    %v411 = vlaneseq
    %v412 = vshrl.u32 %v411, 7
    %v413 = vsub.s32 %v410, %v412
    %v414 = vrot.slane %v407, %v413
    %415 = vrot.lane.b32.xlu0 %v414, 32
    %v416 = vpop.permute.xlu0 %415
    %s418 = scalar_lea.vmem [#allocation3], 1
    %419 = vst.msk [vmem:[%s418] sm:$0x1] %vm325, %v416
    %s420 = scalar_lea.vmem [#allocation2], 4
    %v421 = vld [vmem:[%s420] sm:$0x3]
    %422 = vrot.lane.b32.xlu0 %v399, 32
    %v423 = vpop.permute.xlu0 %422
    %v425 = vsel %vm117, %v423, 0
    %427 = vmatprep.subr.bf16.mxu0 0
    %428 = vmatpush1.bf16.msra.mxu0 %v230
    %429 = vmatprep.subr.bf16.mxu0 0
    %430 = vmatpush1.bf16.msra.mxu0 %v231
    %431 = vmatprep.subr.bf16.mxu0 0
    %432 = vmatpush1.bf16.msra.mxu0 0
    %433 = vmatprep.subr.bf16.mxu0 0
    %434 = vmatpush1.bf16.msra.mxu0 0
    %435 = vmatprep.subr.bf16.mxu0 0
    %436 = vmatpush1.bf16.msra.mxu0 0
    %437 = vmatprep.subr.bf16.mxu0 0
    %438 = vmatpush1.bf16.msra.mxu0 0
    %439 = vmatprep.subr.bf16.mxu0 0
    %440 = vmatpush1.bf16.msra.mxu0 0
    %441 = vmatprep.subr.bf16.mxu0 0
    %442 = vmatpush1.bf16.msra.mxu0 0
    %443 = vmatprep.subr.bf16.mxu0 0
    %444 = vmatpush1.bf16.msra.mxu0 0
    %445 = vmatprep.subr.bf16.mxu0 0
    %446 = vmatpush1.bf16.msra.mxu0 0
    %447 = vmatprep.subr.bf16.mxu0 0
    %448 = vmatpush1.bf16.msra.mxu0 0
    %449 = vmatprep.subr.bf16.mxu0 0
    %450 = vmatpush1.bf16.msra.mxu0 0
    %451 = vmatprep.subr.bf16.mxu0 0
    %452 = vmatpush1.bf16.msra.mxu0 0
    %453 = vmatprep.subr.bf16.mxu0 0
    %454 = vmatpush1.bf16.msra.mxu0 0
    %455 = vmatprep.subr.bf16.mxu0 0
    %456 = vmatpush1.bf16.msra.mxu0 0
    %457 = vmatprep.subr.bf16.mxu0 0
    %458 = vmatpush1.bf16.msra.mxu0 0
    %459 = vmatprep.mubr.bf16.mxu0 0
    %460 = vmatmul.mubr.bf16.gmra.mrb[0].mxu0 %v425
    %v461 = vpop.f32.mrb[0].mxu0
    %v462 = vadd.f32 0.0, %v461
    %v463 = vpop.f32.mrb[0].mxu0
    %v464 = vpop.f32.mrb[0].mxu0
    %v465 = vpop.f32.mrb[0].mxu0
    %466 = vdwg.mxu0
    %v467 = vadd.f32 %v421, %v462
    %v468 = vxor.u32 %v467, 2147483648
    %v469 = vmul.f32 %v468, 1.442695
    %v470 = vpow.pop %v469
    %v471 = vadd.f32 %v470, 1.0
    %v472 = vrcp.pop %v471
    %v473 = vmul.f32 1.0, %v472
    %v474 = vtanh.pop %v467
    %v475 = vmul.f32 %v473, %v392
    %477 = vrot.lane.b32.xlu0 %v474, 64
    %v478 = vpop.permute.xlu0 %477
    %v480 = vmul.f32 %v473, %v478
    %482 = vrot.lane.b32.xlu0 %v480, 32
    %v483 = vpop.permute.xlu0 %482
    %v485 = vadd.f32 %v475, %v483
    %v486 = vtanh.pop %v485
    %488 = vrot.lane.b32.xlu0 %v486, 64
    %v489 = vpop.permute.xlu0 %488
    %v491 = vmul.f32 %v473, %v489
    %v492 = vpack.c.bf16 %v491, %v491
    %v495 = vunpack.c.l.s4 1966171168
    %v496 = vunpack.c.0.s8 %v495
    %v497 = vlaneseq
    %v498 = vshrl.u32 %v497, 7
    %v499 = vsub.s32 %v496, %v498
    %v500 = vrot.slane %v492, %v499
    %v502 = vunpack.c.l.s4 1966171168
    %v503 = vunpack.c.0.s8 %v502
    %v504 = vlaneseq
    %v505 = vshrl.u32 %v504, 7
    %v506 = vsub.s32 %v503, %v505
    %v507 = vrot.slane %v500, %v506
    %508 = vrot.lane.b32.xlu0 %v507, 32
    %v509 = vpop.permute.xlu0 %508
    %s511 = scalar_lea.vmem [#allocation3], 2
    %512 = vst.msk [vmem:[%s511] sm:$0x1] %vm325, %v509
    %s513 = scalar_lea.vmem [#allocation2], 6
    %v514 = vld [vmem:[%s513] sm:$0x3]
    %515 = vrot.lane.b32.xlu0 %v492, 32
    %v516 = vpop.permute.xlu0 %515
    %v518 = vsel %vm117, %v516, 0
    %520 = vmatprep.subr.bf16.mxu0 0
    %521 = vmatpush1.bf16.msra.mxu0 %v230
    %522 = vmatprep.subr.bf16.mxu0 0
    %523 = vmatpush1.bf16.msra.mxu0 %v231
    %524 = vmatprep.subr.bf16.mxu0 0
    %525 = vmatpush1.bf16.msra.mxu0 0
    %526 = vmatprep.subr.bf16.mxu0 0
    %527 = vmatpush1.bf16.msra.mxu0 0
    %528 = vmatprep.subr.bf16.mxu0 0
    %529 = vmatpush1.bf16.msra.mxu0 0
    %530 = vmatprep.subr.bf16.mxu0 0
    %531 = vmatpush1.bf16.msra.mxu0 0
    %532 = vmatprep.subr.bf16.mxu0 0
    %533 = vmatpush1.bf16.msra.mxu0 0
    %534 = vmatprep.subr.bf16.mxu0 0
    %535 = vmatpush1.bf16.msra.mxu0 0
    %536 = vmatprep.subr.bf16.mxu0 0
    %537 = vmatpush1.bf16.msra.mxu0 0
    %538 = vmatprep.subr.bf16.mxu0 0
    %539 = vmatpush1.bf16.msra.mxu0 0
    %540 = vmatprep.subr.bf16.mxu0 0
    %541 = vmatpush1.bf16.msra.mxu0 0
    %542 = vmatprep.subr.bf16.mxu0 0
    %543 = vmatpush1.bf16.msra.mxu0 0
    %544 = vmatprep.subr.bf16.mxu0 0
    %545 = vmatpush1.bf16.msra.mxu0 0
    %546 = vmatprep.subr.bf16.mxu0 0
    %547 = vmatpush1.bf16.msra.mxu0 0
    %548 = vmatprep.subr.bf16.mxu0 0
    %549 = vmatpush1.bf16.msra.mxu0 0
    %550 = vmatprep.subr.bf16.mxu0 0
    %551 = vmatpush1.bf16.msra.mxu0 0
    %552 = vmatprep.mubr.bf16.mxu0 0
    %553 = vmatmul.mubr.bf16.gmra.mrb[0].mxu0 %v518
    %v554 = vpop.f32.mrb[0].mxu0
    %v555 = vadd.f32 0.0, %v554
    %v556 = vpop.f32.mrb[0].mxu0
    %v557 = vpop.f32.mrb[0].mxu0
    %v558 = vpop.f32.mrb[0].mxu0
    %559 = vdwg.mxu0
    %v560 = vadd.f32 %v514, %v555
    %v561 = vxor.u32 %v560, 2147483648
    %v562 = vmul.f32 %v561, 1.442695
    %v563 = vpow.pop %v562
    %v564 = vadd.f32 %v563, 1.0
    %v565 = vrcp.pop %v564
    %v566 = vmul.f32 1.0, %v565
    %v567 = vtanh.pop %v560
    %v568 = vmul.f32 %v566, %v485
    %570 = vrot.lane.b32.xlu0 %v567, 64
    %v571 = vpop.permute.xlu0 %570
    %v573 = vmul.f32 %v566, %v571
    %575 = vrot.lane.b32.xlu0 %v573, 32
    %v576 = vpop.permute.xlu0 %575
    %v578 = vadd.f32 %v568, %v576
    %v579 = vtanh.pop %v578
    %581 = vrot.lane.b32.xlu0 %v579, 64
    %v582 = vpop.permute.xlu0 %581
    %v584 = vmul.f32 %v566, %v582
    %v585 = vpack.c.bf16 %v584, %v584
    %v588 = vunpack.c.l.s4 1966171168
    %v589 = vunpack.c.0.s8 %v588
    %v590 = vlaneseq
    %v591 = vshrl.u32 %v590, 7
    %v592 = vsub.s32 %v589, %v591
    %v593 = vrot.slane %v585, %v592
    %v595 = vunpack.c.l.s4 1966171168
    %v596 = vunpack.c.0.s8 %v595
    %v597 = vlaneseq
    %v598 = vshrl.u32 %v597, 7
    %v599 = vsub.s32 %v596, %v598
    %v600 = vrot.slane %v593, %v599
    %601 = vrot.lane.b32.xlu0 %v600, 32
    %v602 = vpop.permute.xlu0 %601
    %s604 = scalar_lea.vmem [#allocation3], 3
    %605 = vst.msk [vmem:[%s604] sm:$0x1] %vm325, %v602
    %s606 = scalar_lea.vmem [#allocation2], 8
    %v607 = vld [vmem:[%s606] sm:$0x3]
    %608 = vrot.lane.b32.xlu0 %v585, 32
    %v609 = vpop.permute.xlu0 %608
    %v611 = vsel %vm117, %v609, 0
    %613 = vmatprep.subr.bf16.mxu0 0
    %614 = vmatpush1.bf16.msra.mxu0 %v230
    %615 = vmatprep.subr.bf16.mxu0 0
    %616 = vmatpush1.bf16.msra.mxu0 %v231
    %617 = vmatprep.subr.bf16.mxu0 0
    %618 = vmatpush1.bf16.msra.mxu0 0
    %619 = vmatprep.subr.bf16.mxu0 0
    %620 = vmatpush1.bf16.msra.mxu0 0
    %621 = vmatprep.subr.bf16.mxu0 0
    %622 = vmatpush1.bf16.msra.mxu0 0
    %623 = vmatprep.subr.bf16.mxu0 0
    %624 = vmatpush1.bf16.msra.mxu0 0
    %625 = vmatprep.subr.bf16.mxu0 0
    %626 = vmatpush1.bf16.msra.mxu0 0
    %627 = vmatprep.subr.bf16.mxu0 0
    %628 = vmatpush1.bf16.msra.mxu0 0
    %629 = vmatprep.subr.bf16.mxu0 0
    %630 = vmatpush1.bf16.msra.mxu0 0
    %631 = vmatprep.subr.bf16.mxu0 0
    %632 = vmatpush1.bf16.msra.mxu0 0
    %633 = vmatprep.subr.bf16.mxu0 0
    %634 = vmatpush1.bf16.msra.mxu0 0
    %635 = vmatprep.subr.bf16.mxu0 0
    %636 = vmatpush1.bf16.msra.mxu0 0
    %637 = vmatprep.subr.bf16.mxu0 0
    %638 = vmatpush1.bf16.msra.mxu0 0
    %639 = vmatprep.subr.bf16.mxu0 0
    %640 = vmatpush1.bf16.msra.mxu0 0
    %641 = vmatprep.subr.bf16.mxu0 0
    %642 = vmatpush1.bf16.msra.mxu0 0
    %643 = vmatprep.subr.bf16.mxu0 0
    %644 = vmatpush1.bf16.msra.mxu0 0
    %645 = vmatprep.mubr.bf16.mxu0 0
    %646 = vmatmul.mubr.bf16.gmra.mrb[0].mxu0 %v611
    %v647 = vpop.f32.mrb[0].mxu0
    %v648 = vadd.f32 0.0, %v647
    %v649 = vpop.f32.mrb[0].mxu0
    %v650 = vpop.f32.mrb[0].mxu0
    %v651 = vpop.f32.mrb[0].mxu0
    %652 = vdwg.mxu0
    %v653 = vadd.f32 %v607, %v648
    %v654 = vxor.u32 %v653, 2147483648
    %v655 = vmul.f32 %v654, 1.442695
    %v656 = vpow.pop %v655
    %v657 = vadd.f32 %v656, 1.0
    %v658 = vrcp.pop %v657
    %v659 = vmul.f32 1.0, %v658
    %v660 = vtanh.pop %v653
    %v661 = vmul.f32 %v659, %v578
    %663 = vrot.lane.b32.xlu0 %v660, 64
    %v664 = vpop.permute.xlu0 %663
    %v666 = vmul.f32 %v659, %v664
    %668 = vrot.lane.b32.xlu0 %v666, 32
    %v669 = vpop.permute.xlu0 %668
    %v671 = vadd.f32 %v661, %v669
    %v672 = vtanh.pop %v671
    %674 = vrot.lane.b32.xlu0 %v672, 64
    %v675 = vpop.permute.xlu0 %674
    %v677 = vmul.f32 %v659, %v675
    %v678 = vpack.c.bf16 %v677, %v677
    %v681 = vunpack.c.l.s4 1966171168
    %v682 = vunpack.c.0.s8 %v681
    %v683 = vlaneseq
    %v684 = vshrl.u32 %v683, 7
    %v685 = vsub.s32 %v682, %v684
    %v686 = vrot.slane %v678, %v685
    %v688 = vunpack.c.l.s4 1966171168
    %v689 = vunpack.c.0.s8 %v688
    %v690 = vlaneseq
    %v691 = vshrl.u32 %v690, 7
    %v692 = vsub.s32 %v689, %v691
    %v693 = vrot.slane %v686, %v692
    %694 = vrot.lane.b32.xlu0 %v693, 32
    %v695 = vpop.permute.xlu0 %694
    %s697 = scalar_lea.vmem [#allocation3], 4
    %698 = vst.msk [vmem:[%s697] sm:$0x1] %vm325, %v695
    %s699 = scalar_lea.vmem [#allocation2], 10
    %v700 = vld [vmem:[%s699] sm:$0x3]
    %701 = vrot.lane.b32.xlu0 %v678, 32
    %v702 = vpop.permute.xlu0 %701
    %v704 = vsel %vm117, %v702, 0
    %706 = vmatprep.subr.bf16.mxu0 0
    %707 = vmatpush1.bf16.msra.mxu0 %v230
    %708 = vmatprep.subr.bf16.mxu0 0
    %709 = vmatpush1.bf16.msra.mxu0 %v231
    %710 = vmatprep.subr.bf16.mxu0 0
    %711 = vmatpush1.bf16.msra.mxu0 0
    %712 = vmatprep.subr.bf16.mxu0 0
    %713 = vmatpush1.bf16.msra.mxu0 0
    %714 = vmatprep.subr.bf16.mxu0 0
    %715 = vmatpush1.bf16.msra.mxu0 0
    %716 = vmatprep.subr.bf16.mxu0 0
    %717 = vmatpush1.bf16.msra.mxu0 0
    %718 = vmatprep.subr.bf16.mxu0 0
    %719 = vmatpush1.bf16.msra.mxu0 0
    %720 = vmatprep.subr.bf16.mxu0 0
    %721 = vmatpush1.bf16.msra.mxu0 0
    %722 = vmatprep.subr.bf16.mxu0 0
    %723 = vmatpush1.bf16.msra.mxu0 0
    %724 = vmatprep.subr.bf16.mxu0 0
    %725 = vmatpush1.bf16.msra.mxu0 0
    %726 = vmatprep.subr.bf16.mxu0 0
    %727 = vmatpush1.bf16.msra.mxu0 0
    %728 = vmatprep.subr.bf16.mxu0 0
    %729 = vmatpush1.bf16.msra.mxu0 0
    %730 = vmatprep.subr.bf16.mxu0 0
    %731 = vmatpush1.bf16.msra.mxu0 0
    %732 = vmatprep.subr.bf16.mxu0 0
    %733 = vmatpush1.bf16.msra.mxu0 0
    %734 = vmatprep.subr.bf16.mxu0 0
    %735 = vmatpush1.bf16.msra.mxu0 0
    %736 = vmatprep.subr.bf16.mxu0 0
    %737 = vmatpush1.bf16.msra.mxu0 0
    %738 = vmatprep.mubr.bf16.mxu0 0
    %739 = vmatmul.mubr.bf16.gmra.mrb[0].mxu0 %v704
    %v740 = vpop.f32.mrb[0].mxu0
    %v741 = vadd.f32 0.0, %v740
    %v742 = vpop.f32.mrb[0].mxu0
    %v743 = vpop.f32.mrb[0].mxu0
    %v744 = vpop.f32.mrb[0].mxu0
    %745 = vdwg.mxu0
    %v746 = vadd.f32 %v700, %v741
    %v747 = vxor.u32 %v746, 2147483648
    %v748 = vmul.f32 %v747, 1.442695
    %v749 = vpow.pop %v748
    %v750 = vadd.f32 %v749, 1.0
    %v751 = vrcp.pop %v750
    %v752 = vmul.f32 1.0, %v751
    %v753 = vtanh.pop %v746
    %v754 = vmul.f32 %v752, %v671
    %756 = vrot.lane.b32.xlu0 %v753, 64
    %v757 = vpop.permute.xlu0 %756
    %v759 = vmul.f32 %v752, %v757
    %761 = vrot.lane.b32.xlu0 %v759, 32
    %v762 = vpop.permute.xlu0 %761
    %v764 = vadd.f32 %v754, %v762
    %v765 = vtanh.pop %v764
    %767 = vrot.lane.b32.xlu0 %v765, 64
    %v768 = vpop.permute.xlu0 %767
    %v770 = vmul.f32 %v752, %v768
    %v771 = vpack.c.bf16 %v770, %v770
    %v774 = vunpack.c.l.s4 1966171168
    %v775 = vunpack.c.0.s8 %v774
    %v776 = vlaneseq
    %v777 = vshrl.u32 %v776, 7
    %v778 = vsub.s32 %v775, %v777
    %v779 = vrot.slane %v771, %v778
    %v781 = vunpack.c.l.s4 1966171168
    %v782 = vunpack.c.0.s8 %v781
    %v783 = vlaneseq
    %v784 = vshrl.u32 %v783, 7
    %v785 = vsub.s32 %v782, %v784
    %v786 = vrot.slane %v779, %v785
    %787 = vrot.lane.b32.xlu0 %v786, 32
    %v788 = vpop.permute.xlu0 %787
    %s790 = scalar_lea.vmem [#allocation3], 5
    %791 = vst.msk [vmem:[%s790] sm:$0x1] %vm325, %v788
    %s792 = scalar_lea.vmem [#allocation2], 12
    %v793 = vld [vmem:[%s792] sm:$0x3]
    %794 = vrot.lane.b32.xlu0 %v771, 32
    %v795 = vpop.permute.xlu0 %794
    %v797 = vsel %vm117, %v795, 0
    %799 = vmatprep.subr.bf16.mxu0 0
    %800 = vmatpush1.bf16.msra.mxu0 %v230
    %801 = vmatprep.subr.bf16.mxu0 0
    %802 = vmatpush1.bf16.msra.mxu0 %v231
    %803 = vmatprep.subr.bf16.mxu0 0
    %804 = vmatpush1.bf16.msra.mxu0 0
    %805 = vmatprep.subr.bf16.mxu0 0
    %806 = vmatpush1.bf16.msra.mxu0 0
    %807 = vmatprep.subr.bf16.mxu0 0
    %808 = vmatpush1.bf16.msra.mxu0 0
    %809 = vmatprep.subr.bf16.mxu0 0
    %810 = vmatpush1.bf16.msra.mxu0 0
    %811 = vmatprep.subr.bf16.mxu0 0
    %812 = vmatpush1.bf16.msra.mxu0 0
    %813 = vmatprep.subr.bf16.mxu0 0
    %814 = vmatpush1.bf16.msra.mxu0 0
    %815 = vmatprep.subr.bf16.mxu0 0
    %816 = vmatpush1.bf16.msra.mxu0 0
    %817 = vmatprep.subr.bf16.mxu0 0
    %818 = vmatpush1.bf16.msra.mxu0 0
    %819 = vmatprep.subr.bf16.mxu0 0
    %820 = vmatpush1.bf16.msra.mxu0 0
    %821 = vmatprep.subr.bf16.mxu0 0
    %822 = vmatpush1.bf16.msra.mxu0 0
    %823 = vmatprep.subr.bf16.mxu0 0
    %824 = vmatpush1.bf16.msra.mxu0 0
    %825 = vmatprep.subr.bf16.mxu0 0
    %826 = vmatpush1.bf16.msra.mxu0 0
    %827 = vmatprep.subr.bf16.mxu0 0
    %828 = vmatpush1.bf16.msra.mxu0 0
    %829 = vmatprep.subr.bf16.mxu0 0
    %830 = vmatpush1.bf16.msra.mxu0 0
    %831 = vmatprep.mubr.bf16.mxu0 0
    %832 = vmatmul.mubr.bf16.gmra.mrb[0].mxu0 %v797
    %v833 = vpop.f32.mrb[0].mxu0
    %v834 = vadd.f32 0.0, %v833
    %v835 = vpop.f32.mrb[0].mxu0
    %v836 = vpop.f32.mrb[0].mxu0
    %v837 = vpop.f32.mrb[0].mxu0
    %838 = vdwg.mxu0
    %v839 = vadd.f32 %v793, %v834
    %v840 = vxor.u32 %v839, 2147483648
    %v841 = vmul.f32 %v840, 1.442695
    %v842 = vpow.pop %v841
    %v843 = vadd.f32 %v842, 1.0
    %v844 = vrcp.pop %v843
    %v845 = vmul.f32 1.0, %v844
    %v846 = vtanh.pop %v839
    %v847 = vmul.f32 %v845, %v764
    %849 = vrot.lane.b32.xlu0 %v846, 64
    %v850 = vpop.permute.xlu0 %849
    %v852 = vmul.f32 %v845, %v850
    %854 = vrot.lane.b32.xlu0 %v852, 32
    %v855 = vpop.permute.xlu0 %854
    %v857 = vadd.f32 %v847, %v855
    %v858 = vtanh.pop %v857
    %860 = vrot.lane.b32.xlu0 %v858, 64
    %v861 = vpop.permute.xlu0 %860
    %v863 = vmul.f32 %v845, %v861
    %v864 = vpack.c.bf16 %v863, %v863
    %v867 = vunpack.c.l.s4 1966171168
    %v868 = vunpack.c.0.s8 %v867
    %v869 = vlaneseq
    %v870 = vshrl.u32 %v869, 7
    %v871 = vsub.s32 %v868, %v870
    %v872 = vrot.slane %v864, %v871
    %v874 = vunpack.c.l.s4 1966171168
    %v875 = vunpack.c.0.s8 %v874
    %v876 = vlaneseq
    %v877 = vshrl.u32 %v876, 7
    %v878 = vsub.s32 %v875, %v877
    %v879 = vrot.slane %v872, %v878
    %880 = vrot.lane.b32.xlu0 %v879, 32
    %v881 = vpop.permute.xlu0 %880
    %s883 = scalar_lea.vmem [#allocation3], 6
    %884 = vst.msk [vmem:[%s883] sm:$0x1] %vm325, %v881
    %s885 = scalar_lea.vmem [#allocation2], 14
    %v886 = vld [vmem:[%s885] sm:$0x3]
    %887 = vrot.lane.b32.xlu0 %v864, 32
    %v888 = vpop.permute.xlu0 %887
    %v890 = vsel %vm117, %v888, 0
    %892 = vmatprep.subr.bf16.mxu0 0
    %893 = vmatpush1.bf16.msra.mxu0 %v230
    %894 = vmatprep.subr.bf16.mxu0 0
    %895 = vmatpush1.bf16.msra.mxu0 %v231
    %896 = vmatprep.subr.bf16.mxu0 0
    %897 = vmatpush1.bf16.msra.mxu0 0
    %898 = vmatprep.subr.bf16.mxu0 0
    %899 = vmatpush1.bf16.msra.mxu0 0
    %900 = vmatprep.subr.bf16.mxu0 0
    %901 = vmatpush1.bf16.msra.mxu0 0
    %902 = vmatprep.subr.bf16.mxu0 0
    %903 = vmatpush1.bf16.msra.mxu0 0
    %904 = vmatprep.subr.bf16.mxu0 0
    %905 = vmatpush1.bf16.msra.mxu0 0
    %906 = vmatprep.subr.bf16.mxu0 0
    %907 = vmatpush1.bf16.msra.mxu0 0
    %908 = vmatprep.subr.bf16.mxu0 0
    %909 = vmatpush1.bf16.msra.mxu0 0
    %910 = vmatprep.subr.bf16.mxu0 0
    %911 = vmatpush1.bf16.msra.mxu0 0
    %912 = vmatprep.subr.bf16.mxu0 0
    %913 = vmatpush1.bf16.msra.mxu0 0
    %914 = vmatprep.subr.bf16.mxu0 0
    %915 = vmatpush1.bf16.msra.mxu0 0
    %916 = vmatprep.subr.bf16.mxu0 0
    %917 = vmatpush1.bf16.msra.mxu0 0
    %918 = vmatprep.subr.bf16.mxu0 0
    %919 = vmatpush1.bf16.msra.mxu0 0
    %920 = vmatprep.subr.bf16.mxu0 0
    %921 = vmatpush1.bf16.msra.mxu0 0
    %922 = vmatprep.subr.bf16.mxu0 0
    %923 = vmatpush1.bf16.msra.mxu0 0
    %924 = vmatprep.mubr.bf16.mxu0 0
    %925 = vmatmul.mubr.bf16.gmra.mrb[0].mxu0 %v890
    %v926 = vpop.f32.mrb[0].mxu0
    %v927 = vadd.f32 0.0, %v926
    %v928 = vpop.f32.mrb[0].mxu0
    %v929 = vpop.f32.mrb[0].mxu0
    %v930 = vpop.f32.mrb[0].mxu0
    %931 = vdwg.mxu0
    %v932 = vadd.f32 %v886, %v927
    %v933 = vxor.u32 %v932, 2147483648
    %v934 = vmul.f32 %v933, 1.442695
    %v935 = vpow.pop %v934
    %v936 = vadd.f32 %v935, 1.0
    %v937 = vrcp.pop %v936
    %v938 = vmul.f32 1.0, %v937
    %v939 = vtanh.pop %v932
    %v940 = vmul.f32 %v938, %v857
    %942 = vrot.lane.b32.xlu0 %v939, 64
    %v943 = vpop.permute.xlu0 %942
    %v945 = vmul.f32 %v938, %v943
    %947 = vrot.lane.b32.xlu0 %v945, 32
    %v948 = vpop.permute.xlu0 %947
    %v950 = vadd.f32 %v940, %v948
    %v951 = vtanh.pop %v950
    %953 = vrot.lane.b32.xlu0 %v951, 64
    %v954 = vpop.permute.xlu0 %953
    %v956 = vmul.f32 %v938, %v954
    %v957 = vpack.c.bf16 %v956, %v956
    %v960 = vunpack.c.l.s4 1966171168
    %v961 = vunpack.c.0.s8 %v960
    %v962 = vlaneseq
    %v963 = vshrl.u32 %v962, 7
    %v964 = vsub.s32 %v961, %v963
    %v965 = vrot.slane %v957, %v964
    %v967 = vunpack.c.l.s4 1966171168
    %v968 = vunpack.c.0.s8 %v967
    %v969 = vlaneseq
    %v970 = vshrl.u32 %v969, 7
    %v971 = vsub.s32 %v968, %v970
    %v972 = vrot.slane %v965, %v971
    %973 = vrot.lane.b32.xlu0 %v972, 32
    %v974 = vpop.permute.xlu0 %973
    %s976 = scalar_lea.vmem [#allocation3], 7
    %977 = vst.msk [vmem:[%s976] sm:$0x1] %vm325, %v974
    %979 = vrot.lane.b32.xlu0 %v956, 32
    %v980 = vpop.permute.xlu0 %979
    %vm982 = vcmask 254976
    %983 = vst.msk [vmem:[%s5] sm:$0x3] %vm982, %v980
    %985 = vrot.lane.b32.xlu0 %v950, 96
    %v986 = vpop.permute.xlu0 %985
    %988 = vst.msk [vmem:[%s6] sm:$0x3] %vm982, %v986
    // Predicated region
    $region22: #{ast2class_forward.4} parent=1 // pred_check
      _
    $region23: #{ast2class_forward.4} parent=1 // pred_check_branch
      %990 = sbr.rel (0) target = $region25
    $region24: #{ast2class_forward.4} parent=1 // pred_region
      %s992 = ssub.s32 128, 128
      %993 = vsyncadd [#allocation4], %s992
      %s994 = sshll.u32 [#allocation3], 4
      %s995 = int_to_ptr.vmem [resolvable:$true] %s994
      %1000 = dma.vmem_to_hbm [thread:$0]  %s995, 128, %s4, [#allocation4], 16, 16, 1
    $region25: #{ast2class_forward.4} parent=1 // pred_fallthru
      _
    // Predicated region
    $region26: #{ast2class_forward.4} parent=1 // pred_check
      _
    $region27: #{ast2class_forward.4} parent=1 // pred_check_branch
      %1002 = sbr.rel (0) target = $region29
    $region28: #{ast2class_forward.4} parent=1 // pred_region
      _
    $region29: #{ast2class_forward.4} parent=1 // pred_fallthru
      _
    // Predicated region
    $region30: #{ast2class_forward.4} parent=1 // pred_check
      _
    $region31: #{ast2class_forward.4} parent=1 // pred_check_branch
      %1004 = sbr.rel (0) target = $region33
    $region32: #{ast2class_forward.4} parent=1 // pred_region
      _
    $region33: #{ast2class_forward.4} parent=1 // pred_fallthru
      _
    // Predicated region
    $region34: #{ast2class_forward.4} parent=1 // pred_check
      _
    $region35: #{ast2class_forward.4} parent=1 // pred_check_branch
      %1006 = sbr.rel (0) target = $region37
    $region36: #{ast2class_forward.4} parent=1 // pred_region
      %1007 = dma.done [#allocation4], 128
    $region37: #{ast2class_forward.4} parent=1 // pred_fallthru
      _
    // Predicated region
    $region38: #{ast2class_forward.4} parent=1 // pred_check
      _
    $region39: #{ast2class_forward.4} parent=1 // pred_check_branch
      %1009 = sbr.rel (0) target = $region41
    $region40: #{ast2class_forward.4} parent=1 // pred_region
      _
    $region41: #{ast2class_forward.4} parent=1 // pred_fallthru
      _
    // Predicated region
    $region42: #{ast2class_forward.4} parent=1 // pred_check
      _
    $region43: #{ast2class_forward.4} parent=1 // pred_check_branch
      %1011 = sbr.rel (0) target = $region45
    $region44: #{ast2class_forward.4} parent=1 // pred_region
      _
    $region45: #{ast2class_forward.4} parent=1 // pred_fallthru
      _
    %1012 = vsyncpa [#allocation4], 1

// kernel: ast2class_forward.3
$region0: #{ast2class_forward.3}
  #allocation0 [shape = 'u32[]', space=smem, size = 0x4, offset = 0x4, fixed_abs, tag = 'smem constant byte address 0x4 - core index']
  #allocation1 [shape = 'u32[144,128]{1,0:T(1,128)}', space=vmem, size = 0x12000, scoped, tag = 'internal scratch']
  #allocation2 [shape = 'f32[8,2,128]{2,1,0:T(2,128)}', space=vmem, size = 0x2000, scoped, tag = 'scratch operand']
  %s0 = inlined_call_operand.vmem [shape: bf16[8,2,48], index: 0, kind: input, shape index: {}]
  %s1 = inlined_call_operand.vmem [shape: bf16[48,128], index: 1, kind: input, shape index: {}]
  %s2 = inlined_call_operand.vmem [shape: bf16[32,128], index: 2, kind: input, shape index: {}]
  %s3 = inlined_call_operand.vmem [shape: f32[1,128], index: 3, kind: input, shape index: {}]
  %s4 = inlined_call_operand.vmem [shape: bf16[8,2,32], index: 4, kind: output, shape index: {0}]
  %s5 = inlined_call_operand.vmem [shape: f32[2,32], index: 5, kind: output, shape index: {1}]
  %s6 = inlined_call_operand.vmem [shape: f32[2,32], index: 6, kind: output, shape index: {2}]
  %7 = xla_tuple %s4, %s5, %s6
  %s8 = sld [smem:[#allocation0]]
  $region46: #{ast2class_forward.3} parent=0
    _
  %s10 = ssub.s32 1, %s8
  %s11 = scalar_select 0, %s10, %s8
  // Predicated region
  $region2: #{ast2class_forward.3} parent=0 // pred_check
    _
  $region3: #{ast2class_forward.3} parent=0 // pred_check_branch
    %13 = sbr.rel (0) target = $region5
  $region4: #{ast2class_forward.3} parent=0 // pred_region
    _
  $region5: #{ast2class_forward.3} parent=0 // pred_fallthru
    _
  // Predicated region
  $region6: #{ast2class_forward.3} parent=0 // pred_check
    _
  $region7: #{ast2class_forward.3} parent=0 // pred_check_branch
    %15 = sbr.rel (0) target = $region9
  $region8: #{ast2class_forward.3} parent=0 // pred_region
    _
  $region9: #{ast2class_forward.3} parent=0 // pred_fallthru
    _
  // Predicated region
  $region10: #{ast2class_forward.3} parent=0 // pred_check
    _
  $region11: #{ast2class_forward.3} parent=0 // pred_check_branch
    %17 = sbr.rel (0) target = $region13
  $region12: #{ast2class_forward.3} parent=0 // pred_region
    _
  $region13: #{ast2class_forward.3} parent=0 // pred_fallthru
    _
  // Predicated region
  $region14: #{ast2class_forward.3} parent=0 // pred_check
    _
  $region15: #{ast2class_forward.3} parent=0 // pred_check_branch
    %19 = sbr.rel (0) target = $region17
  $region16: #{ast2class_forward.3} parent=0 // pred_region
    _
  $region17: #{ast2class_forward.3} parent=0 // pred_fallthru
    _
  %p21 = scmp.eq.s32.totalorder 0, 0
  // Predicated region
  $region18: #{ast2class_forward.3} parent=0 // pred_check
    %p22 = pneg %p21
  $region19: #{ast2class_forward.3} parent=0 // pred_check_branch
    %24 = sbr.rel (%p22) target = $region21
  $region20: #{ast2class_forward.3} parent=0 // pred_region
    %vm25 = vcmask 254976
    %26 = vst.msk [vmem:[%s5] sm:$0x3] %vm25, 0.0
    %27 = vst.msk [vmem:[%s6] sm:$0x3] %vm25, 0.0
  $region21: #{ast2class_forward.3} parent=0 // pred_fallthru
    _
  %v28 = vld [vmem:[%s0] sm:$0x1]
  %v29 = vld [vmem:[%s0 + $0x1] sm:$0x1]
  %v30 = vld [vmem:[%s0 + $0x2] sm:$0x1]
  %v31 = vld [vmem:[%s0 + $0x3] sm:$0x1]
  %v32 = vld [vmem:[%s0 + $0x4] sm:$0x1]
  %v33 = vld [vmem:[%s0 + $0x5] sm:$0x1]
  %v34 = vld [vmem:[%s0 + $0x6] sm:$0x1]
  %v35 = vld [vmem:[%s0 + $0x7] sm:$0x1]
  %v36 = vld [vmem:[%s1] sm:$0xf]
  %v37 = vld [vmem:[%s1 + $0x4] sm:$0xf]
  %v38 = vld [vmem:[%s1 + $0x8] sm:$0xf]
  %v39 = vld [vmem:[%s1 + $0xc] sm:$0xf]
  %v40 = vld [vmem:[%s1 + $0x10] sm:$0xf]
  %v41 = vld [vmem:[%s1 + $0x14] sm:$0xf]
  %v42 = vld [vmem:[%s3] sm:$0x1]
  %v44 = vlaneseq
  %v45 = vshrl.u32 %v44, 7
  %v46 = vsub.s32 0, %v45
  %v47 = vrot.slane %v42, %v46
  %v57 = vcombine.low %v28, %v29
  %v58 = vcombine.low %v30, %v31
  %v59 = vcombine.low %v32, %v33
  %v60 = vcombine.low %v34, %v35
  %v62 = vunpack.c.l.s4 1966171168
  %v63 = vunpack.c.0.s8 %v62
  %v64 = vlaneseq
  %v65 = vshrl.u32 %v64, 7
  %v66 = vsub.s32 %v63, %v65
  %v67 = vrot.slane %v57, %v66
  %v69 = vunpack.c.l.s4 1966171168
  %v70 = vunpack.c.0.s8 %v69
  %v71 = vlaneseq
  %v72 = vshrl.u32 %v71, 7
  %v73 = vsub.s32 %v70, %v72
  %v74 = vrot.slane %v58, %v73
  %v76 = vunpack.c.l.s4 1966171168
  %v77 = vunpack.c.0.s8 %v76
  %v78 = vlaneseq
  %v79 = vshrl.u32 %v78, 7
  %v80 = vsub.s32 %v77, %v79
  %v81 = vrot.slane %v59, %v80
  %v83 = vunpack.c.l.s4 1966171168
  %v84 = vunpack.c.0.s8 %v83
  %v85 = vlaneseq
  %v86 = vshrl.u32 %v85, 7
  %v87 = vsub.s32 %v84, %v86
  %v88 = vrot.slane %v60, %v87
  %v89 = vcombine.low %v67, %v74
  %v90 = vcombine.low %v81, %v88
  %v92 = vunpack.c.l.s4 1966171168
  %v93 = vunpack.c.0.s8 %v92
  %v94 = vlaneseq
  %v95 = vshrl.u32 %v94, 7
  %v96 = vsub.s32 %v93, %v95
  %v97 = vrot.slane %v89, %v96
  %v99 = vunpack.c.l.s4 1966171168
  %v100 = vunpack.c.0.s8 %v99
  %v101 = vlaneseq
  %v102 = vshrl.u32 %v101, 7
  %v103 = vsub.s32 %v100, %v102
  %v104 = vrot.slane %v90, %v103
  %v105 = vcombine.low %v97, %v104
  %v112 = vunpack.c.l.b16 %v36
  %v113 = vunpack.c.l.b16 %v37
  %v114 = vunpack.c.l.b16 %v38
  %v115 = vunpack.c.l.b16 %v39
  %v116 = vunpack.c.l.b16 %v40
  %v117 = vunpack.c.l.b16 %v41
  %v118 = vpack.c.b16 %v113, %v112
  %v119 = vpack.c.b16 %v115, %v114
  %v120 = vpack.c.b16 %v117, %v116
  %vm124 = vcmask 392192
  %v126 = vsel %vm124, %v105, 0
  %128 = vmatprep.subr.bf16.mxu0 0
  %129 = vmatpush1.bf16.msra.mxu0 %v118
  %130 = vmatprep.subr.bf16.mxu0 0
  %131 = vmatpush1.bf16.msra.mxu0 %v119
  %132 = vmatprep.subr.bf16.mxu0 0
  %133 = vmatpush1.bf16.msra.mxu0 %v120
  %134 = vmatprep.subr.bf16.mxu0 0
  %135 = vmatpush1.bf16.msra.mxu0 0
  %136 = vmatprep.subr.bf16.mxu0 0
  %137 = vmatpush1.bf16.msra.mxu0 0
  %138 = vmatprep.subr.bf16.mxu0 0
  %139 = vmatpush1.bf16.msra.mxu0 0
  %140 = vmatprep.subr.bf16.mxu0 0
  %141 = vmatpush1.bf16.msra.mxu0 0
  %142 = vmatprep.subr.bf16.mxu0 0
  %143 = vmatpush1.bf16.msra.mxu0 0
  %144 = vmatprep.subr.bf16.mxu0 0
  %145 = vmatpush1.bf16.msra.mxu0 0
  %146 = vmatprep.subr.bf16.mxu0 0
  %147 = vmatpush1.bf16.msra.mxu0 0
  %148 = vmatprep.subr.bf16.mxu0 0
  %149 = vmatpush1.bf16.msra.mxu0 0
  %150 = vmatprep.subr.bf16.mxu0 0
  %151 = vmatpush1.bf16.msra.mxu0 0
  %152 = vmatprep.subr.bf16.mxu0 0
  %153 = vmatpush1.bf16.msra.mxu0 0
  %154 = vmatprep.subr.bf16.mxu0 0
  %155 = vmatpush1.bf16.msra.mxu0 0
  %156 = vmatprep.subr.bf16.mxu0 0
  %157 = vmatpush1.bf16.msra.mxu0 0
  %158 = vmatprep.subr.bf16.mxu0 0
  %159 = vmatpush1.bf16.msra.mxu0 0
  %160 = vmatprep.mubr.bf16.mxu0 0
  %161 = vmatmul.mubr.bf16.gmra.mrb[0].mxu0 %v126
  %v162 = vpop.f32.mrb[0].mxu0
  %v163 = vadd.f32 %v47, %v162
  %v164 = vpop.f32.mrb[0].mxu0
  %v165 = vpop.f32.mrb[0].mxu0
  %v166 = vadd.f32 %v47, %v165
  %v167 = vpop.f32.mrb[0].mxu0
  %168 = vdwg.mxu0
  %v171 = vcombine.high %v163, %v163
  %v173 = vunpack.c.l.s4 1983009808
  %v174 = vunpack.c.0.s8 %v173
  %v175 = vlaneseq
  %v176 = vshrl.u32 %v175, 7
  %v177 = vsub.s32 %v174, %v176
  %v178 = vrot.slane %v163, %v177
  %v180 = vunpack.c.l.s4 1983009808
  %v181 = vunpack.c.0.s8 %v180
  %v182 = vlaneseq
  %v183 = vshrl.u32 %v182, 7
  %v184 = vsub.s32 %v181, %v183
  %v185 = vrot.slane %v171, %v184
  %v186 = vcombine.high %v178, %v178
  %v187 = vcombine.high %v185, %v185
  %v188 = vcombine.high %v166, %v166
  %v190 = vunpack.c.l.s4 1983009808
  %v191 = vunpack.c.0.s8 %v190
  %v192 = vlaneseq
  %v193 = vshrl.u32 %v192, 7
  %v194 = vsub.s32 %v191, %v193
  %v195 = vrot.slane %v166, %v194
  %v197 = vunpack.c.l.s4 1983009808
  %v198 = vunpack.c.0.s8 %v197
  %v199 = vlaneseq
  %v200 = vshrl.u32 %v199, 7
  %v201 = vsub.s32 %v198, %v200
  %v202 = vrot.slane %v188, %v201
  %v203 = vcombine.high %v195, %v195
  %v204 = vcombine.high %v202, %v202
  %213 = vst [vmem:[#allocation2] sm:$0x3] %v178
  %214 = vst [vmem:[#allocation2 + $0x2] sm:$0x3] %v186
  %215 = vst [vmem:[#allocation2 + $0x4] sm:$0x3] %v185
  %216 = vst [vmem:[#allocation2 + $0x6] sm:$0x3] %v187
  %217 = vst [vmem:[#allocation2 + $0x8] sm:$0x3] %v195
  %218 = vst [vmem:[#allocation2 + $0xa] sm:$0x3] %v203
  %219 = vst [vmem:[#allocation2 + $0xc] sm:$0x3] %v202
  %220 = vst [vmem:[#allocation2 + $0xe] sm:$0x3] %v204
  %v221 = vld [vmem:[%s2] sm:$0xf]
  %v222 = vld [vmem:[%s2 + $0x4] sm:$0xf]
  %v223 = vld [vmem:[%s2 + $0x8] sm:$0xf]
  %v224 = vld [vmem:[%s2 + $0xc] sm:$0xf]
  %v225 = vld [vmem:[%s5] sm:$0x3]
  %v226 = vld [vmem:[%s6] sm:$0x3]
  %v227 = vld [vmem:[#allocation2] sm:$0x3]
  %v228 = vpack.c.bf16 %v225, %v225
  %v233 = vunpack.c.l.b16 %v221
  %v234 = vunpack.c.l.b16 %v222
  %v235 = vunpack.c.l.b16 %v223
  %v236 = vunpack.c.l.b16 %v224
  %v237 = vpack.c.b16 %v234, %v233
  %v238 = vpack.c.b16 %v236, %v235
  %vm241 = vcmask 261120
  %v243 = vsel %vm241, %v228, 0
  %245 = vmatprep.subr.bf16.mxu0 0
  %246 = vmatpush1.bf16.msra.mxu0 %v237
  %247 = vmatprep.subr.bf16.mxu0 0
  %248 = vmatpush1.bf16.msra.mxu0 %v238
  %249 = vmatprep.subr.bf16.mxu0 0
  %250 = vmatpush1.bf16.msra.mxu0 0
  %251 = vmatprep.subr.bf16.mxu0 0
  %252 = vmatpush1.bf16.msra.mxu0 0
  %253 = vmatprep.subr.bf16.mxu0 0
  %254 = vmatpush1.bf16.msra.mxu0 0
  %255 = vmatprep.subr.bf16.mxu0 0
  %256 = vmatpush1.bf16.msra.mxu0 0
  %257 = vmatprep.subr.bf16.mxu0 0
  %258 = vmatpush1.bf16.msra.mxu0 0
  %259 = vmatprep.subr.bf16.mxu0 0
  %260 = vmatpush1.bf16.msra.mxu0 0
  %261 = vmatprep.subr.bf16.mxu0 0
  %262 = vmatpush1.bf16.msra.mxu0 0
  %263 = vmatprep.subr.bf16.mxu0 0
  %264 = vmatpush1.bf16.msra.mxu0 0
  %265 = vmatprep.subr.bf16.mxu0 0
  %266 = vmatpush1.bf16.msra.mxu0 0
  %267 = vmatprep.subr.bf16.mxu0 0
  %268 = vmatpush1.bf16.msra.mxu0 0
  %269 = vmatprep.subr.bf16.mxu0 0
  %270 = vmatpush1.bf16.msra.mxu0 0
  %271 = vmatprep.subr.bf16.mxu0 0
  %272 = vmatpush1.bf16.msra.mxu0 0
  %273 = vmatprep.subr.bf16.mxu0 0
  %274 = vmatpush1.bf16.msra.mxu0 0
  %275 = vmatprep.subr.bf16.mxu0 0
  %276 = vmatpush1.bf16.msra.mxu0 0
  %277 = vmatprep.mubr.bf16.mxu0 0
  %278 = vmatmul.mubr.bf16.gmra.mrb[0].mxu0 %v243
  %v279 = vpop.f32.mrb[0].mxu0
  %v280 = vadd.f32 0.0, %v279
  %v281 = vpop.f32.mrb[0].mxu0
  %v282 = vpop.f32.mrb[0].mxu0
  %v283 = vpop.f32.mrb[0].mxu0
  %284 = vdwg.mxu0
  %v285 = vadd.f32 %v227, %v280
  %v286 = vxor.u32 %v285, 2147483648
  %v287 = vmul.f32 %v286, 1.442695
  %v288 = vpow.pop %v287
  %v289 = vadd.f32 %v288, 1.0
  %v290 = vrcp.pop %v289
  %v291 = vmul.f32 1.0, %v290
  %v292 = vtanh.pop %v285
  %294 = vrot.lane.b32.xlu0 %v226, 32
  %v295 = vpop.permute.xlu0 %294
  %v297 = vmul.f32 %v291, %v295
  %299 = vrot.lane.b32.xlu0 %v292, 64
  %v300 = vpop.permute.xlu0 %299
  %v302 = vmul.f32 %v291, %v300
  %304 = vrot.lane.b32.xlu0 %v302, 32
  %v305 = vpop.permute.xlu0 %304
  %v307 = vadd.f32 %v297, %v305
  %v308 = vtanh.pop %v307
  %310 = vrot.lane.b32.xlu0 %v308, 64
  %v311 = vpop.permute.xlu0 %310
  %v313 = vmul.f32 %v291, %v311
  %v314 = vpack.c.bf16 %v313, %v313
  %v317 = vunpack.c.l.s4 1966171168
  %v318 = vunpack.c.0.s8 %v317
  %v319 = vlaneseq
  %v320 = vshrl.u32 %v319, 7
  %v321 = vsub.s32 %v318, %v320
  %v322 = vrot.slane %v314, %v321
  %v324 = vunpack.c.l.s4 1966171168
  %v325 = vunpack.c.0.s8 %v324
  %v326 = vlaneseq
  %v327 = vshrl.u32 %v326, 7
  %v328 = vsub.s32 %v325, %v327
  %v329 = vrot.slane %v322, %v328
  %330 = vrot.lane.b32.xlu0 %v329, 32
  %v331 = vpop.permute.xlu0 %330
  %vm333 = vcmask 253952
  %334 = vst.msk [vmem:[%s4] sm:$0x1] %vm333, %v331
  %s335 = scalar_lea.vmem [#allocation2], 2
  %v336 = vld [vmem:[%s335] sm:$0x3]
  %337 = vrot.lane.b32.xlu0 %v314, 32
  %v338 = vpop.permute.xlu0 %337
  %v340 = vsel %vm241, %v338, 0
  %342 = vmatprep.subr.bf16.mxu0 0
  %343 = vmatpush1.bf16.msra.mxu0 %v237
  %344 = vmatprep.subr.bf16.mxu0 0
  %345 = vmatpush1.bf16.msra.mxu0 %v238
  %346 = vmatprep.subr.bf16.mxu0 0
  %347 = vmatpush1.bf16.msra.mxu0 0
  %348 = vmatprep.subr.bf16.mxu0 0
  %349 = vmatpush1.bf16.msra.mxu0 0
  %350 = vmatprep.subr.bf16.mxu0 0
  %351 = vmatpush1.bf16.msra.mxu0 0
  %352 = vmatprep.subr.bf16.mxu0 0
  %353 = vmatpush1.bf16.msra.mxu0 0
  %354 = vmatprep.subr.bf16.mxu0 0
  %355 = vmatpush1.bf16.msra.mxu0 0
  %356 = vmatprep.subr.bf16.mxu0 0
  %357 = vmatpush1.bf16.msra.mxu0 0
  %358 = vmatprep.subr.bf16.mxu0 0
  %359 = vmatpush1.bf16.msra.mxu0 0
  %360 = vmatprep.subr.bf16.mxu0 0
  %361 = vmatpush1.bf16.msra.mxu0 0
  %362 = vmatprep.subr.bf16.mxu0 0
  %363 = vmatpush1.bf16.msra.mxu0 0
  %364 = vmatprep.subr.bf16.mxu0 0
  %365 = vmatpush1.bf16.msra.mxu0 0
  %366 = vmatprep.subr.bf16.mxu0 0
  %367 = vmatpush1.bf16.msra.mxu0 0
  %368 = vmatprep.subr.bf16.mxu0 0
  %369 = vmatpush1.bf16.msra.mxu0 0
  %370 = vmatprep.subr.bf16.mxu0 0
  %371 = vmatpush1.bf16.msra.mxu0 0
  %372 = vmatprep.subr.bf16.mxu0 0
  %373 = vmatpush1.bf16.msra.mxu0 0
  %374 = vmatprep.mubr.bf16.mxu0 0
  %375 = vmatmul.mubr.bf16.gmra.mrb[0].mxu0 %v340
  %v376 = vpop.f32.mrb[0].mxu0
  %v377 = vadd.f32 0.0, %v376
  %v378 = vpop.f32.mrb[0].mxu0
  %v379 = vpop.f32.mrb[0].mxu0
  %v380 = vpop.f32.mrb[0].mxu0
  %381 = vdwg.mxu0
  %v382 = vadd.f32 %v336, %v377
  %v383 = vxor.u32 %v382, 2147483648
  %v384 = vmul.f32 %v383, 1.442695
  %v385 = vpow.pop %v384
  %v386 = vadd.f32 %v385, 1.0
  %v387 = vrcp.pop %v386
  %v388 = vmul.f32 1.0, %v387
  %v389 = vtanh.pop %v382
  %v390 = vmul.f32 %v388, %v307
  %392 = vrot.lane.b32.xlu0 %v389, 64
  %v393 = vpop.permute.xlu0 %392
  %v395 = vmul.f32 %v388, %v393
  %397 = vrot.lane.b32.xlu0 %v395, 32
  %v398 = vpop.permute.xlu0 %397
  %v400 = vadd.f32 %v390, %v398
  %v401 = vtanh.pop %v400
  %403 = vrot.lane.b32.xlu0 %v401, 64
  %v404 = vpop.permute.xlu0 %403
  %v406 = vmul.f32 %v388, %v404
  %v407 = vpack.c.bf16 %v406, %v406
  %v410 = vunpack.c.l.s4 1966171168
  %v411 = vunpack.c.0.s8 %v410
  %v412 = vlaneseq
  %v413 = vshrl.u32 %v412, 7
  %v414 = vsub.s32 %v411, %v413
  %v415 = vrot.slane %v407, %v414
  %v417 = vunpack.c.l.s4 1966171168
  %v418 = vunpack.c.0.s8 %v417
  %v419 = vlaneseq
  %v420 = vshrl.u32 %v419, 7
  %v421 = vsub.s32 %v418, %v420
  %v422 = vrot.slane %v415, %v421
  %423 = vrot.lane.b32.xlu0 %v422, 32
  %v424 = vpop.permute.xlu0 %423
  %s426 = scalar_lea.vmem %s4, 1
  %427 = vst.msk [vmem:[%s426] sm:$0x1] %vm333, %v424
  %s428 = scalar_lea.vmem [#allocation2], 4
  %v429 = vld [vmem:[%s428] sm:$0x3]
  %430 = vrot.lane.b32.xlu0 %v407, 32
  %v431 = vpop.permute.xlu0 %430
  %v433 = vsel %vm241, %v431, 0
  %435 = vmatprep.subr.bf16.mxu0 0
  %436 = vmatpush1.bf16.msra.mxu0 %v237
  %437 = vmatprep.subr.bf16.mxu0 0
  %438 = vmatpush1.bf16.msra.mxu0 %v238
  %439 = vmatprep.subr.bf16.mxu0 0
  %440 = vmatpush1.bf16.msra.mxu0 0
  %441 = vmatprep.subr.bf16.mxu0 0
  %442 = vmatpush1.bf16.msra.mxu0 0
  %443 = vmatprep.subr.bf16.mxu0 0
  %444 = vmatpush1.bf16.msra.mxu0 0
  %445 = vmatprep.subr.bf16.mxu0 0
  %446 = vmatpush1.bf16.msra.mxu0 0
  %447 = vmatprep.subr.bf16.mxu0 0
  %448 = vmatpush1.bf16.msra.mxu0 0
  %449 = vmatprep.subr.bf16.mxu0 0
  %450 = vmatpush1.bf16.msra.mxu0 0
  %451 = vmatprep.subr.bf16.mxu0 0
  %452 = vmatpush1.bf16.msra.mxu0 0
  %453 = vmatprep.subr.bf16.mxu0 0
  %454 = vmatpush1.bf16.msra.mxu0 0
  %455 = vmatprep.subr.bf16.mxu0 0
  %456 = vmatpush1.bf16.msra.mxu0 0
  %457 = vmatprep.subr.bf16.mxu0 0
  %458 = vmatpush1.bf16.msra.mxu0 0
  %459 = vmatprep.subr.bf16.mxu0 0
  %460 = vmatpush1.bf16.msra.mxu0 0
  %461 = vmatprep.subr.bf16.mxu0 0
  %462 = vmatpush1.bf16.msra.mxu0 0
  %463 = vmatprep.subr.bf16.mxu0 0
  %464 = vmatpush1.bf16.msra.mxu0 0
  %465 = vmatprep.subr.bf16.mxu0 0
  %466 = vmatpush1.bf16.msra.mxu0 0
  %467 = vmatprep.mubr.bf16.mxu0 0
  %468 = vmatmul.mubr.bf16.gmra.mrb[0].mxu0 %v433
  %v469 = vpop.f32.mrb[0].mxu0
  %v470 = vadd.f32 0.0, %v469
  %v471 = vpop.f32.mrb[0].mxu0
  %v472 = vpop.f32.mrb[0].mxu0
  %v473 = vpop.f32.mrb[0].mxu0
  %474 = vdwg.mxu0
  %v475 = vadd.f32 %v429, %v470
  %v476 = vxor.u32 %v475, 2147483648
  %v477 = vmul.f32 %v476, 1.442695
  %v478 = vpow.pop %v477
  %v479 = vadd.f32 %v478, 1.0
  %v480 = vrcp.pop %v479
  %v481 = vmul.f32 1.0, %v480
  %v482 = vtanh.pop %v475
  %v483 = vmul.f32 %v481, %v400
  %485 = vrot.lane.b32.xlu0 %v482, 64
  %v486 = vpop.permute.xlu0 %485
  %v488 = vmul.f32 %v481, %v486
  %490 = vrot.lane.b32.xlu0 %v488, 32
  %v491 = vpop.permute.xlu0 %490
  %v493 = vadd.f32 %v483, %v491
  %v494 = vtanh.pop %v493
  %496 = vrot.lane.b32.xlu0 %v494, 64
  %v497 = vpop.permute.xlu0 %496
  %v499 = vmul.f32 %v481, %v497
  %v500 = vpack.c.bf16 %v499, %v499
  %v503 = vunpack.c.l.s4 1966171168
  %v504 = vunpack.c.0.s8 %v503
  %v505 = vlaneseq
  %v506 = vshrl.u32 %v505, 7
  %v507 = vsub.s32 %v504, %v506
  %v508 = vrot.slane %v500, %v507
  %v510 = vunpack.c.l.s4 1966171168
  %v511 = vunpack.c.0.s8 %v510
  %v512 = vlaneseq
  %v513 = vshrl.u32 %v512, 7
  %v514 = vsub.s32 %v511, %v513
  %v515 = vrot.slane %v508, %v514
  %516 = vrot.lane.b32.xlu0 %v515, 32
  %v517 = vpop.permute.xlu0 %516
  %s519 = scalar_lea.vmem %s4, 2
  %520 = vst.msk [vmem:[%s519] sm:$0x1] %vm333, %v517
  %s521 = scalar_lea.vmem [#allocation2], 6
  %v522 = vld [vmem:[%s521] sm:$0x3]
  %523 = vrot.lane.b32.xlu0 %v500, 32
  %v524 = vpop.permute.xlu0 %523
  %v526 = vsel %vm241, %v524, 0
  %528 = vmatprep.subr.bf16.mxu0 0
  %529 = vmatpush1.bf16.msra.mxu0 %v237
  %530 = vmatprep.subr.bf16.mxu0 0
  %531 = vmatpush1.bf16.msra.mxu0 %v238
  %532 = vmatprep.subr.bf16.mxu0 0
  %533 = vmatpush1.bf16.msra.mxu0 0
  %534 = vmatprep.subr.bf16.mxu0 0
  %535 = vmatpush1.bf16.msra.mxu0 0
  %536 = vmatprep.subr.bf16.mxu0 0
  %537 = vmatpush1.bf16.msra.mxu0 0
  %538 = vmatprep.subr.bf16.mxu0 0
  %539 = vmatpush1.bf16.msra.mxu0 0
  %540 = vmatprep.subr.bf16.mxu0 0
  %541 = vmatpush1.bf16.msra.mxu0 0
  %542 = vmatprep.subr.bf16.mxu0 0
  %543 = vmatpush1.bf16.msra.mxu0 0
  %544 = vmatprep.subr.bf16.mxu0 0
  %545 = vmatpush1.bf16.msra.mxu0 0
  %546 = vmatprep.subr.bf16.mxu0 0
  %547 = vmatpush1.bf16.msra.mxu0 0
  %548 = vmatprep.subr.bf16.mxu0 0
  %549 = vmatpush1.bf16.msra.mxu0 0
  %550 = vmatprep.subr.bf16.mxu0 0
  %551 = vmatpush1.bf16.msra.mxu0 0
  %552 = vmatprep.subr.bf16.mxu0 0
  %553 = vmatpush1.bf16.msra.mxu0 0
  %554 = vmatprep.subr.bf16.mxu0 0
  %555 = vmatpush1.bf16.msra.mxu0 0
  %556 = vmatprep.subr.bf16.mxu0 0
  %557 = vmatpush1.bf16.msra.mxu0 0
  %558 = vmatprep.subr.bf16.mxu0 0
  %559 = vmatpush1.bf16.msra.mxu0 0
  %560 = vmatprep.mubr.bf16.mxu0 0
  %561 = vmatmul.mubr.bf16.gmra.mrb[0].mxu0 %v526
  %v562 = vpop.f32.mrb[0].mxu0
  %v563 = vadd.f32 0.0, %v562
  %v564 = vpop.f32.mrb[0].mxu0
  %v565 = vpop.f32.mrb[0].mxu0
  %v566 = vpop.f32.mrb[0].mxu0
  %567 = vdwg.mxu0
  %v568 = vadd.f32 %v522, %v563
  %v569 = vxor.u32 %v568, 2147483648
  %v570 = vmul.f32 %v569, 1.442695
  %v571 = vpow.pop %v570
  %v572 = vadd.f32 %v571, 1.0
  %v573 = vrcp.pop %v572
  %v574 = vmul.f32 1.0, %v573
  %v575 = vtanh.pop %v568
  %v576 = vmul.f32 %v574, %v493
  %578 = vrot.lane.b32.xlu0 %v575, 64
  %v579 = vpop.permute.xlu0 %578
  %v581 = vmul.f32 %v574, %v579
  %583 = vrot.lane.b32.xlu0 %v581, 32
  %v584 = vpop.permute.xlu0 %583
  %v586 = vadd.f32 %v576, %v584
  %v587 = vtanh.pop %v586
  %589 = vrot.lane.b32.xlu0 %v587, 64
  %v590 = vpop.permute.xlu0 %589
  %v592 = vmul.f32 %v574, %v590
  %v593 = vpack.c.bf16 %v592, %v592
  %v596 = vunpack.c.l.s4 1966171168
  %v597 = vunpack.c.0.s8 %v596
  %v598 = vlaneseq
  %v599 = vshrl.u32 %v598, 7
  %v600 = vsub.s32 %v597, %v599
  %v601 = vrot.slane %v593, %v600
  %v603 = vunpack.c.l.s4 1966171168
  %v604 = vunpack.c.0.s8 %v603
  %v605 = vlaneseq
  %v606 = vshrl.u32 %v605, 7
  %v607 = vsub.s32 %v604, %v606
  %v608 = vrot.slane %v601, %v607
  %609 = vrot.lane.b32.xlu0 %v608, 32
  %v610 = vpop.permute.xlu0 %609
  %s612 = scalar_lea.vmem %s4, 3
  %613 = vst.msk [vmem:[%s612] sm:$0x1] %vm333, %v610
  %s614 = scalar_lea.vmem [#allocation2], 8
  %v615 = vld [vmem:[%s614] sm:$0x3]
  %616 = vrot.lane.b32.xlu0 %v593, 32
  %v617 = vpop.permute.xlu0 %616
  %v619 = vsel %vm241, %v617, 0
  %621 = vmatprep.subr.bf16.mxu0 0
  %622 = vmatpush1.bf16.msra.mxu0 %v237
  %623 = vmatprep.subr.bf16.mxu0 0
  %624 = vmatpush1.bf16.msra.mxu0 %v238
  %625 = vmatprep.subr.bf16.mxu0 0
  %626 = vmatpush1.bf16.msra.mxu0 0
  %627 = vmatprep.subr.bf16.mxu0 0
  %628 = vmatpush1.bf16.msra.mxu0 0
  %629 = vmatprep.subr.bf16.mxu0 0
  %630 = vmatpush1.bf16.msra.mxu0 0
  %631 = vmatprep.subr.bf16.mxu0 0
  %632 = vmatpush1.bf16.msra.mxu0 0
  %633 = vmatprep.subr.bf16.mxu0 0
  %634 = vmatpush1.bf16.msra.mxu0 0
  %635 = vmatprep.subr.bf16.mxu0 0
  %636 = vmatpush1.bf16.msra.mxu0 0
  %637 = vmatprep.subr.bf16.mxu0 0
  %638 = vmatpush1.bf16.msra.mxu0 0
  %639 = vmatprep.subr.bf16.mxu0 0
  %640 = vmatpush1.bf16.msra.mxu0 0
  %641 = vmatprep.subr.bf16.mxu0 0
  %642 = vmatpush1.bf16.msra.mxu0 0
  %643 = vmatprep.subr.bf16.mxu0 0
  %644 = vmatpush1.bf16.msra.mxu0 0
  %645 = vmatprep.subr.bf16.mxu0 0
  %646 = vmatpush1.bf16.msra.mxu0 0
  %647 = vmatprep.subr.bf16.mxu0 0
  %648 = vmatpush1.bf16.msra.mxu0 0
  %649 = vmatprep.subr.bf16.mxu0 0
  %650 = vmatpush1.bf16.msra.mxu0 0
  %651 = vmatprep.subr.bf16.mxu0 0
  %652 = vmatpush1.bf16.msra.mxu0 0
  %653 = vmatprep.mubr.bf16.mxu0 0
  %654 = vmatmul.mubr.bf16.gmra.mrb[0].mxu0 %v619
  %v655 = vpop.f32.mrb[0].mxu0
  %v656 = vadd.f32 0.0, %v655
  %v657 = vpop.f32.mrb[0].mxu0
  %v658 = vpop.f32.mrb[0].mxu0
  %v659 = vpop.f32.mrb[0].mxu0
  %660 = vdwg.mxu0
  %v661 = vadd.f32 %v615, %v656
  %v662 = vxor.u32 %v661, 2147483648
  %v663 = vmul.f32 %v662, 1.442695
  %v664 = vpow.pop %v663
  %v665 = vadd.f32 %v664, 1.0
  %v666 = vrcp.pop %v665
  %v667 = vmul.f32 1.0, %v666
  %v668 = vtanh.pop %v661
  %v669 = vmul.f32 %v667, %v586
  %671 = vrot.lane.b32.xlu0 %v668, 64
  %v672 = vpop.permute.xlu0 %671
  %v674 = vmul.f32 %v667, %v672
  %676 = vrot.lane.b32.xlu0 %v674, 32
  %v677 = vpop.permute.xlu0 %676
  %v679 = vadd.f32 %v669, %v677
  %v680 = vtanh.pop %v679
  %682 = vrot.lane.b32.xlu0 %v680, 64
  %v683 = vpop.permute.xlu0 %682
  %v685 = vmul.f32 %v667, %v683
  %v686 = vpack.c.bf16 %v685, %v685
  %v689 = vunpack.c.l.s4 1966171168
  %v690 = vunpack.c.0.s8 %v689
  %v691 = vlaneseq
  %v692 = vshrl.u32 %v691, 7
  %v693 = vsub.s32 %v690, %v692
  %v694 = vrot.slane %v686, %v693
  %v696 = vunpack.c.l.s4 1966171168
  %v697 = vunpack.c.0.s8 %v696
  %v698 = vlaneseq
  %v699 = vshrl.u32 %v698, 7
  %v700 = vsub.s32 %v697, %v699
  %v701 = vrot.slane %v694, %v700
  %702 = vrot.lane.b32.xlu0 %v701, 32
  %v703 = vpop.permute.xlu0 %702
  %s705 = scalar_lea.vmem %s4, 4
  %706 = vst.msk [vmem:[%s705] sm:$0x1] %vm333, %v703
  %s707 = scalar_lea.vmem [#allocation2], 10
  %v708 = vld [vmem:[%s707] sm:$0x3]
  %709 = vrot.lane.b32.xlu0 %v686, 32
  %v710 = vpop.permute.xlu0 %709
  %v712 = vsel %vm241, %v710, 0
  %714 = vmatprep.subr.bf16.mxu0 0
  %715 = vmatpush1.bf16.msra.mxu0 %v237
  %716 = vmatprep.subr.bf16.mxu0 0
  %717 = vmatpush1.bf16.msra.mxu0 %v238
  %718 = vmatprep.subr.bf16.mxu0 0
  %719 = vmatpush1.bf16.msra.mxu0 0
  %720 = vmatprep.subr.bf16.mxu0 0
  %721 = vmatpush1.bf16.msra.mxu0 0
  %722 = vmatprep.subr.bf16.mxu0 0
  %723 = vmatpush1.bf16.msra.mxu0 0
  %724 = vmatprep.subr.bf16.mxu0 0
  %725 = vmatpush1.bf16.msra.mxu0 0
  %726 = vmatprep.subr.bf16.mxu0 0
  %727 = vmatpush1.bf16.msra.mxu0 0
  %728 = vmatprep.subr.bf16.mxu0 0
  %729 = vmatpush1.bf16.msra.mxu0 0
  %730 = vmatprep.subr.bf16.mxu0 0
  %731 = vmatpush1.bf16.msra.mxu0 0
  %732 = vmatprep.subr.bf16.mxu0 0
  %733 = vmatpush1.bf16.msra.mxu0 0
  %734 = vmatprep.subr.bf16.mxu0 0
  %735 = vmatpush1.bf16.msra.mxu0 0
  %736 = vmatprep.subr.bf16.mxu0 0
  %737 = vmatpush1.bf16.msra.mxu0 0
  %738 = vmatprep.subr.bf16.mxu0 0
  %739 = vmatpush1.bf16.msra.mxu0 0
  %740 = vmatprep.subr.bf16.mxu0 0
  %741 = vmatpush1.bf16.msra.mxu0 0
  %742 = vmatprep.subr.bf16.mxu0 0
  %743 = vmatpush1.bf16.msra.mxu0 0
  %744 = vmatprep.subr.bf16.mxu0 0
  %745 = vmatpush1.bf16.msra.mxu0 0
  %746 = vmatprep.mubr.bf16.mxu0 0
  %747 = vmatmul.mubr.bf16.gmra.mrb[0].mxu0 %v712
  %v748 = vpop.f32.mrb[0].mxu0
  %v749 = vadd.f32 0.0, %v748
  %v750 = vpop.f32.mrb[0].mxu0
  %v751 = vpop.f32.mrb[0].mxu0
  %v752 = vpop.f32.mrb[0].mxu0
  %753 = vdwg.mxu0
  %v754 = vadd.f32 %v708, %v749
  %v755 = vxor.u32 %v754, 2147483648
  %v756 = vmul.f32 %v755, 1.442695
  %v757 = vpow.pop %v756
  %v758 = vadd.f32 %v757, 1.0
  %v759 = vrcp.pop %v758
  %v760 = vmul.f32 1.0, %v759
  %v761 = vtanh.pop %v754
  %v762 = vmul.f32 %v760, %v679
  %764 = vrot.lane.b32.xlu0 %v761, 64
  %v765 = vpop.permute.xlu0 %764
  %v767 = vmul.f32 %v760, %v765
  %769 = vrot.lane.b32.xlu0 %v767, 32
  %v770 = vpop.permute.xlu0 %769
  %v772 = vadd.f32 %v762, %v770
  %v773 = vtanh.pop %v772
  %775 = vrot.lane.b32.xlu0 %v773, 64
  %v776 = vpop.permute.xlu0 %775
  %v778 = vmul.f32 %v760, %v776
  %v779 = vpack.c.bf16 %v778, %v778
  %v782 = vunpack.c.l.s4 1966171168
  %v783 = vunpack.c.0.s8 %v782
  %v784 = vlaneseq
  %v785 = vshrl.u32 %v784, 7
  %v786 = vsub.s32 %v783, %v785
  %v787 = vrot.slane %v779, %v786
  %v789 = vunpack.c.l.s4 1966171168
  %v790 = vunpack.c.0.s8 %v789
  %v791 = vlaneseq
  %v792 = vshrl.u32 %v791, 7
  %v793 = vsub.s32 %v790, %v792
  %v794 = vrot.slane %v787, %v793
  %795 = vrot.lane.b32.xlu0 %v794, 32
  %v796 = vpop.permute.xlu0 %795
  %s798 = scalar_lea.vmem %s4, 5
  %799 = vst.msk [vmem:[%s798] sm:$0x1] %vm333, %v796
  %s800 = scalar_lea.vmem [#allocation2], 12
  %v801 = vld [vmem:[%s800] sm:$0x3]
  %802 = vrot.lane.b32.xlu0 %v779, 32
  %v803 = vpop.permute.xlu0 %802
  %v805 = vsel %vm241, %v803, 0
  %807 = vmatprep.subr.bf16.mxu0 0
  %808 = vmatpush1.bf16.msra.mxu0 %v237
  %809 = vmatprep.subr.bf16.mxu0 0
  %810 = vmatpush1.bf16.msra.mxu0 %v238
  %811 = vmatprep.subr.bf16.mxu0 0
  %812 = vmatpush1.bf16.msra.mxu0 0
  %813 = vmatprep.subr.bf16.mxu0 0
  %814 = vmatpush1.bf16.msra.mxu0 0
  %815 = vmatprep.subr.bf16.mxu0 0
  %816 = vmatpush1.bf16.msra.mxu0 0
  %817 = vmatprep.subr.bf16.mxu0 0
  %818 = vmatpush1.bf16.msra.mxu0 0
  %819 = vmatprep.subr.bf16.mxu0 0
  %820 = vmatpush1.bf16.msra.mxu0 0
  %821 = vmatprep.subr.bf16.mxu0 0
  %822 = vmatpush1.bf16.msra.mxu0 0
  %823 = vmatprep.subr.bf16.mxu0 0
  %824 = vmatpush1.bf16.msra.mxu0 0
  %825 = vmatprep.subr.bf16.mxu0 0
  %826 = vmatpush1.bf16.msra.mxu0 0
  %827 = vmatprep.subr.bf16.mxu0 0
  %828 = vmatpush1.bf16.msra.mxu0 0
  %829 = vmatprep.subr.bf16.mxu0 0
  %830 = vmatpush1.bf16.msra.mxu0 0
  %831 = vmatprep.subr.bf16.mxu0 0
  %832 = vmatpush1.bf16.msra.mxu0 0
  %833 = vmatprep.subr.bf16.mxu0 0
  %834 = vmatpush1.bf16.msra.mxu0 0
  %835 = vmatprep.subr.bf16.mxu0 0
  %836 = vmatpush1.bf16.msra.mxu0 0
  %837 = vmatprep.subr.bf16.mxu0 0
  %838 = vmatpush1.bf16.msra.mxu0 0
  %839 = vmatprep.mubr.bf16.mxu0 0
  %840 = vmatmul.mubr.bf16.gmra.mrb[0].mxu0 %v805
  %v841 = vpop.f32.mrb[0].mxu0
  %v842 = vadd.f32 0.0, %v841
  %v843 = vpop.f32.mrb[0].mxu0
  %v844 = vpop.f32.mrb[0].mxu0
  %v845 = vpop.f32.mrb[0].mxu0
  %846 = vdwg.mxu0
  %v847 = vadd.f32 %v801, %v842
  %v848 = vxor.u32 %v847, 2147483648
  %v849 = vmul.f32 %v848, 1.442695
  %v850 = vpow.pop %v849
  %v851 = vadd.f32 %v850, 1.0
  %v852 = vrcp.pop %v851
  %v853 = vmul.f32 1.0, %v852
  %v854 = vtanh.pop %v847
  %v855 = vmul.f32 %v853, %v772
  %857 = vrot.lane.b32.xlu0 %v854, 64
  %v858 = vpop.permute.xlu0 %857
  %v860 = vmul.f32 %v853, %v858
  %862 = vrot.lane.b32.xlu0 %v860, 32
  %v863 = vpop.permute.xlu0 %862
  %v865 = vadd.f32 %v855, %v863
  %v866 = vtanh.pop %v865
  %868 = vrot.lane.b32.xlu0 %v866, 64
  %v869 = vpop.permute.xlu0 %868
  %v871 = vmul.f32 %v853, %v869
  %v872 = vpack.c.bf16 %v871, %v871
  %v875 = vunpack.c.l.s4 1966171168
  %v876 = vunpack.c.0.s8 %v875
  %v877 = vlaneseq
  %v878 = vshrl.u32 %v877, 7
  %v879 = vsub.s32 %v876, %v878
  %v880 = vrot.slane %v872, %v879
  %v882 = vunpack.c.l.s4 1966171168
  %v883 = vunpack.c.0.s8 %v882
  %v884 = vlaneseq
  %v885 = vshrl.u32 %v884, 7
  %v886 = vsub.s32 %v883, %v885
  %v887 = vrot.slane %v880, %v886
  %888 = vrot.lane.b32.xlu0 %v887, 32
  %v889 = vpop.permute.xlu0 %888
  %s891 = scalar_lea.vmem %s4, 6
  %892 = vst.msk [vmem:[%s891] sm:$0x1] %vm333, %v889
  %s893 = scalar_lea.vmem [#allocation2], 14
  %v894 = vld [vmem:[%s893] sm:$0x3]
  %895 = vrot.lane.b32.xlu0 %v872, 32
  %v896 = vpop.permute.xlu0 %895
  %v898 = vsel %vm241, %v896, 0
  %900 = vmatprep.subr.bf16.mxu0 0
  %901 = vmatpush1.bf16.msra.mxu0 %v237
  %902 = vmatprep.subr.bf16.mxu0 0
  %903 = vmatpush1.bf16.msra.mxu0 %v238
  %904 = vmatprep.subr.bf16.mxu0 0
  %905 = vmatpush1.bf16.msra.mxu0 0
  %906 = vmatprep.subr.bf16.mxu0 0
  %907 = vmatpush1.bf16.msra.mxu0 0
  %908 = vmatprep.subr.bf16.mxu0 0
  %909 = vmatpush1.bf16.msra.mxu0 0
  %910 = vmatprep.subr.bf16.mxu0 0
  %911 = vmatpush1.bf16.msra.mxu0 0
  %912 = vmatprep.subr.bf16.mxu0 0
  %913 = vmatpush1.bf16.msra.mxu0 0
  %914 = vmatprep.subr.bf16.mxu0 0
  %915 = vmatpush1.bf16.msra.mxu0 0
  %916 = vmatprep.subr.bf16.mxu0 0
  %917 = vmatpush1.bf16.msra.mxu0 0
  %918 = vmatprep.subr.bf16.mxu0 0
  %919 = vmatpush1.bf16.msra.mxu0 0
  %920 = vmatprep.subr.bf16.mxu0 0
  %921 = vmatpush1.bf16.msra.mxu0 0
  %922 = vmatprep.subr.bf16.mxu0 0
  %923 = vmatpush1.bf16.msra.mxu0 0
  %924 = vmatprep.subr.bf16.mxu0 0
  %925 = vmatpush1.bf16.msra.mxu0 0
  %926 = vmatprep.subr.bf16.mxu0 0
  %927 = vmatpush1.bf16.msra.mxu0 0
  %928 = vmatprep.subr.bf16.mxu0 0
  %929 = vmatpush1.bf16.msra.mxu0 0
  %930 = vmatprep.subr.bf16.mxu0 0
  %931 = vmatpush1.bf16.msra.mxu0 0
  %932 = vmatprep.mubr.bf16.mxu0 0
  %933 = vmatmul.mubr.bf16.gmra.mrb[0].mxu0 %v898
  %v934 = vpop.f32.mrb[0].mxu0
  %v935 = vadd.f32 0.0, %v934
  %v936 = vpop.f32.mrb[0].mxu0
  %v937 = vpop.f32.mrb[0].mxu0
  %v938 = vpop.f32.mrb[0].mxu0
  %939 = vdwg.mxu0
  %v940 = vadd.f32 %v894, %v935
  %v941 = vxor.u32 %v940, 2147483648
  %v942 = vmul.f32 %v941, 1.442695
  %v943 = vpow.pop %v942
  %v944 = vadd.f32 %v943, 1.0
  %v945 = vrcp.pop %v944
  %v946 = vmul.f32 1.0, %v945
  %v947 = vtanh.pop %v940
  %v948 = vmul.f32 %v946, %v865
  %950 = vrot.lane.b32.xlu0 %v947, 64
  %v951 = vpop.permute.xlu0 %950
  %v953 = vmul.f32 %v946, %v951
  %955 = vrot.lane.b32.xlu0 %v953, 32
  %v956 = vpop.permute.xlu0 %955
  %v958 = vadd.f32 %v948, %v956
  %v959 = vtanh.pop %v958
  %961 = vrot.lane.b32.xlu0 %v959, 64
  %v962 = vpop.permute.xlu0 %961
  %v964 = vmul.f32 %v946, %v962
  %v965 = vpack.c.bf16 %v964, %v964
  %v968 = vunpack.c.l.s4 1966171168
  %v969 = vunpack.c.0.s8 %v968
  %v970 = vlaneseq
  %v971 = vshrl.u32 %v970, 7
  %v972 = vsub.s32 %v969, %v971
  %v973 = vrot.slane %v965, %v972
  %v975 = vunpack.c.l.s4 1966171168
  %v976 = vunpack.c.0.s8 %v975
  %v977 = vlaneseq
  %v978 = vshrl.u32 %v977, 7
  %v979 = vsub.s32 %v976, %v978
  %v980 = vrot.slane %v973, %v979
  %981 = vrot.lane.b32.xlu0 %v980, 32
  %v982 = vpop.permute.xlu0 %981
  %s984 = scalar_lea.vmem %s4, 7
  %985 = vst.msk [vmem:[%s984] sm:$0x1] %vm333, %v982
  %987 = vrot.lane.b32.xlu0 %v964, 32
  %v988 = vpop.permute.xlu0 %987
  %vm990 = vcmask 254976
  %991 = vst.msk [vmem:[%s5] sm:$0x3] %vm990, %v988
  %993 = vrot.lane.b32.xlu0 %v958, 96
  %v994 = vpop.permute.xlu0 %993
  %996 = vst.msk [vmem:[%s6] sm:$0x3] %vm990, %v994
  // Predicated region
  $region22: #{ast2class_forward.3} parent=0 // pred_check
    _
  $region23: #{ast2class_forward.3} parent=0 // pred_check_branch
    %998 = sbr.rel (0) target = $region25
  $region24: #{ast2class_forward.3} parent=0 // pred_region
    _
  $region25: #{ast2class_forward.3} parent=0 // pred_fallthru
    _
  // Predicated region
  $region26: #{ast2class_forward.3} parent=0 // pred_check
    _
  $region27: #{ast2class_forward.3} parent=0 // pred_check_branch
    %1000 = sbr.rel (0) target = $region29
  $region28: #{ast2class_forward.3} parent=0 // pred_region
    _
  $region29: #{ast2class_forward.3} parent=0 // pred_fallthru
    _
  // Predicated region
  $region30: #{ast2class_forward.3} parent=0 // pred_check
    _
  $region31: #{ast2class_forward.3} parent=0 // pred_check_branch
    %1002 = sbr.rel (0) target = $region33
  $region32: #{ast2class_forward.3} parent=0 // pred_region
    _
  $region33: #{ast2class_forward.3} parent=0 // pred_fallthru
    _
  // Predicated region
  $region34: #{ast2class_forward.3} parent=0 // pred_check
    _
  $region35: #{ast2class_forward.3} parent=0 // pred_check_branch
    %1004 = sbr.rel (0) target = $region37
  $region36: #{ast2class_forward.3} parent=0 // pred_region
    _
  $region37: #{ast2class_forward.3} parent=0 // pred_fallthru
    _
  // Predicated region
  $region38: #{ast2class_forward.3} parent=0 // pred_check
    _
  $region39: #{ast2class_forward.3} parent=0 // pred_check_branch
    %1006 = sbr.rel (0) target = $region41
  $region40: #{ast2class_forward.3} parent=0 // pred_region
    _
  $region41: #{ast2class_forward.3} parent=0 // pred_fallthru
    _
  // Predicated region
  $region42: #{ast2class_forward.3} parent=0 // pred_check
    _
  $region43: #{ast2class_forward.3} parent=0 // pred_check_branch
    %1008 = sbr.rel (0) target = $region45
  $region44: #{ast2class_forward.3} parent=0 // pred_region
    _
  $region45: #{ast2class_forward.3} parent=0 // pred_fallthru
    _

</llo_original>
